<compile_context>
chip_gen: v6e
topology: v6e:2x2x1
jax: 0.10.0
libtpu: 0.0.40
codegen_flags: <defaults>
</compile_context>

<pallas_src>
import jax
import jax.numpy as jnp
from jax import lax
from jax.experimental import pallas as pl
from jax.experimental.pallas import tpu as pltpu

VOCAB = 100
EMBED = 64
HIDDEN = 128
OUT = 201
OUT_PAD = 256          # 201 padded up to 2 x 128 lanes
SEQ = 20
BT = 8                 # batch tile (problems per grid step)


def lstm_policy_kernel(ids_ref, table_ref, whh_ref, wout_ref, bout_ref,
                       o_ref, gx_scr):
    """ids_ref:(SEQ*BT,1)i32  (row = t*BT + r, r = batch row within tile)
       table_ref:(VOCAB,4H)f32  folded  emb @ W_ih + b   (g columns pre-scaled x2)
       whh_ref:(H,4H)f32        recurrent weights        (g columns pre-scaled x2)
       wout_ref:(H,OUT_PAD)f32  bout_ref:(1,OUT_PAD)f32  o_ref:(BT,OUT_PAD)f32
       gx_scr:(SEQ*BT,4H)f32 VMEM scratch (pre-recurrence gate contributions).
       Gate order along 4H is PyTorch-native [i, f, g, o]."""
    H = HIDDEN

    # --- pre-recurrence: gather folded-table rows via one-hot matmul ---------
    # (exact row select: one-hot is 0/1, so the MXU result equals the gather)
    ids = ids_ref[...]                                            # (SEQ*BT, 1)
    vocab_iota = lax.broadcasted_iota(jnp.int32, (SEQ * BT, VOCAB), 1)
    onehot = jnp.where(vocab_iota == ids, 1.0, 0.0)               # f32 directly
    gx_scr[...] = jnp.dot(onehot, table_ref[...],
                          preferred_element_type=jnp.float32)     # (SEQ*BT, 4H)

    # --- recurrence: statically unrolled, h/c carried as values --------------
    h = jnp.zeros((BT, H), jnp.float32)
    c = jnp.zeros((BT, H), jnp.float32)
    for t in range(SEQ):                                          # static unroll
        gates = (gx_scr[t * BT:(t + 1) * BT, :]
                 + jnp.dot(h, whh_ref[...],
                           preferred_element_type=jnp.float32))   # (BT, 4H)
        # one fused exact sigmoid over all 4 gates (g columns were scaled by 2,
        # so g = 2*sigmoid(2x) - 1 == tanh(x))
        sig = pl.reciprocal(1.0 + jnp.exp(-gates), approx=False)
        i_g = sig[:, 0 * H:1 * H]
        f_g = sig[:, 1 * H:2 * H]
        g_g = 2.0 * sig[:, 2 * H:3 * H] - 1.0
        o_g = sig[:, 3 * H:4 * H]
        c = f_g * c + i_g * g_g
        h = o_g * jnp.tanh(c)

    # --- output projection (lane-dense 256-wide store; sliced in wrapper) ----
    o_ref[...] = (jnp.dot(h, wout_ref[...], preferred_element_type=jnp.float32)
                  + bout_ref[...])


@jax.jit
def run_policy_kernel(ids, table, whh, wout, bout):
    """ids: (B, SEQ) int32, B a multiple of BT -> logits (B, OUT) f32."""
    B = ids.shape[0]
    ng = B // BT
    # Retile ids so each grid step sees rows ordered (t, r): row = t*BT + r.
    ids_tiled = (ids.reshape(ng, BT, SEQ)
                    .transpose(0, 2, 1)
                    .reshape(ng, SEQ * BT, 1))
    out = pl.pallas_call(
        lstm_policy_kernel,
        out_shape=jax.ShapeDtypeStruct((B, OUT_PAD), jnp.float32),
        grid=(ng,),
        in_specs=[
            pl.BlockSpec((None, SEQ * BT, 1), lambda b: (b, 0, 0)),
            # weights/table: constant index_map -> VMEM-resident across steps
            pl.BlockSpec((VOCAB, 4 * HIDDEN), lambda b: (0, 0)),
            pl.BlockSpec((HIDDEN, 4 * HIDDEN), lambda b: (0, 0)),
            pl.BlockSpec((HIDDEN, OUT_PAD), lambda b: (0, 0)),
            pl.BlockSpec((1, OUT_PAD), lambda b: (0, 0)),
        ],
        out_specs=pl.BlockSpec((BT, OUT_PAD), lambda b: (b, 0)),
        scratch_shapes=[
            pltpu.VMEM((SEQ * BT, 4 * HIDDEN), jnp.float32),   # gates_x
        ],
        compiler_params=pltpu.CompilerParams(
            dimension_semantics=("parallel",)),                # 2 TCs on v7x
    )(ids_tiled, table, whh, wout, bout)
    return out[:, :OUT]


def encode_problem(problem: str) -> jnp.ndarray:
    ids = [ord(c) % VOCAB for c in problem[:SEQ]]
    ids = ids + [0] * (SEQ - len(ids))
    return jnp.asarray(ids, dtype=jnp.int32)   # (SEQ,)


def init_params(key):
    """Canonical (PyTorch-layout) f32 params; gate order along 4H is [i,f,g,o]."""
    ks = jax.random.split(key, 6)
    scale = 0.05
    return dict(
        embedding=jax.random.normal(ks[0], (VOCAB, EMBED), jnp.float32) * scale,
        # PyTorch LSTM weights are (4H, in)/(4H, H); stored transposed here.
        w_ih_t=jax.random.normal(ks[1], (EMBED, 4 * HIDDEN), jnp.float32) * scale,
        w_hh_t=jax.random.normal(ks[2], (HIDDEN, 4 * HIDDEN), jnp.float32) * scale,
        # b_ih + b_hh folded into one bias (identical semantics).
        b_gates=jax.random.normal(ks[3], (1, 4 * HIDDEN), jnp.float32) * scale,
        w_out_t=jax.random.normal(ks[4], (HIDDEN, OUT), jnp.float32) * scale,
        b_out=jax.random.normal(ks[5], (1, OUT), jnp.float32) * scale,
    )


def pack_kernel_params(params):
    """Fold emb @ W_ih + b into one table; pre-scale g-gate columns (incl. the
    folded bias) by 2 for the tanh-via-sigmoid rewrite; pad OUT -> 256 lanes."""
    H = HIDDEN
    table = params["embedding"] @ params["w_ih_t"] + params["b_gates"]  # (V,4H)
    gate_scale = jnp.concatenate([jnp.ones((2 * H,), jnp.float32),
                                  2.0 * jnp.ones((H,), jnp.float32),    # g
                                  jnp.ones((H,), jnp.float32)])
    pad = OUT_PAD - OUT
    return dict(
        table=(table * gate_scale).astype(jnp.float32),
        whh=(params["w_hh_t"] * gate_scale).astype(jnp.float32),
        wout=jnp.pad(params["w_out_t"], ((0, 0), (0, pad))),
        bout=jnp.pad(params["b_out"], ((0, 0), (0, pad))),
    )


def forward_batch(kparams, problems) -> jnp.ndarray:
    """List of problem strings -> (len(problems), OUT) logits."""
    B = len(problems)
    padded = (-B) % BT
    ids = jnp.stack([encode_problem(p) for p in problems]
                    + [jnp.zeros((SEQ,), jnp.int32)] * padded)
    logits = run_policy_kernel(ids, kparams["table"], kparams["whh"],
                               kparams["wout"], kparams["bout"])
    return logits[:B]


def forward(kparams, problem: str) -> jnp.ndarray:
    """Single-string forward (module's forward()); returns (OUT,) logits."""
    return forward_batch(kparams, [problem])[0]


def forward_ref(params, problems) -> jnp.ndarray:
    """Pure-JAX f32 reference LSTM (PyTorch [i,f,g,o] gate order)."""
    H = HIDDEN
    outs = []
    for p in problems:
        ids = encode_problem(p)
        x = params["embedding"][ids]                      # (SEQ, E)
        h = jnp.zeros((1, H), jnp.float32)
        c = jnp.zeros((1, H), jnp.float32)
        for t in range(SEQ):
            gates = (x[t:t + 1] @ params["w_ih_t"]
                     + h @ params["w_hh_t"] + params["b_gates"])
            i_g = jax.nn.sigmoid(gates[:, 0 * H:1 * H])
            f_g = jax.nn.sigmoid(gates[:, 1 * H:2 * H])
            g_g = jnp.tanh(gates[:, 2 * H:3 * H])
            o_g = jax.nn.sigmoid(gates[:, 3 * H:4 * H])
            c = f_g * c + i_g * g_g
            h = o_g * jnp.tanh(c)
        outs.append((h @ params["w_out_t"] + params["b_out"])[0])
    return jnp.stack(outs)


# TODO(synk): get_answer_and_log_prob's multinomial sampling stays host-side
# (it is not part of the module's forward pass).

if __name__ == "__main__":
    key = jax.random.PRNGKey(0)
    params = init_params(key)
    kparams = pack_kernel_params(params)

    problems = [f"{a} + {b} = ?" for a, b in zip(range(10, 26), range(30, 46))]
    assert len(problems) == 16                      # 2 grid steps of BT=8

    logits = forward_batch(kparams, problems)       # (16, 201)
    logits = jax.block_until_ready(logits)

    ref = forward_ref(params, problems)
    assert logits.shape == (len(problems), OUT)
    assert jnp.allclose(logits, ref, rtol=1e-2, atol=1e-2), "mismatch vs reference"

    print("KERNEL_OK")
</pallas_src>

<mosaic_0001>
module attributes {stable_mosaic.version = 11 : i64} {
  func.func @lstm_policy_kernel(%arg0: i32, %arg1: memref<1x160x1xi32, #tpu.memory_space<vmem>>, %arg2: memref<100x512xf32, #tpu.memory_space<vmem>>, %arg3: memref<128x512xf32, #tpu.memory_space<vmem>>, %arg4: memref<128x256xf32, #tpu.memory_space<vmem>>, %arg5: memref<1x256xf32, #tpu.memory_space<vmem>>, %arg6: memref<8x256xf32, #tpu.memory_space<vmem>>, %arg7: memref<160x512xf32, #tpu.memory_space<vmem>>) attributes {dimension_semantics = [#tpu.dimension_semantics<parallel>], iteration_bounds = array<i64: 2>, scalar_prefetch = 0 : i64, scratch_operands = 1 : i64, tpu.core_type = #tpu.core_type<tc>, window_params = [{transform_indices = @transform_0, window_bounds = array<i64: 1, 160, 1>}, {pipeline_mode = #tpu.pipeline_mode<synchronous>, transform_indices = @transform_1, window_bounds = array<i64: 100, 512>}, {pipeline_mode = #tpu.pipeline_mode<synchronous>, transform_indices = @transform_2, window_bounds = array<i64: 128, 512>}, {pipeline_mode = #tpu.pipeline_mode<synchronous>, transform_indices = @transform_3, window_bounds = array<i64: 128, 256>}, {pipeline_mode = #tpu.pipeline_mode<synchronous>, transform_indices = @transform_4, window_bounds = array<i64: 1, 256>}, {transform_indices = @transform_5, window_bounds = array<i64: 8, 256>}]} {
    %c0 = arith.constant 0 : index
    %c0_0 = arith.constant 0 : index
    %c0_1 = arith.constant 0 : index
    %0 = vector.load %arg1[%c0, %c0_0, %c0_1] : memref<1x160x1xi32, #tpu.memory_space<vmem>>, vector<1x160x1xi32>
    %1 = vector.shape_cast %0 : vector<1x160x1xi32> to vector<160x1xi32>
    %2 = tpu.iota {dimensions = array<i32: 1>} : vector<160x100xi32>
    %3 = vector.broadcast %1 : vector<160x1xi32> to vector<160x100xi32>
    %4 = arith.cmpi eq, %2, %3 : vector<160x100xi32>
    %cst = arith.constant 1.000000e+00 : f32
    %cst_2 = arith.constant 0.000000e+00 : f32
    %5 = vector.broadcast %cst : f32 to vector<160x100xf32>
    %6 = vector.broadcast %cst_2 : f32 to vector<160x100xf32>
    %7 = arith.select %4, %5, %6 : vector<160x100xi1>, vector<160x100xf32>
    %c0_3 = arith.constant 0 : index
    %c0_4 = arith.constant 0 : index
    %8 = vector.load %arg2[%c0_3, %c0_4] : memref<100x512xf32, #tpu.memory_space<vmem>>, vector<100x512xf32>
    %cst_5 = arith.constant dense<0.000000e+00> : vector<160x512xf32>
    %9 = tpu.matmul %7, %8, %cst_5 {dimension_numbers = #tpu.dot_dimension_numbers<[1], [0], [0], [1], [0, 0, 1, 1], [], []>} : vector<160x100xf32>, vector<100x512xf32>, vector<160x512xf32> -> vector<160x512xf32>
    %c0_6 = arith.constant 0 : index
    %c0_7 = arith.constant 0 : index
    %10 = vector.load %arg7[%c0_6, %c0_7] : memref<160x512xf32, #tpu.memory_space<vmem>>, vector<160x512xf32>
    tpu.vector_store %arg7[%c0_6, %c0_7], %9 {strides = array<i32>} : memref<160x512xf32, #tpu.memory_space<vmem>>, vector<160x512xf32>,
    %cst_8 = arith.constant 0.000000e+00 : f32
    %11 = vector.broadcast %cst_8 : f32 to vector<8x128xf32>
    %cst_9 = arith.constant 0.000000e+00 : f32
    %12 = vector.broadcast %cst_9 : f32 to vector<8x128xf32>
    %c0_10 = arith.constant 0 : index
    %c0_11 = arith.constant 0 : index
    %13 = vector.load %arg7[%c0_10, %c0_11] : memref<160x512xf32, #tpu.memory_space<vmem>>, vector<8x512xf32>
    %c0_12 = arith.constant 0 : index
    %c0_13 = arith.constant 0 : index
    %14 = vector.load %arg3[%c0_12, %c0_13] : memref<128x512xf32, #tpu.memory_space<vmem>>, vector<128x512xf32>
    %cst_14 = arith.constant dense<0.000000e+00> : vector<8x512xf32>
    %15 = tpu.matmul %11, %14, %cst_14 {dimension_numbers = #tpu.dot_dimension_numbers<[1], [0], [0], [1], [0, 0, 1, 1], [], []>} : vector<8x128xf32>, vector<128x512xf32>, vector<8x512xf32> -> vector<8x512xf32>
    %16 = arith.addf %13, %15 : vector<8x512xf32>
    %cst_15 = arith.constant 0.000000e+00 : f32
    %17 = vector.broadcast %cst_15 : f32 to vector<8x512xf32>
    %18 = arith.subf %17, %16 : vector<8x512xf32>
    %19 = math.exp %18 : vector<8x512xf32>
    %cst_16 = arith.constant 1.000000e+00 : f32
    %20 = vector.broadcast %cst_16 : f32 to vector<8x512xf32>
    %21 = arith.addf %20, %19 : vector<8x512xf32>
    %22 = tpu.reciprocal %21 : vector<8x512xf32> -> vector<8x512xf32>
    %23 = vector.extract_strided_slice %22 {offsets = [0, 0], sizes = [8, 128], strides = [1, 1]} : vector<8x512xf32> to vector<8x128xf32>
    %24 = vector.extract_strided_slice %22 {offsets = [0, 128], sizes = [8, 128], strides = [1, 1]} : vector<8x512xf32> to vector<8x128xf32>
    %25 = vector.extract_strided_slice %22 {offsets = [0, 256], sizes = [8, 128], strides = [1, 1]} : vector<8x512xf32> to vector<8x128xf32>
    %cst_17 = arith.constant 2.000000e+00 : f32
    %26 = vector.broadcast %cst_17 : f32 to vector<8x128xf32>
    %27 = arith.mulf %26, %25 : vector<8x128xf32>
    %cst_18 = arith.constant 1.000000e+00 : f32
    %28 = vector.broadcast %cst_18 : f32 to vector<8x128xf32>
    %29 = arith.subf %27, %28 : vector<8x128xf32>
    %30 = vector.extract_strided_slice %22 {offsets = [0, 384], sizes = [8, 128], strides = [1, 1]} : vector<8x512xf32> to vector<8x128xf32>
    %31 = arith.mulf %24, %12 : vector<8x128xf32>
    %32 = arith.mulf %23, %29 : vector<8x128xf32>
    %33 = arith.addf %31, %32 : vector<8x128xf32>
    %34 = math.tanh %33 : vector<8x128xf32>
    %35 = arith.mulf %30, %34 : vector<8x128xf32>
    %c8 = arith.constant 8 : index
    %c0_19 = arith.constant 0 : index
    %36 = vector.load %arg7[%c8, %c0_19] : memref<160x512xf32, #tpu.memory_space<vmem>>, vector<8x512xf32>
    %c0_20 = arith.constant 0 : index
    %c0_21 = arith.constant 0 : index
    %37 = vector.load %arg3[%c0_20, %c0_21] : memref<128x512xf32, #tpu.memory_space<vmem>>, vector<128x512xf32>
    %cst_22 = arith.constant dense<0.000000e+00> : vector<8x512xf32>
    %38 = tpu.matmul %35, %37, %cst_22 {dimension_numbers = #tpu.dot_dimension_numbers<[1], [0], [0], [1], [0, 0, 1, 1], [], []>} : vector<8x128xf32>, vector<128x512xf32>, vector<8x512xf32> -> vector<8x512xf32>
    %39 = arith.addf %36, %38 : vector<8x512xf32>
    %cst_23 = arith.constant 0.000000e+00 : f32
    %40 = vector.broadcast %cst_23 : f32 to vector<8x512xf32>
    %41 = arith.subf %40, %39 : vector<8x512xf32>
    %42 = math.exp %41 : vector<8x512xf32>
    %cst_24 = arith.constant 1.000000e+00 : f32
    %43 = vector.broadcast %cst_24 : f32 to vector<8x512xf32>
    %44 = arith.addf %43, %42 : vector<8x512xf32>
    %45 = tpu.reciprocal %44 : vector<8x512xf32> -> vector<8x512xf32>
    %46 = vector.extract_strided_slice %45 {offsets = [0, 0], sizes = [8, 128], strides = [1, 1]} : vector<8x512xf32> to vector<8x128xf32>
    %47 = vector.extract_strided_slice %45 {offsets = [0, 128], sizes = [8, 128], strides = [1, 1]} : vector<8x512xf32> to vector<8x128xf32>
    %48 = vector.extract_strided_slice %45 {offsets = [0, 256], sizes = [8, 128], strides = [1, 1]} : vector<8x512xf32> to vector<8x128xf32>
    %cst_25 = arith.constant 2.000000e+00 : f32
    %49 = vector.broadcast %cst_25 : f32 to vector<8x128xf32>
    %50 = arith.mulf %49, %48 : vector<8x128xf32>
    %cst_26 = arith.constant 1.000000e+00 : f32
    %51 = vector.broadcast %cst_26 : f32 to vector<8x128xf32>
    %52 = arith.subf %50, %51 : vector<8x128xf32>
    %53 = vector.extract_strided_slice %45 {offsets = [0, 384], sizes = [8, 128], strides = [1, 1]} : vector<8x512xf32> to vector<8x128xf32>
    %54 = arith.mulf %47, %33 : vector<8x128xf32>
    %55 = arith.mulf %46, %52 : vector<8x128xf32>
    %56 = arith.addf %54, %55 : vector<8x128xf32>
    %57 = math.tanh %56 : vector<8x128xf32>
    %58 = arith.mulf %53, %57 : vector<8x128xf32>
    %c16 = arith.constant 16 : index
    %c0_27 = arith.constant 0 : index
    %59 = vector.load %arg7[%c16, %c0_27] : memref<160x512xf32, #tpu.memory_space<vmem>>, vector<8x512xf32>
    %c0_28 = arith.constant 0 : index
    %c0_29 = arith.constant 0 : index
    %60 = vector.load %arg3[%c0_28, %c0_29] : memref<128x512xf32, #tpu.memory_space<vmem>>, vector<128x512xf32>
    %cst_30 = arith.constant dense<0.000000e+00> : vector<8x512xf32>
    %61 = tpu.matmul %58, %60, %cst_30 {dimension_numbers = #tpu.dot_dimension_numbers<[1], [0], [0], [1], [0, 0, 1, 1], [], []>} : vector<8x128xf32>, vector<128x512xf32>, vector<8x512xf32> -> vector<8x512xf32>
    %62 = arith.addf %59, %61 : vector<8x512xf32>
    %cst_31 = arith.constant 0.000000e+00 : f32
    %63 = vector.broadcast %cst_31 : f32 to vector<8x512xf32>
    %64 = arith.subf %63, %62 : vector<8x512xf32>
    %65 = math.exp %64 : vector<8x512xf32>
    %cst_32 = arith.constant 1.000000e+00 : f32
    %66 = vector.broadcast %cst_32 : f32 to vector<8x512xf32>
    %67 = arith.addf %66, %65 : vector<8x512xf32>
    %68 = tpu.reciprocal %67 : vector<8x512xf32> -> vector<8x512xf32>
    %69 = vector.extract_strided_slice %68 {offsets = [0, 0], sizes = [8, 128], strides = [1, 1]} : vector<8x512xf32> to vector<8x128xf32>
    %70 = vector.extract_strided_slice %68 {offsets = [0, 128], sizes = [8, 128], strides = [1, 1]} : vector<8x512xf32> to vector<8x128xf32>
    %71 = vector.extract_strided_slice %68 {offsets = [0, 256], sizes = [8, 128], strides = [1, 1]} : vector<8x512xf32> to vector<8x128xf32>
    %cst_33 = arith.constant 2.000000e+00 : f32
    %72 = vector.broadcast %cst_33 : f32 to vector<8x128xf32>
    %73 = arith.mulf %72, %71 : vector<8x128xf32>
    %cst_34 = arith.constant 1.000000e+00 : f32
    %74 = vector.broadcast %cst_34 : f32 to vector<8x128xf32>
    %75 = arith.subf %73, %74 : vector<8x128xf32>
    %76 = vector.extract_strided_slice %68 {offsets = [0, 384], sizes = [8, 128], strides = [1, 1]} : vector<8x512xf32> to vector<8x128xf32>
    %77 = arith.mulf %70, %56 : vector<8x128xf32>
    %78 = arith.mulf %69, %75 : vector<8x128xf32>
    %79 = arith.addf %77, %78 : vector<8x128xf32>
    %80 = math.tanh %79 : vector<8x128xf32>
    %81 = arith.mulf %76, %80 : vector<8x128xf32>
    %c24 = arith.constant 24 : index
    %c0_35 = arith.constant 0 : index
    %82 = vector.load %arg7[%c24, %c0_35] : memref<160x512xf32, #tpu.memory_space<vmem>>, vector<8x512xf32>
    %c0_36 = arith.constant 0 : index
    %c0_37 = arith.constant 0 : index
    %83 = vector.load %arg3[%c0_36, %c0_37] : memref<128x512xf32, #tpu.memory_space<vmem>>, vector<128x512xf32>
    %cst_38 = arith.constant dense<0.000000e+00> : vector<8x512xf32>
    %84 = tpu.matmul %81, %83, %cst_38 {dimension_numbers = #tpu.dot_dimension_numbers<[1], [0], [0], [1], [0, 0, 1, 1], [], []>} : vector<8x128xf32>, vector<128x512xf32>, vector<8x512xf32> -> vector<8x512xf32>
    %85 = arith.addf %82, %84 : vector<8x512xf32>
    %cst_39 = arith.constant 0.000000e+00 : f32
    %86 = vector.broadcast %cst_39 : f32 to vector<8x512xf32>
    %87 = arith.subf %86, %85 : vector<8x512xf32>
    %88 = math.exp %87 : vector<8x512xf32>
    %cst_40 = arith.constant 1.000000e+00 : f32
    %89 = vector.broadcast %cst_40 : f32 to vector<8x512xf32>
    %90 = arith.addf %89, %88 : vector<8x512xf32>
    %91 = tpu.reciprocal %90 : vector<8x512xf32> -> vector<8x512xf32>
    %92 = vector.extract_strided_slice %91 {offsets = [0, 0], sizes = [8, 128], strides = [1, 1]} : vector<8x512xf32> to vector<8x128xf32>
    %93 = vector.extract_strided_slice %91 {offsets = [0, 128], sizes = [8, 128], strides = [1, 1]} : vector<8x512xf32> to vector<8x128xf32>
    %94 = vector.extract_strided_slice %91 {offsets = [0, 256], sizes = [8, 128], strides = [1, 1]} : vector<8x512xf32> to vector<8x128xf32>
    %cst_41 = arith.constant 2.000000e+00 : f32
    %95 = vector.broadcast %cst_41 : f32 to vector<8x128xf32>
    %96 = arith.mulf %95, %94 : vector<8x128xf32>
    %cst_42 = arith.constant 1.000000e+00 : f32
    %97 = vector.broadcast %cst_42 : f32 to vector<8x128xf32>
    %98 = arith.subf %96, %97 : vector<8x128xf32>
    %99 = vector.extract_strided_slice %91 {offsets = [0, 384], sizes = [8, 128], strides = [1, 1]} : vector<8x512xf32> to vector<8x128xf32>
    %100 = arith.mulf %93, %79 : vector<8x128xf32>
    %101 = arith.mulf %92, %98 : vector<8x128xf32>
    %102 = arith.addf %100, %101 : vector<8x128xf32>
    %103 = math.tanh %102 : vector<8x128xf32>
    %104 = arith.mulf %99, %103 : vector<8x128xf32>
    %c32 = arith.constant 32 : index
    %c0_43 = arith.constant 0 : index
    %105 = vector.load %arg7[%c32, %c0_43] : memref<160x512xf32, #tpu.memory_space<vmem>>, vector<8x512xf32>
    %c0_44 = arith.constant 0 : index
    %c0_45 = arith.constant 0 : index
    %106 = vector.load %arg3[%c0_44, %c0_45] : memref<128x512xf32, #tpu.memory_space<vmem>>, vector<128x512xf32>
    %cst_46 = arith.constant dense<0.000000e+00> : vector<8x512xf32>
    %107 = tpu.matmul %104, %106, %cst_46 {dimension_numbers = #tpu.dot_dimension_numbers<[1], [0], [0], [1], [0, 0, 1, 1], [], []>} : vector<8x128xf32>, vector<128x512xf32>, vector<8x512xf32> -> vector<8x512xf32>
    %108 = arith.addf %105, %107 : vector<8x512xf32>
    %cst_47 = arith.constant 0.000000e+00 : f32
    %109 = vector.broadcast %cst_47 : f32 to vector<8x512xf32>
    %110 = arith.subf %109, %108 : vector<8x512xf32>
    %111 = math.exp %110 : vector<8x512xf32>
    %cst_48 = arith.constant 1.000000e+00 : f32
    %112 = vector.broadcast %cst_48 : f32 to vector<8x512xf32>
    %113 = arith.addf %112, %111 : vector<8x512xf32>
    %114 = tpu.reciprocal %113 : vector<8x512xf32> -> vector<8x512xf32>
    %115 = vector.extract_strided_slice %114 {offsets = [0, 0], sizes = [8, 128], strides = [1, 1]} : vector<8x512xf32> to vector<8x128xf32>
    %116 = vector.extract_strided_slice %114 {offsets = [0, 128], sizes = [8, 128], strides = [1, 1]} : vector<8x512xf32> to vector<8x128xf32>
    %117 = vector.extract_strided_slice %114 {offsets = [0, 256], sizes = [8, 128], strides = [1, 1]} : vector<8x512xf32> to vector<8x128xf32>
    %cst_49 = arith.constant 2.000000e+00 : f32
    %118 = vector.broadcast %cst_49 : f32 to vector<8x128xf32>
    %119 = arith.mulf %118, %117 : vector<8x128xf32>
    %cst_50 = arith.constant 1.000000e+00 : f32
    %120 = vector.broadcast %cst_50 : f32 to vector<8x128xf32>
    %121 = arith.subf %119, %120 : vector<8x128xf32>
    %122 = vector.extract_strided_slice %114 {offsets = [0, 384], sizes = [8, 128], strides = [1, 1]} : vector<8x512xf32> to vector<8x128xf32>
    %123 = arith.mulf %116, %102 : vector<8x128xf32>
    %124 = arith.mulf %115, %121 : vector<8x128xf32>
    %125 = arith.addf %123, %124 : vector<8x128xf32>
    %126 = math.tanh %125 : vector<8x128xf32>
    %127 = arith.mulf %122, %126 : vector<8x128xf32>
    %c40 = arith.constant 40 : index
    %c0_51 = arith.constant 0 : index
    %128 = vector.load %arg7[%c40, %c0_51] : memref<160x512xf32, #tpu.memory_space<vmem>>, vector<8x512xf32>
    %c0_52 = arith.constant 0 : index
    %c0_53 = arith.constant 0 : index
    %129 = vector.load %arg3[%c0_52, %c0_53] : memref<128x512xf32, #tpu.memory_space<vmem>>, vector<128x512xf32>
    %cst_54 = arith.constant dense<0.000000e+00> : vector<8x512xf32>
    %130 = tpu.matmul %127, %129, %cst_54 {dimension_numbers = #tpu.dot_dimension_numbers<[1], [0], [0], [1], [0, 0, 1, 1], [], []>} : vector<8x128xf32>, vector<128x512xf32>, vector<8x512xf32> -> vector<8x512xf32>
    %131 = arith.addf %128, %130 : vector<8x512xf32>
    %cst_55 = arith.constant 0.000000e+00 : f32
    %132 = vector.broadcast %cst_55 : f32 to vector<8x512xf32>
    %133 = arith.subf %132, %131 : vector<8x512xf32>
    %134 = math.exp %133 : vector<8x512xf32>
    %cst_56 = arith.constant 1.000000e+00 : f32
    %135 = vector.broadcast %cst_56 : f32 to vector<8x512xf32>
    %136 = arith.addf %135, %134 : vector<8x512xf32>
    %137 = tpu.reciprocal %136 : vector<8x512xf32> -> vector<8x512xf32>
    %138 = vector.extract_strided_slice %137 {offsets = [0, 0], sizes = [8, 128], strides = [1, 1]} : vector<8x512xf32> to vector<8x128xf32>
    %139 = vector.extract_strided_slice %137 {offsets = [0, 128], sizes = [8, 128], strides = [1, 1]} : vector<8x512xf32> to vector<8x128xf32>
    %140 = vector.extract_strided_slice %137 {offsets = [0, 256], sizes = [8, 128], strides = [1, 1]} : vector<8x512xf32> to vector<8x128xf32>
    %cst_57 = arith.constant 2.000000e+00 : f32
    %141 = vector.broadcast %cst_57 : f32 to vector<8x128xf32>
    %142 = arith.mulf %141, %140 : vector<8x128xf32>
    %cst_58 = arith.constant 1.000000e+00 : f32
    %143 = vector.broadcast %cst_58 : f32 to vector<8x128xf32>
    %144 = arith.subf %142, %143 : vector<8x128xf32>
    %145 = vector.extract_strided_slice %137 {offsets = [0, 384], sizes = [8, 128], strides = [1, 1]} : vector<8x512xf32> to vector<8x128xf32>
    %146 = arith.mulf %139, %125 : vector<8x128xf32>
    %147 = arith.mulf %138, %144 : vector<8x128xf32>
    %148 = arith.addf %146, %147 : vector<8x128xf32>
    %149 = math.tanh %148 : vector<8x128xf32>
    %150 = arith.mulf %145, %149 : vector<8x128xf32>
    %c48 = arith.constant 48 : index
    %c0_59 = arith.constant 0 : index
    %151 = vector.load %arg7[%c48, %c0_59] : memref<160x512xf32, #tpu.memory_space<vmem>>, vector<8x512xf32>
    %c0_60 = arith.constant 0 : index
    %c0_61 = arith.constant 0 : index
    %152 = vector.load %arg3[%c0_60, %c0_61] : memref<128x512xf32, #tpu.memory_space<vmem>>, vector<128x512xf32>
    %cst_62 = arith.constant dense<0.000000e+00> : vector<8x512xf32>
    %153 = tpu.matmul %150, %152, %cst_62 {dimension_numbers = #tpu.dot_dimension_numbers<[1], [0], [0], [1], [0, 0, 1, 1], [], []>} : vector<8x128xf32>, vector<128x512xf32>, vector<8x512xf32> -> vector<8x512xf32>
    %154 = arith.addf %151, %153 : vector<8x512xf32>
    %cst_63 = arith.constant 0.000000e+00 : f32
    %155 = vector.broadcast %cst_63 : f32 to vector<8x512xf32>
    %156 = arith.subf %155, %154 : vector<8x512xf32>
    %157 = math.exp %156 : vector<8x512xf32>
    %cst_64 = arith.constant 1.000000e+00 : f32
    %158 = vector.broadcast %cst_64 : f32 to vector<8x512xf32>
    %159 = arith.addf %158, %157 : vector<8x512xf32>
    %160 = tpu.reciprocal %159 : vector<8x512xf32> -> vector<8x512xf32>
    %161 = vector.extract_strided_slice %160 {offsets = [0, 0], sizes = [8, 128], strides = [1, 1]} : vector<8x512xf32> to vector<8x128xf32>
    %162 = vector.extract_strided_slice %160 {offsets = [0, 128], sizes = [8, 128], strides = [1, 1]} : vector<8x512xf32> to vector<8x128xf32>
    %163 = vector.extract_strided_slice %160 {offsets = [0, 256], sizes = [8, 128], strides = [1, 1]} : vector<8x512xf32> to vector<8x128xf32>
    %cst_65 = arith.constant 2.000000e+00 : f32
    %164 = vector.broadcast %cst_65 : f32 to vector<8x128xf32>
    %165 = arith.mulf %164, %163 : vector<8x128xf32>
    %cst_66 = arith.constant 1.000000e+00 : f32
    %166 = vector.broadcast %cst_66 : f32 to vector<8x128xf32>
    %167 = arith.subf %165, %166 : vector<8x128xf32>
    %168 = vector.extract_strided_slice %160 {offsets = [0, 384], sizes = [8, 128], strides = [1, 1]} : vector<8x512xf32> to vector<8x128xf32>
    %169 = arith.mulf %162, %148 : vector<8x128xf32>
    %170 = arith.mulf %161, %167 : vector<8x128xf32>
    %171 = arith.addf %169, %170 : vector<8x128xf32>
    %172 = math.tanh %171 : vector<8x128xf32>
    %173 = arith.mulf %168, %172 : vector<8x128xf32>
    %c56 = arith.constant 56 : index
    %c0_67 = arith.constant 0 : index
    %174 = vector.load %arg7[%c56, %c0_67] : memref<160x512xf32, #tpu.memory_space<vmem>>, vector<8x512xf32>
    %c0_68 = arith.constant 0 : index
    %c0_69 = arith.constant 0 : index
    %175 = vector.load %arg3[%c0_68, %c0_69] : memref<128x512xf32, #tpu.memory_space<vmem>>, vector<128x512xf32>
    %cst_70 = arith.constant dense<0.000000e+00> : vector<8x512xf32>
    %176 = tpu.matmul %173, %175, %cst_70 {dimension_numbers = #tpu.dot_dimension_numbers<[1], [0], [0], [1], [0, 0, 1, 1], [], []>} : vector<8x128xf32>, vector<128x512xf32>, vector<8x512xf32> -> vector<8x512xf32>
    %177 = arith.addf %174, %176 : vector<8x512xf32>
    %cst_71 = arith.constant 0.000000e+00 : f32
    %178 = vector.broadcast %cst_71 : f32 to vector<8x512xf32>
    %179 = arith.subf %178, %177 : vector<8x512xf32>
    %180 = math.exp %179 : vector<8x512xf32>
    %cst_72 = arith.constant 1.000000e+00 : f32
    %181 = vector.broadcast %cst_72 : f32 to vector<8x512xf32>
    %182 = arith.addf %181, %180 : vector<8x512xf32>
    %183 = tpu.reciprocal %182 : vector<8x512xf32> -> vector<8x512xf32>
    %184 = vector.extract_strided_slice %183 {offsets = [0, 0], sizes = [8, 128], strides = [1, 1]} : vector<8x512xf32> to vector<8x128xf32>
    %185 = vector.extract_strided_slice %183 {offsets = [0, 128], sizes = [8, 128], strides = [1, 1]} : vector<8x512xf32> to vector<8x128xf32>
    %186 = vector.extract_strided_slice %183 {offsets = [0, 256], sizes = [8, 128], strides = [1, 1]} : vector<8x512xf32> to vector<8x128xf32>
    %cst_73 = arith.constant 2.000000e+00 : f32
    %187 = vector.broadcast %cst_73 : f32 to vector<8x128xf32>
    %188 = arith.mulf %187, %186 : vector<8x128xf32>
    %cst_74 = arith.constant 1.000000e+00 : f32
    %189 = vector.broadcast %cst_74 : f32 to vector<8x128xf32>
    %190 = arith.subf %188, %189 : vector<8x128xf32>
    %191 = vector.extract_strided_slice %183 {offsets = [0, 384], sizes = [8, 128], strides = [1, 1]} : vector<8x512xf32> to vector<8x128xf32>
    %192 = arith.mulf %185, %171 : vector<8x128xf32>
    %193 = arith.mulf %184, %190 : vector<8x128xf32>
    %194 = arith.addf %192, %193 : vector<8x128xf32>
    %195 = math.tanh %194 : vector<8x128xf32>
    %196 = arith.mulf %191, %195 : vector<8x128xf32>
    %c64 = arith.constant 64 : index
    %c0_75 = arith.constant 0 : index
    %197 = vector.load %arg7[%c64, %c0_75] : memref<160x512xf32, #tpu.memory_space<vmem>>, vector<8x512xf32>
    %c0_76 = arith.constant 0 : index
    %c0_77 = arith.constant 0 : index
    %198 = vector.load %arg3[%c0_76, %c0_77] : memref<128x512xf32, #tpu.memory_space<vmem>>, vector<128x512xf32>
    %cst_78 = arith.constant dense<0.000000e+00> : vector<8x512xf32>
    %199 = tpu.matmul %196, %198, %cst_78 {dimension_numbers = #tpu.dot_dimension_numbers<[1], [0], [0], [1], [0, 0, 1, 1], [], []>} : vector<8x128xf32>, vector<128x512xf32>, vector<8x512xf32> -> vector<8x512xf32>
    %200 = arith.addf %197, %199 : vector<8x512xf32>
    %cst_79 = arith.constant 0.000000e+00 : f32
    %201 = vector.broadcast %cst_79 : f32 to vector<8x512xf32>
    %202 = arith.subf %201, %200 : vector<8x512xf32>
    %203 = math.exp %202 : vector<8x512xf32>
    %cst_80 = arith.constant 1.000000e+00 : f32
    %204 = vector.broadcast %cst_80 : f32 to vector<8x512xf32>
    %205 = arith.addf %204, %203 : vector<8x512xf32>
    %206 = tpu.reciprocal %205 : vector<8x512xf32> -> vector<8x512xf32>
    %207 = vector.extract_strided_slice %206 {offsets = [0, 0], sizes = [8, 128], strides = [1, 1]} : vector<8x512xf32> to vector<8x128xf32>
    %208 = vector.extract_strided_slice %206 {offsets = [0, 128], sizes = [8, 128], strides = [1, 1]} : vector<8x512xf32> to vector<8x128xf32>
    %209 = vector.extract_strided_slice %206 {offsets = [0, 256], sizes = [8, 128], strides = [1, 1]} : vector<8x512xf32> to vector<8x128xf32>
    %cst_81 = arith.constant 2.000000e+00 : f32
    %210 = vector.broadcast %cst_81 : f32 to vector<8x128xf32>
    %211 = arith.mulf %210, %209 : vector<8x128xf32>
    %cst_82 = arith.constant 1.000000e+00 : f32
    %212 = vector.broadcast %cst_82 : f32 to vector<8x128xf32>
    %213 = arith.subf %211, %212 : vector<8x128xf32>
    %214 = vector.extract_strided_slice %206 {offsets = [0, 384], sizes = [8, 128], strides = [1, 1]} : vector<8x512xf32> to vector<8x128xf32>
    %215 = arith.mulf %208, %194 : vector<8x128xf32>
    %216 = arith.mulf %207, %213 : vector<8x128xf32>
    %217 = arith.addf %215, %216 : vector<8x128xf32>
    %218 = math.tanh %217 : vector<8x128xf32>
    %219 = arith.mulf %214, %218 : vector<8x128xf32>
    %c72 = arith.constant 72 : index
    %c0_83 = arith.constant 0 : index
    %220 = vector.load %arg7[%c72, %c0_83] : memref<160x512xf32, #tpu.memory_space<vmem>>, vector<8x512xf32>
    %c0_84 = arith.constant 0 : index
    %c0_85 = arith.constant 0 : index
    %221 = vector.load %arg3[%c0_84, %c0_85] : memref<128x512xf32, #tpu.memory_space<vmem>>, vector<128x512xf32>
    %cst_86 = arith.constant dense<0.000000e+00> : vector<8x512xf32>
    %222 = tpu.matmul %219, %221, %cst_86 {dimension_numbers = #tpu.dot_dimension_numbers<[1], [0], [0], [1], [0, 0, 1, 1], [], []>} : vector<8x128xf32>, vector<128x512xf32>, vector<8x512xf32> -> vector<8x512xf32>
    %223 = arith.addf %220, %222 : vector<8x512xf32>
    %cst_87 = arith.constant 0.000000e+00 : f32
    %224 = vector.broadcast %cst_87 : f32 to vector<8x512xf32>
    %225 = arith.subf %224, %223 : vector<8x512xf32>
    %226 = math.exp %225 : vector<8x512xf32>
    %cst_88 = arith.constant 1.000000e+00 : f32
    %227 = vector.broadcast %cst_88 : f32 to vector<8x512xf32>
    %228 = arith.addf %227, %226 : vector<8x512xf32>
    %229 = tpu.reciprocal %228 : vector<8x512xf32> -> vector<8x512xf32>
    %230 = vector.extract_strided_slice %229 {offsets = [0, 0], sizes = [8, 128], strides = [1, 1]} : vector<8x512xf32> to vector<8x128xf32>
    %231 = vector.extract_strided_slice %229 {offsets = [0, 128], sizes = [8, 128], strides = [1, 1]} : vector<8x512xf32> to vector<8x128xf32>
    %232 = vector.extract_strided_slice %229 {offsets = [0, 256], sizes = [8, 128], strides = [1, 1]} : vector<8x512xf32> to vector<8x128xf32>
    %cst_89 = arith.constant 2.000000e+00 : f32
    %233 = vector.broadcast %cst_89 : f32 to vector<8x128xf32>
    %234 = arith.mulf %233, %232 : vector<8x128xf32>
    %cst_90 = arith.constant 1.000000e+00 : f32
    %235 = vector.broadcast %cst_90 : f32 to vector<8x128xf32>
    %236 = arith.subf %234, %235 : vector<8x128xf32>
    %237 = vector.extract_strided_slice %229 {offsets = [0, 384], sizes = [8, 128], strides = [1, 1]} : vector<8x512xf32> to vector<8x128xf32>
    %238 = arith.mulf %231, %217 : vector<8x128xf32>
    %239 = arith.mulf %230, %236 : vector<8x128xf32>
    %240 = arith.addf %238, %239 : vector<8x128xf32>
    %241 = math.tanh %240 : vector<8x128xf32>
    %242 = arith.mulf %237, %241 : vector<8x128xf32>
    %c80 = arith.constant 80 : index
    %c0_91 = arith.constant 0 : index
    %243 = vector.load %arg7[%c80, %c0_91] : memref<160x512xf32, #tpu.memory_space<vmem>>, vector<8x512xf32>
    %c0_92 = arith.constant 0 : index
    %c0_93 = arith.constant 0 : index
    %244 = vector.load %arg3[%c0_92, %c0_93] : memref<128x512xf32, #tpu.memory_space<vmem>>, vector<128x512xf32>
    %cst_94 = arith.constant dense<0.000000e+00> : vector<8x512xf32>
    %245 = tpu.matmul %242, %244, %cst_94 {dimension_numbers = #tpu.dot_dimension_numbers<[1], [0], [0], [1], [0, 0, 1, 1], [], []>} : vector<8x128xf32>, vector<128x512xf32>, vector<8x512xf32> -> vector<8x512xf32>
    %246 = arith.addf %243, %245 : vector<8x512xf32>
    %cst_95 = arith.constant 0.000000e+00 : f32
    %247 = vector.broadcast %cst_95 : f32 to vector<8x512xf32>
    %248 = arith.subf %247, %246 : vector<8x512xf32>
    %249 = math.exp %248 : vector<8x512xf32>
    %cst_96 = arith.constant 1.000000e+00 : f32
    %250 = vector.broadcast %cst_96 : f32 to vector<8x512xf32>
    %251 = arith.addf %250, %249 : vector<8x512xf32>
    %252 = tpu.reciprocal %251 : vector<8x512xf32> -> vector<8x512xf32>
    %253 = vector.extract_strided_slice %252 {offsets = [0, 0], sizes = [8, 128], strides = [1, 1]} : vector<8x512xf32> to vector<8x128xf32>
    %254 = vector.extract_strided_slice %252 {offsets = [0, 128], sizes = [8, 128], strides = [1, 1]} : vector<8x512xf32> to vector<8x128xf32>
    %255 = vector.extract_strided_slice %252 {offsets = [0, 256], sizes = [8, 128], strides = [1, 1]} : vector<8x512xf32> to vector<8x128xf32>
    %cst_97 = arith.constant 2.000000e+00 : f32
    %256 = vector.broadcast %cst_97 : f32 to vector<8x128xf32>
    %257 = arith.mulf %256, %255 : vector<8x128xf32>
    %cst_98 = arith.constant 1.000000e+00 : f32
    %258 = vector.broadcast %cst_98 : f32 to vector<8x128xf32>
    %259 = arith.subf %257, %258 : vector<8x128xf32>
    %260 = vector.extract_strided_slice %252 {offsets = [0, 384], sizes = [8, 128], strides = [1, 1]} : vector<8x512xf32> to vector<8x128xf32>
    %261 = arith.mulf %254, %240 : vector<8x128xf32>
    %262 = arith.mulf %253, %259 : vector<8x128xf32>
    %263 = arith.addf %261, %262 : vector<8x128xf32>
    %264 = math.tanh %263 : vector<8x128xf32>
    %265 = arith.mulf %260, %264 : vector<8x128xf32>
    %c88 = arith.constant 88 : index
    %c0_99 = arith.constant 0 : index
    %266 = vector.load %arg7[%c88, %c0_99] : memref<160x512xf32, #tpu.memory_space<vmem>>, vector<8x512xf32>
    %c0_100 = arith.constant 0 : index
    %c0_101 = arith.constant 0 : index
    %267 = vector.load %arg3[%c0_100, %c0_101] : memref<128x512xf32, #tpu.memory_space<vmem>>, vector<128x512xf32>
    %cst_102 = arith.constant dense<0.000000e+00> : vector<8x512xf32>
    %268 = tpu.matmul %265, %267, %cst_102 {dimension_numbers = #tpu.dot_dimension_numbers<[1], [0], [0], [1], [0, 0, 1, 1], [], []>} : vector<8x128xf32>, vector<128x512xf32>, vector<8x512xf32> -> vector<8x512xf32>
    %269 = arith.addf %266, %268 : vector<8x512xf32>
    %cst_103 = arith.constant 0.000000e+00 : f32
    %270 = vector.broadcast %cst_103 : f32 to vector<8x512xf32>
    %271 = arith.subf %270, %269 : vector<8x512xf32>
    %272 = math.exp %271 : vector<8x512xf32>
    %cst_104 = arith.constant 1.000000e+00 : f32
    %273 = vector.broadcast %cst_104 : f32 to vector<8x512xf32>
    %274 = arith.addf %273, %272 : vector<8x512xf32>
    %275 = tpu.reciprocal %274 : vector<8x512xf32> -> vector<8x512xf32>
    %276 = vector.extract_strided_slice %275 {offsets = [0, 0], sizes = [8, 128], strides = [1, 1]} : vector<8x512xf32> to vector<8x128xf32>
    %277 = vector.extract_strided_slice %275 {offsets = [0, 128], sizes = [8, 128], strides = [1, 1]} : vector<8x512xf32> to vector<8x128xf32>
    %278 = vector.extract_strided_slice %275 {offsets = [0, 256], sizes = [8, 128], strides = [1, 1]} : vector<8x512xf32> to vector<8x128xf32>
    %cst_105 = arith.constant 2.000000e+00 : f32
    %279 = vector.broadcast %cst_105 : f32 to vector<8x128xf32>
    %280 = arith.mulf %279, %278 : vector<8x128xf32>
    %cst_106 = arith.constant 1.000000e+00 : f32
    %281 = vector.broadcast %cst_106 : f32 to vector<8x128xf32>
    %282 = arith.subf %280, %281 : vector<8x128xf32>
    %283 = vector.extract_strided_slice %275 {offsets = [0, 384], sizes = [8, 128], strides = [1, 1]} : vector<8x512xf32> to vector<8x128xf32>
    %284 = arith.mulf %277, %263 : vector<8x128xf32>
    %285 = arith.mulf %276, %282 : vector<8x128xf32>
    %286 = arith.addf %284, %285 : vector<8x128xf32>
    %287 = math.tanh %286 : vector<8x128xf32>
    %288 = arith.mulf %283, %287 : vector<8x128xf32>
    %c96 = arith.constant 96 : index
    %c0_107 = arith.constant 0 : index
    %289 = vector.load %arg7[%c96, %c0_107] : memref<160x512xf32, #tpu.memory_space<vmem>>, vector<8x512xf32>
    %c0_108 = arith.constant 0 : index
    %c0_109 = arith.constant 0 : index
    %290 = vector.load %arg3[%c0_108, %c0_109] : memref<128x512xf32, #tpu.memory_space<vmem>>, vector<128x512xf32>
    %cst_110 = arith.constant dense<0.000000e+00> : vector<8x512xf32>
    %291 = tpu.matmul %288, %290, %cst_110 {dimension_numbers = #tpu.dot_dimension_numbers<[1], [0], [0], [1], [0, 0, 1, 1], [], []>} : vector<8x128xf32>, vector<128x512xf32>, vector<8x512xf32> -> vector<8x512xf32>
    %292 = arith.addf %289, %291 : vector<8x512xf32>
    %cst_111 = arith.constant 0.000000e+00 : f32
    %293 = vector.broadcast %cst_111 : f32 to vector<8x512xf32>
    %294 = arith.subf %293, %292 : vector<8x512xf32>
    %295 = math.exp %294 : vector<8x512xf32>
    %cst_112 = arith.constant 1.000000e+00 : f32
    %296 = vector.broadcast %cst_112 : f32 to vector<8x512xf32>
    %297 = arith.addf %296, %295 : vector<8x512xf32>
    %298 = tpu.reciprocal %297 : vector<8x512xf32> -> vector<8x512xf32>
    %299 = vector.extract_strided_slice %298 {offsets = [0, 0], sizes = [8, 128], strides = [1, 1]} : vector<8x512xf32> to vector<8x128xf32>
    %300 = vector.extract_strided_slice %298 {offsets = [0, 128], sizes = [8, 128], strides = [1, 1]} : vector<8x512xf32> to vector<8x128xf32>
    %301 = vector.extract_strided_slice %298 {offsets = [0, 256], sizes = [8, 128], strides = [1, 1]} : vector<8x512xf32> to vector<8x128xf32>
    %cst_113 = arith.constant 2.000000e+00 : f32
    %302 = vector.broadcast %cst_113 : f32 to vector<8x128xf32>
    %303 = arith.mulf %302, %301 : vector<8x128xf32>
    %cst_114 = arith.constant 1.000000e+00 : f32
    %304 = vector.broadcast %cst_114 : f32 to vector<8x128xf32>
    %305 = arith.subf %303, %304 : vector<8x128xf32>
    %306 = vector.extract_strided_slice %298 {offsets = [0, 384], sizes = [8, 128], strides = [1, 1]} : vector<8x512xf32> to vector<8x128xf32>
    %307 = arith.mulf %300, %286 : vector<8x128xf32>
    %308 = arith.mulf %299, %305 : vector<8x128xf32>
    %309 = arith.addf %307, %308 : vector<8x128xf32>
    %310 = math.tanh %309 : vector<8x128xf32>
    %311 = arith.mulf %306, %310 : vector<8x128xf32>
    %c104 = arith.constant 104 : index
    %c0_115 = arith.constant 0 : index
    %312 = vector.load %arg7[%c104, %c0_115] : memref<160x512xf32, #tpu.memory_space<vmem>>, vector<8x512xf32>
    %c0_116 = arith.constant 0 : index
    %c0_117 = arith.constant 0 : index
    %313 = vector.load %arg3[%c0_116, %c0_117] : memref<128x512xf32, #tpu.memory_space<vmem>>, vector<128x512xf32>
    %cst_118 = arith.constant dense<0.000000e+00> : vector<8x512xf32>
    %314 = tpu.matmul %311, %313, %cst_118 {dimension_numbers = #tpu.dot_dimension_numbers<[1], [0], [0], [1], [0, 0, 1, 1], [], []>} : vector<8x128xf32>, vector<128x512xf32>, vector<8x512xf32> -> vector<8x512xf32>
    %315 = arith.addf %312, %314 : vector<8x512xf32>
    %cst_119 = arith.constant 0.000000e+00 : f32
    %316 = vector.broadcast %cst_119 : f32 to vector<8x512xf32>
    %317 = arith.subf %316, %315 : vector<8x512xf32>
    %318 = math.exp %317 : vector<8x512xf32>
    %cst_120 = arith.constant 1.000000e+00 : f32
    %319 = vector.broadcast %cst_120 : f32 to vector<8x512xf32>
    %320 = arith.addf %319, %318 : vector<8x512xf32>
    %321 = tpu.reciprocal %320 : vector<8x512xf32> -> vector<8x512xf32>
    %322 = vector.extract_strided_slice %321 {offsets = [0, 0], sizes = [8, 128], strides = [1, 1]} : vector<8x512xf32> to vector<8x128xf32>
    %323 = vector.extract_strided_slice %321 {offsets = [0, 128], sizes = [8, 128], strides = [1, 1]} : vector<8x512xf32> to vector<8x128xf32>
    %324 = vector.extract_strided_slice %321 {offsets = [0, 256], sizes = [8, 128], strides = [1, 1]} : vector<8x512xf32> to vector<8x128xf32>
    %cst_121 = arith.constant 2.000000e+00 : f32
    %325 = vector.broadcast %cst_121 : f32 to vector<8x128xf32>
    %326 = arith.mulf %325, %324 : vector<8x128xf32>
    %cst_122 = arith.constant 1.000000e+00 : f32
    %327 = vector.broadcast %cst_122 : f32 to vector<8x128xf32>
    %328 = arith.subf %326, %327 : vector<8x128xf32>
    %329 = vector.extract_strided_slice %321 {offsets = [0, 384], sizes = [8, 128], strides = [1, 1]} : vector<8x512xf32> to vector<8x128xf32>
    %330 = arith.mulf %323, %309 : vector<8x128xf32>
    %331 = arith.mulf %322, %328 : vector<8x128xf32>
    %332 = arith.addf %330, %331 : vector<8x128xf32>
    %333 = math.tanh %332 : vector<8x128xf32>
    %334 = arith.mulf %329, %333 : vector<8x128xf32>
    %c112 = arith.constant 112 : index
    %c0_123 = arith.constant 0 : index
    %335 = vector.load %arg7[%c112, %c0_123] : memref<160x512xf32, #tpu.memory_space<vmem>>, vector<8x512xf32>
    %c0_124 = arith.constant 0 : index
    %c0_125 = arith.constant 0 : index
    %336 = vector.load %arg3[%c0_124, %c0_125] : memref<128x512xf32, #tpu.memory_space<vmem>>, vector<128x512xf32>
    %cst_126 = arith.constant dense<0.000000e+00> : vector<8x512xf32>
    %337 = tpu.matmul %334, %336, %cst_126 {dimension_numbers = #tpu.dot_dimension_numbers<[1], [0], [0], [1], [0, 0, 1, 1], [], []>} : vector<8x128xf32>, vector<128x512xf32>, vector<8x512xf32> -> vector<8x512xf32>
    %338 = arith.addf %335, %337 : vector<8x512xf32>
    %cst_127 = arith.constant 0.000000e+00 : f32
    %339 = vector.broadcast %cst_127 : f32 to vector<8x512xf32>
    %340 = arith.subf %339, %338 : vector<8x512xf32>
    %341 = math.exp %340 : vector<8x512xf32>
    %cst_128 = arith.constant 1.000000e+00 : f32
    %342 = vector.broadcast %cst_128 : f32 to vector<8x512xf32>
    %343 = arith.addf %342, %341 : vector<8x512xf32>
    %344 = tpu.reciprocal %343 : vector<8x512xf32> -> vector<8x512xf32>
    %345 = vector.extract_strided_slice %344 {offsets = [0, 0], sizes = [8, 128], strides = [1, 1]} : vector<8x512xf32> to vector<8x128xf32>
    %346 = vector.extract_strided_slice %344 {offsets = [0, 128], sizes = [8, 128], strides = [1, 1]} : vector<8x512xf32> to vector<8x128xf32>
    %347 = vector.extract_strided_slice %344 {offsets = [0, 256], sizes = [8, 128], strides = [1, 1]} : vector<8x512xf32> to vector<8x128xf32>
    %cst_129 = arith.constant 2.000000e+00 : f32
    %348 = vector.broadcast %cst_129 : f32 to vector<8x128xf32>
    %349 = arith.mulf %348, %347 : vector<8x128xf32>
    %cst_130 = arith.constant 1.000000e+00 : f32
    %350 = vector.broadcast %cst_130 : f32 to vector<8x128xf32>
    %351 = arith.subf %349, %350 : vector<8x128xf32>
    %352 = vector.extract_strided_slice %344 {offsets = [0, 384], sizes = [8, 128], strides = [1, 1]} : vector<8x512xf32> to vector<8x128xf32>
    %353 = arith.mulf %346, %332 : vector<8x128xf32>
    %354 = arith.mulf %345, %351 : vector<8x128xf32>
    %355 = arith.addf %353, %354 : vector<8x128xf32>
    %356 = math.tanh %355 : vector<8x128xf32>
    %357 = arith.mulf %352, %356 : vector<8x128xf32>
    %c120 = arith.constant 120 : index
    %c0_131 = arith.constant 0 : index
    %358 = vector.load %arg7[%c120, %c0_131] : memref<160x512xf32, #tpu.memory_space<vmem>>, vector<8x512xf32>
    %c0_132 = arith.constant 0 : index
    %c0_133 = arith.constant 0 : index
    %359 = vector.load %arg3[%c0_132, %c0_133] : memref<128x512xf32, #tpu.memory_space<vmem>>, vector<128x512xf32>
    %cst_134 = arith.constant dense<0.000000e+00> : vector<8x512xf32>
    %360 = tpu.matmul %357, %359, %cst_134 {dimension_numbers = #tpu.dot_dimension_numbers<[1], [0], [0], [1], [0, 0, 1, 1], [], []>} : vector<8x128xf32>, vector<128x512xf32>, vector<8x512xf32> -> vector<8x512xf32>
    %361 = arith.addf %358, %360 : vector<8x512xf32>
    %cst_135 = arith.constant 0.000000e+00 : f32
    %362 = vector.broadcast %cst_135 : f32 to vector<8x512xf32>
    %363 = arith.subf %362, %361 : vector<8x512xf32>
    %364 = math.exp %363 : vector<8x512xf32>
    %cst_136 = arith.constant 1.000000e+00 : f32
    %365 = vector.broadcast %cst_136 : f32 to vector<8x512xf32>
    %366 = arith.addf %365, %364 : vector<8x512xf32>
    %367 = tpu.reciprocal %366 : vector<8x512xf32> -> vector<8x512xf32>
    %368 = vector.extract_strided_slice %367 {offsets = [0, 0], sizes = [8, 128], strides = [1, 1]} : vector<8x512xf32> to vector<8x128xf32>
    %369 = vector.extract_strided_slice %367 {offsets = [0, 128], sizes = [8, 128], strides = [1, 1]} : vector<8x512xf32> to vector<8x128xf32>
    %370 = vector.extract_strided_slice %367 {offsets = [0, 256], sizes = [8, 128], strides = [1, 1]} : vector<8x512xf32> to vector<8x128xf32>
    %cst_137 = arith.constant 2.000000e+00 : f32
    %371 = vector.broadcast %cst_137 : f32 to vector<8x128xf32>
    %372 = arith.mulf %371, %370 : vector<8x128xf32>
    %cst_138 = arith.constant 1.000000e+00 : f32
    %373 = vector.broadcast %cst_138 : f32 to vector<8x128xf32>
    %374 = arith.subf %372, %373 : vector<8x128xf32>
    %375 = vector.extract_strided_slice %367 {offsets = [0, 384], sizes = [8, 128], strides = [1, 1]} : vector<8x512xf32> to vector<8x128xf32>
    %376 = arith.mulf %369, %355 : vector<8x128xf32>
    %377 = arith.mulf %368, %374 : vector<8x128xf32>
    %378 = arith.addf %376, %377 : vector<8x128xf32>
    %379 = math.tanh %378 : vector<8x128xf32>
    %380 = arith.mulf %375, %379 : vector<8x128xf32>
    %c128 = arith.constant 128 : index
    %c0_139 = arith.constant 0 : index
    %381 = vector.load %arg7[%c128, %c0_139] : memref<160x512xf32, #tpu.memory_space<vmem>>, vector<8x512xf32>
    %c0_140 = arith.constant 0 : index
    %c0_141 = arith.constant 0 : index
    %382 = vector.load %arg3[%c0_140, %c0_141] : memref<128x512xf32, #tpu.memory_space<vmem>>, vector<128x512xf32>
    %cst_142 = arith.constant dense<0.000000e+00> : vector<8x512xf32>
    %383 = tpu.matmul %380, %382, %cst_142 {dimension_numbers = #tpu.dot_dimension_numbers<[1], [0], [0], [1], [0, 0, 1, 1], [], []>} : vector<8x128xf32>, vector<128x512xf32>, vector<8x512xf32> -> vector<8x512xf32>
    %384 = arith.addf %381, %383 : vector<8x512xf32>
    %cst_143 = arith.constant 0.000000e+00 : f32
    %385 = vector.broadcast %cst_143 : f32 to vector<8x512xf32>
    %386 = arith.subf %385, %384 : vector<8x512xf32>
    %387 = math.exp %386 : vector<8x512xf32>
    %cst_144 = arith.constant 1.000000e+00 : f32
    %388 = vector.broadcast %cst_144 : f32 to vector<8x512xf32>
    %389 = arith.addf %388, %387 : vector<8x512xf32>
    %390 = tpu.reciprocal %389 : vector<8x512xf32> -> vector<8x512xf32>
    %391 = vector.extract_strided_slice %390 {offsets = [0, 0], sizes = [8, 128], strides = [1, 1]} : vector<8x512xf32> to vector<8x128xf32>
    %392 = vector.extract_strided_slice %390 {offsets = [0, 128], sizes = [8, 128], strides = [1, 1]} : vector<8x512xf32> to vector<8x128xf32>
    %393 = vector.extract_strided_slice %390 {offsets = [0, 256], sizes = [8, 128], strides = [1, 1]} : vector<8x512xf32> to vector<8x128xf32>
    %cst_145 = arith.constant 2.000000e+00 : f32
    %394 = vector.broadcast %cst_145 : f32 to vector<8x128xf32>
    %395 = arith.mulf %394, %393 : vector<8x128xf32>
    %cst_146 = arith.constant 1.000000e+00 : f32
    %396 = vector.broadcast %cst_146 : f32 to vector<8x128xf32>
    %397 = arith.subf %395, %396 : vector<8x128xf32>
    %398 = vector.extract_strided_slice %390 {offsets = [0, 384], sizes = [8, 128], strides = [1, 1]} : vector<8x512xf32> to vector<8x128xf32>
    %399 = arith.mulf %392, %378 : vector<8x128xf32>
    %400 = arith.mulf %391, %397 : vector<8x128xf32>
    %401 = arith.addf %399, %400 : vector<8x128xf32>
    %402 = math.tanh %401 : vector<8x128xf32>
    %403 = arith.mulf %398, %402 : vector<8x128xf32>
    %c136 = arith.constant 136 : index
    %c0_147 = arith.constant 0 : index
    %404 = vector.load %arg7[%c136, %c0_147] : memref<160x512xf32, #tpu.memory_space<vmem>>, vector<8x512xf32>
    %c0_148 = arith.constant 0 : index
    %c0_149 = arith.constant 0 : index
    %405 = vector.load %arg3[%c0_148, %c0_149] : memref<128x512xf32, #tpu.memory_space<vmem>>, vector<128x512xf32>
    %cst_150 = arith.constant dense<0.000000e+00> : vector<8x512xf32>
    %406 = tpu.matmul %403, %405, %cst_150 {dimension_numbers = #tpu.dot_dimension_numbers<[1], [0], [0], [1], [0, 0, 1, 1], [], []>} : vector<8x128xf32>, vector<128x512xf32>, vector<8x512xf32> -> vector<8x512xf32>
    %407 = arith.addf %404, %406 : vector<8x512xf32>
    %cst_151 = arith.constant 0.000000e+00 : f32
    %408 = vector.broadcast %cst_151 : f32 to vector<8x512xf32>
    %409 = arith.subf %408, %407 : vector<8x512xf32>
    %410 = math.exp %409 : vector<8x512xf32>
    %cst_152 = arith.constant 1.000000e+00 : f32
    %411 = vector.broadcast %cst_152 : f32 to vector<8x512xf32>
    %412 = arith.addf %411, %410 : vector<8x512xf32>
    %413 = tpu.reciprocal %412 : vector<8x512xf32> -> vector<8x512xf32>
    %414 = vector.extract_strided_slice %413 {offsets = [0, 0], sizes = [8, 128], strides = [1, 1]} : vector<8x512xf32> to vector<8x128xf32>
    %415 = vector.extract_strided_slice %413 {offsets = [0, 128], sizes = [8, 128], strides = [1, 1]} : vector<8x512xf32> to vector<8x128xf32>
    %416 = vector.extract_strided_slice %413 {offsets = [0, 256], sizes = [8, 128], strides = [1, 1]} : vector<8x512xf32> to vector<8x128xf32>
    %cst_153 = arith.constant 2.000000e+00 : f32
    %417 = vector.broadcast %cst_153 : f32 to vector<8x128xf32>
    %418 = arith.mulf %417, %416 : vector<8x128xf32>
    %cst_154 = arith.constant 1.000000e+00 : f32
    %419 = vector.broadcast %cst_154 : f32 to vector<8x128xf32>
    %420 = arith.subf %418, %419 : vector<8x128xf32>
    %421 = vector.extract_strided_slice %413 {offsets = [0, 384], sizes = [8, 128], strides = [1, 1]} : vector<8x512xf32> to vector<8x128xf32>
    %422 = arith.mulf %415, %401 : vector<8x128xf32>
    %423 = arith.mulf %414, %420 : vector<8x128xf32>
    %424 = arith.addf %422, %423 : vector<8x128xf32>
    %425 = math.tanh %424 : vector<8x128xf32>
    %426 = arith.mulf %421, %425 : vector<8x128xf32>
    %c144 = arith.constant 144 : index
    %c0_155 = arith.constant 0 : index
    %427 = vector.load %arg7[%c144, %c0_155] : memref<160x512xf32, #tpu.memory_space<vmem>>, vector<8x512xf32>
    %c0_156 = arith.constant 0 : index
    %c0_157 = arith.constant 0 : index
    %428 = vector.load %arg3[%c0_156, %c0_157] : memref<128x512xf32, #tpu.memory_space<vmem>>, vector<128x512xf32>
    %cst_158 = arith.constant dense<0.000000e+00> : vector<8x512xf32>
    %429 = tpu.matmul %426, %428, %cst_158 {dimension_numbers = #tpu.dot_dimension_numbers<[1], [0], [0], [1], [0, 0, 1, 1], [], []>} : vector<8x128xf32>, vector<128x512xf32>, vector<8x512xf32> -> vector<8x512xf32>
    %430 = arith.addf %427, %429 : vector<8x512xf32>
    %cst_159 = arith.constant 0.000000e+00 : f32
    %431 = vector.broadcast %cst_159 : f32 to vector<8x512xf32>
    %432 = arith.subf %431, %430 : vector<8x512xf32>
    %433 = math.exp %432 : vector<8x512xf32>
    %cst_160 = arith.constant 1.000000e+00 : f32
    %434 = vector.broadcast %cst_160 : f32 to vector<8x512xf32>
    %435 = arith.addf %434, %433 : vector<8x512xf32>
    %436 = tpu.reciprocal %435 : vector<8x512xf32> -> vector<8x512xf32>
    %437 = vector.extract_strided_slice %436 {offsets = [0, 0], sizes = [8, 128], strides = [1, 1]} : vector<8x512xf32> to vector<8x128xf32>
    %438 = vector.extract_strided_slice %436 {offsets = [0, 128], sizes = [8, 128], strides = [1, 1]} : vector<8x512xf32> to vector<8x128xf32>
    %439 = vector.extract_strided_slice %436 {offsets = [0, 256], sizes = [8, 128], strides = [1, 1]} : vector<8x512xf32> to vector<8x128xf32>
    %cst_161 = arith.constant 2.000000e+00 : f32
    %440 = vector.broadcast %cst_161 : f32 to vector<8x128xf32>
    %441 = arith.mulf %440, %439 : vector<8x128xf32>
    %cst_162 = arith.constant 1.000000e+00 : f32
    %442 = vector.broadcast %cst_162 : f32 to vector<8x128xf32>
    %443 = arith.subf %441, %442 : vector<8x128xf32>
    %444 = vector.extract_strided_slice %436 {offsets = [0, 384], sizes = [8, 128], strides = [1, 1]} : vector<8x512xf32> to vector<8x128xf32>
    %445 = arith.mulf %438, %424 : vector<8x128xf32>
    %446 = arith.mulf %437, %443 : vector<8x128xf32>
    %447 = arith.addf %445, %446 : vector<8x128xf32>
    %448 = math.tanh %447 : vector<8x128xf32>
    %449 = arith.mulf %444, %448 : vector<8x128xf32>
    %c152 = arith.constant 152 : index
    %c0_163 = arith.constant 0 : index
    %450 = vector.load %arg7[%c152, %c0_163] : memref<160x512xf32, #tpu.memory_space<vmem>>, vector<8x512xf32>
    %c0_164 = arith.constant 0 : index
    %c0_165 = arith.constant 0 : index
    %451 = vector.load %arg3[%c0_164, %c0_165] : memref<128x512xf32, #tpu.memory_space<vmem>>, vector<128x512xf32>
    %cst_166 = arith.constant dense<0.000000e+00> : vector<8x512xf32>
    %452 = tpu.matmul %449, %451, %cst_166 {dimension_numbers = #tpu.dot_dimension_numbers<[1], [0], [0], [1], [0, 0, 1, 1], [], []>} : vector<8x128xf32>, vector<128x512xf32>, vector<8x512xf32> -> vector<8x512xf32>
    %453 = arith.addf %450, %452 : vector<8x512xf32>
    %cst_167 = arith.constant 0.000000e+00 : f32
    %454 = vector.broadcast %cst_167 : f32 to vector<8x512xf32>
    %455 = arith.subf %454, %453 : vector<8x512xf32>
    %456 = math.exp %455 : vector<8x512xf32>
    %cst_168 = arith.constant 1.000000e+00 : f32
    %457 = vector.broadcast %cst_168 : f32 to vector<8x512xf32>
    %458 = arith.addf %457, %456 : vector<8x512xf32>
    %459 = tpu.reciprocal %458 : vector<8x512xf32> -> vector<8x512xf32>
    %460 = vector.extract_strided_slice %459 {offsets = [0, 0], sizes = [8, 128], strides = [1, 1]} : vector<8x512xf32> to vector<8x128xf32>
    %461 = vector.extract_strided_slice %459 {offsets = [0, 128], sizes = [8, 128], strides = [1, 1]} : vector<8x512xf32> to vector<8x128xf32>
    %462 = vector.extract_strided_slice %459 {offsets = [0, 256], sizes = [8, 128], strides = [1, 1]} : vector<8x512xf32> to vector<8x128xf32>
    %cst_169 = arith.constant 2.000000e+00 : f32
    %463 = vector.broadcast %cst_169 : f32 to vector<8x128xf32>
    %464 = arith.mulf %463, %462 : vector<8x128xf32>
    %cst_170 = arith.constant 1.000000e+00 : f32
    %465 = vector.broadcast %cst_170 : f32 to vector<8x128xf32>
    %466 = arith.subf %464, %465 : vector<8x128xf32>
    %467 = vector.extract_strided_slice %459 {offsets = [0, 384], sizes = [8, 128], strides = [1, 1]} : vector<8x512xf32> to vector<8x128xf32>
    %468 = arith.mulf %461, %447 : vector<8x128xf32>
    %469 = arith.mulf %460, %466 : vector<8x128xf32>
    %470 = arith.addf %468, %469 : vector<8x128xf32>
    %471 = math.tanh %470 : vector<8x128xf32>
    %472 = arith.mulf %467, %471 : vector<8x128xf32>
    %c0_171 = arith.constant 0 : index
    %c0_172 = arith.constant 0 : index
    %473 = vector.load %arg4[%c0_171, %c0_172] : memref<128x256xf32, #tpu.memory_space<vmem>>, vector<128x256xf32>
    %cst_173 = arith.constant dense<0.000000e+00> : vector<8x256xf32>
    %474 = tpu.matmul %472, %473, %cst_173 {dimension_numbers = #tpu.dot_dimension_numbers<[1], [0], [0], [1], [0, 0, 1, 1], [], []>} : vector<8x128xf32>, vector<128x256xf32>, vector<8x256xf32> -> vector<8x256xf32>
    %c0_174 = arith.constant 0 : index
    %c0_175 = arith.constant 0 : index
    %475 = vector.load %arg5[%c0_174, %c0_175] : memref<1x256xf32, #tpu.memory_space<vmem>>, vector<1x256xf32>
    %476 = vector.broadcast %475 : vector<1x256xf32> to vector<8x256xf32>
    %477 = arith.addf %474, %476 : vector<8x256xf32>
    %c0_176 = arith.constant 0 : index
    %c0_177 = arith.constant 0 : index
    %478 = vector.load %arg6[%c0_176, %c0_177] : memref<8x256xf32, #tpu.memory_space<vmem>>, vector<8x256xf32>
    tpu.vector_store %arg6[%c0_176, %c0_177], %477 {strides = array<i32>} : memref<8x256xf32, #tpu.memory_space<vmem>>, vector<8x256xf32>,
    return
  }
  func.func @transform_0(%arg0: i32) -> (i32, i32, i32) {
    %c0_i32 = arith.constant 0 : i32
    %c0_i32_0 = arith.constant 0 : i32
    %c0_i32_1 = arith.constant 0 : i32
    return %arg0, %c0_i32, %c0_i32_0 : i32, i32, i32
  }
  func.func @transform_1(%arg0: i32) -> (i32, i32) {
    %c0_i32 = arith.constant 0 : i32
    %c0_i32_0 = arith.constant 0 : i32
    %c0_i32_1 = arith.constant 0 : i32
    return %c0_i32, %c0_i32_0 : i32, i32
  }
  func.func @transform_2(%arg0: i32) -> (i32, i32) {
    %c0_i32 = arith.constant 0 : i32
    %c0_i32_0 = arith.constant 0 : i32
    %c0_i32_1 = arith.constant 0 : i32
    return %c0_i32, %c0_i32_0 : i32, i32
  }
  func.func @transform_3(%arg0: i32) -> (i32, i32) {
    %c0_i32 = arith.constant 0 : i32
    %c0_i32_0 = arith.constant 0 : i32
    %c0_i32_1 = arith.constant 0 : i32
    return %c0_i32, %c0_i32_0 : i32, i32
  }
  func.func @transform_4(%arg0: i32) -> (i32, i32) {
    %c0_i32 = arith.constant 0 : i32
    %c0_i32_0 = arith.constant 0 : i32
    %c0_i32_1 = arith.constant 0 : i32
    return %c0_i32, %c0_i32_0 : i32, i32
  }
  func.func @transform_5(%arg0: i32) -> (i32, i32) {
    %c0_i32 = arith.constant 0 : i32
    %c0_i32_0 = arith.constant 0 : i32
    return %arg0, %c0_i32 : i32, i32
  }
}

</mosaic_0001>

<llo_original>
// kernel: run_policy_kernel.1
$region0: #{run_policy_kernel.1}
  #allocation0 [shape = 'u32[]', space=smem, size = 0x4, offset = 0x4, fixed_abs, tag = 'smem constant byte address 0x4 - core index']
  #allocation1 [shape = 'u32[144,128]{1,0:T(1,128)}', space=vmem, size = 0x12000, scoped, tag = 'internal scratch']
  #allocation2 [shape = 'f32[160,512]{1,0:T(8,128)}', space=vmem, size = 0x50000, scoped, tag = 'scratch operand']
  %s0 = inlined_call_operand.vmem [shape: s32[2,160,1], index: 0, kind: input, shape index: {}]
  %s1 = inlined_call_operand.vmem [shape: f32[100,512], index: 1, kind: input, shape index: {}]
  %s2 = inlined_call_operand.hbm [shape: f32[128,512], index: 2, kind: input, shape index: {}]
  %s3 = inlined_call_operand.hbm [shape: f32[128,256], index: 3, kind: input, shape index: {}]
  %s4 = inlined_call_operand.vmem [shape: f32[1,256], index: 4, kind: input, shape index: {}]
  %s5 = inlined_call_operand.hbm [shape: f32[16,256], index: 5, kind: output, shape index: {}]
  %s6 = sld [smem:[#allocation0]]
  $region61: #{run_policy_kernel.1} parent=0
    _
  %s8 = ssub.s32 1, %s6
  %s9 = scalar_select 0, %s8, %s6
  $region1: #{run_policy_kernel.1} parent=0
    #allocation3 [shape = 'u8[262144]{0}', space=vmem, size = 0x40000, scoped, tag = 'input window, operand 2, single buffered']
    #allocation4 [shape = 's32[2]{0}', space=sflag, size = 0x8, scoped, tag = 'scoped memory for run_policy_kernel.1']
    #allocation5 [shape = 's32[2]{0}', space=sflag, size = 0x8, scoped, tag = 'scoped memory for run_policy_kernel.1']
    #allocation6 [shape = 'u8[131072]{0}', space=vmem, size = 0x20000, scoped, tag = 'input window, operand 3, single buffered']
    #allocation7 [shape = 's32[1]{0}', space=sflag, size = 0x4, scoped, tag = 'scoped memory for run_policy_kernel.1']
    #allocation8 [shape = 'u8[16384]{0}', space=vmem, size = 0x4000, scoped, tag = 'output window, operand 0']
    %10 = vsyncpa [#allocation4], 0
    %11 = vsyncpa [#allocation7], 0
    %12 = vsyncpa [#allocation5], 0
    %s13 = scalar_lea.sflag [#allocation5], 1
    %14 = vsyncpa %s13, 0
    loop: start=0, step=1, limit=4
    $region2: #{run_policy_kernel.1} parent=1 // loop_pre_header
      _
    $region3: #{run_policy_kernel.1} parent=1 // loop_header
      %s16 = sphi 0, %s20
      %p17 = scmp.ge.s32.totalorder %s16, 4
      %s26 = sphi 0, %s28
      %s29 = sphi 0, %s26
      %s30 = sphi 0, %s29
      %s46 = sphi 0, %s30
      %s50 = sphi 0, %s50
      %s52 = sphi 0, %s50
      %s53 = sphi 0, %s52
      %s67 = sphi 0, %s53
      %s71 = sphi 0, %s71
      %s73 = sphi 0, %s71
      %s74 = sphi 0, %s73
      %s88 = sphi 0, %s74
      %s92 = sphi 0, %s92
      %s94 = sphi 0, %s92
      %s95 = sphi 0, %s94
      %s109 = sphi 0, %s95
      %s113 = sphi 0, %s113
      %s115 = sphi 0, %s113
      %s116 = sphi 0, %s115
      %s130 = sphi 0, %s116
      %s136 = sphi 0, %s138
      %s139 = sphi 0, %s136
      %s140 = sphi 0, %s139
      %s156 = sphi 0, %s140
    $region4: #{run_policy_kernel.1} parent=1 // loop_header_branch
      %19 = sbr.rel (%p17) target = $region8
    $region5: #{run_policy_kernel.1} parent=1 // loop_body
      %s21 = ssub.s32 %s16, 1
      %s22 = ssub.s32 %s16, 2
      %s23 = sadd.s32 %s16, 1
      %s24 = ssub.s32 %s16, %s23
      %p25 = scmp.eq.s32.totalorder %s24, 0
      %s27 = sadd.s32 %s26, 1
      %s28 = scalar_select %p25, %s26, %s27
      %p31 = pneg %p25
      %p32 = scmp.eq.s32.totalorder %s16, 1
      %p33 = por %p31, %p32
      %p34 = scmp.ne.s32.totalorder %s26, %s29
      %p35 = scmp.eq.s32.totalorder %s16, 0
      %p36 = por %p34, %p35
      %p37 = scmp.ne.s32.totalorder %s26, %s29
      %p38 = scmp.eq.s32.totalorder %s21, 1
      %p39 = por %p37, %p38
      %p40 = scmp.ne.s32.totalorder %s29, %s30
      %p41 = scmp.eq.s32.totalorder %s21, 0
      %p42 = por %p40, %p41
      %p43 = scmp.ne.s32.totalorder %s29, %s30
      %p44 = scmp.eq.s32.totalorder %s22, 1
      %p45 = por %p43, %p44
      %p47 = scmp.ne.s32.totalorder %s30, %s46
      %p48 = scmp.eq.s32.totalorder %s22, 0
      %p49 = por %p47, %p48
      %s51 = sadd.s32 %s50, 1
      %p54 = scmp.eq.s32.totalorder %s16, 1
      %p55 = scmp.ne.s32.totalorder %s50, %s52
      %p56 = scmp.eq.s32.totalorder %s16, 0
      %p57 = por %p55, %p56
      %p58 = scmp.ne.s32.totalorder %s50, %s52
      %p59 = scmp.eq.s32.totalorder %s21, 1
      %p60 = por %p58, %p59
      %p61 = scmp.ne.s32.totalorder %s52, %s53
      %p62 = scmp.eq.s32.totalorder %s21, 0
      %p63 = por %p61, %p62
      %p64 = scmp.ne.s32.totalorder %s52, %s53
      %p65 = scmp.eq.s32.totalorder %s22, 1
      %p66 = por %p64, %p65
      %p68 = scmp.ne.s32.totalorder %s53, %s67
      %p69 = scmp.eq.s32.totalorder %s22, 0
      %p70 = por %p68, %p69
      %s72 = sadd.s32 %s71, 1
      %p75 = scmp.eq.s32.totalorder %s16, 1
      %p76 = scmp.ne.s32.totalorder %s71, %s73
      %p77 = scmp.eq.s32.totalorder %s16, 0
      %p78 = por %p76, %p77
      %p79 = scmp.ne.s32.totalorder %s71, %s73
      %p80 = scmp.eq.s32.totalorder %s21, 1
      %p81 = por %p79, %p80
      %p82 = scmp.ne.s32.totalorder %s73, %s74
      %p83 = scmp.eq.s32.totalorder %s21, 0
      %p84 = por %p82, %p83
      %p85 = scmp.ne.s32.totalorder %s73, %s74
      %p86 = scmp.eq.s32.totalorder %s22, 1
      %p87 = por %p85, %p86
      %p89 = scmp.ne.s32.totalorder %s74, %s88
      %p90 = scmp.eq.s32.totalorder %s22, 0
      %p91 = por %p89, %p90
      %s93 = sadd.s32 %s92, 1
      %p96 = scmp.eq.s32.totalorder %s16, 1
      %p97 = scmp.ne.s32.totalorder %s92, %s94
      %p98 = scmp.eq.s32.totalorder %s16, 0
      %p99 = por %p97, %p98
      %p100 = scmp.ne.s32.totalorder %s92, %s94
      %p101 = scmp.eq.s32.totalorder %s21, 1
      %p102 = por %p100, %p101
      %p103 = scmp.ne.s32.totalorder %s94, %s95
      %p104 = scmp.eq.s32.totalorder %s21, 0
      %p105 = por %p103, %p104
      %p106 = scmp.ne.s32.totalorder %s94, %s95
      %p107 = scmp.eq.s32.totalorder %s22, 1
      %p108 = por %p106, %p107
      %p110 = scmp.ne.s32.totalorder %s95, %s109
      %p111 = scmp.eq.s32.totalorder %s22, 0
      %p112 = por %p110, %p111
      %s114 = sadd.s32 %s113, 1
      %p117 = scmp.eq.s32.totalorder %s16, 1
      %p118 = scmp.ne.s32.totalorder %s113, %s115
      %p119 = scmp.eq.s32.totalorder %s16, 0
      %p120 = por %p118, %p119
      %p121 = scmp.ne.s32.totalorder %s113, %s115
      %p122 = scmp.eq.s32.totalorder %s21, 1
      %p123 = por %p121, %p122
      %p124 = scmp.ne.s32.totalorder %s115, %s116
      %p125 = scmp.eq.s32.totalorder %s21, 0
      %p126 = por %p124, %p125
      %p127 = scmp.ne.s32.totalorder %s115, %s116
      %p128 = scmp.eq.s32.totalorder %s22, 1
      %p129 = por %p127, %p128
      %p131 = scmp.ne.s32.totalorder %s116, %s130
      %p132 = scmp.eq.s32.totalorder %s22, 0
      %p133 = por %p131, %p132
      %s134 = ssub.s32 %s16, %s23
      %p135 = scmp.eq.s32.totalorder %s134, 0
      %s137 = sadd.s32 %s136, 1
      %s138 = scalar_select %p135, %s136, %s137
      %p141 = pneg %p135
      %p142 = scmp.eq.s32.totalorder %s16, 1
      %p143 = por %p141, %p142
      %p144 = scmp.ne.s32.totalorder %s136, %s139
      %p145 = scmp.eq.s32.totalorder %s16, 0
      %p146 = por %p144, %p145
      %p147 = scmp.ne.s32.totalorder %s136, %s139
      %p148 = scmp.eq.s32.totalorder %s21, 1
      %p149 = por %p147, %p148
      %p150 = scmp.ne.s32.totalorder %s139, %s140
      %p151 = scmp.eq.s32.totalorder %s21, 0
      %p152 = por %p150, %p151
      %p153 = scmp.ne.s32.totalorder %s139, %s140
      %p154 = scmp.eq.s32.totalorder %s22, 1
      %p155 = por %p153, %p154
      %p157 = scmp.ne.s32.totalorder %s140, %s156
      %p158 = scmp.eq.s32.totalorder %s22, 0
      %p159 = por %p157, %p158
      %p160 = scmp.le.s32.totalorder 1, %s16
      %p161 = scmp.lt.s32.totalorder %s16, 3
      %p162 = pnand %p160, %p161
      %p163 = pneg %p162
      // Predicated region
      $region9: #{run_policy_kernel.1} parent=5 // pred_check
        _
      $region10: #{run_policy_kernel.1} parent=5 // pred_check_branch
        %165 = sbr.rel (%p162) target = $region12
      $region11: #{run_policy_kernel.1} parent=5 // pred_region
        %s166 = ssub.s32 %s16, 1
        // Predicated region
        $region13: #{run_policy_kernel.1} parent=11 // pred_check
          %p167 = pneg %p63
        $region14: #{run_policy_kernel.1} parent=11 // pred_check_branch
          %169 = sbr.rel (%p167) target = $region16
        $region15: #{run_policy_kernel.1} parent=11 // pred_region
          _
        $region16: #{run_policy_kernel.1} parent=11 // pred_fallthru
          _
        // Predicated region
        $region17: #{run_policy_kernel.1} parent=11 // pred_check
          %p170 = pneg %p84
        $region18: #{run_policy_kernel.1} parent=11 // pred_check_branch
          %172 = sbr.rel (%p170) target = $region20
        $region19: #{run_policy_kernel.1} parent=11 // pred_region
          %s174 = ssub.s32 8192, 8192
          %175 = vsyncadd [#allocation4], %s174
          %s176 = sshll.u32 [#allocation3], 4
          %s177 = int_to_ptr.vmem [resolvable:$true] %s176
          %182 = dma.hbm_to_vmem [thread:$0]  %s2, 8192, %s177, [#allocation4], 512, 512, 32
        $region20: #{run_policy_kernel.1} parent=11 // pred_fallthru
          _
        // Predicated region
        $region21: #{run_policy_kernel.1} parent=11 // pred_check
          %p183 = pneg %p105
        $region22: #{run_policy_kernel.1} parent=11 // pred_check_branch
          %185 = sbr.rel (%p183) target = $region24
        $region23: #{run_policy_kernel.1} parent=11 // pred_region
          %s187 = ssub.s32 4096, 4096
          %188 = vsyncadd [#allocation7], %s187
          %s189 = sshll.u32 [#allocation6], 4
          %s190 = int_to_ptr.vmem [resolvable:$true] %s189
          %195 = dma.hbm_to_vmem [thread:$0]  %s3, 4096, %s190, [#allocation7], 256, 256, 16
        $region24: #{run_policy_kernel.1} parent=11 // pred_fallthru
          _
        // Predicated region
        $region25: #{run_policy_kernel.1} parent=11 // pred_check
          %p196 = pneg %p126
        $region26: #{run_policy_kernel.1} parent=11 // pred_check_branch
          %198 = sbr.rel (%p196) target = $region28
        $region27: #{run_policy_kernel.1} parent=11 // pred_region
          _
        $region28: #{run_policy_kernel.1} parent=11 // pred_fallthru
          _
      $region12: #{run_policy_kernel.1} parent=5 // pred_fallthru
        _
      %p199 = scmp.lt.s32.totalorder %s16, 2
      // Predicated region
      $region29: #{run_policy_kernel.1} parent=5 // pred_check
        %p200 = pneg %p199
      $region30: #{run_policy_kernel.1} parent=5 // pred_check_branch
        %202 = sbr.rel (%p200) target = $region32
      $region31: #{run_policy_kernel.1} parent=5 // pred_region
        // Predicated region
        $region33: #{run_policy_kernel.1} parent=31 // pred_check
          %p203 = pneg %p36
        $region34: #{run_policy_kernel.1} parent=31 // pred_check_branch
          %205 = sbr.rel (%p203) target = $region36
        $region35: #{run_policy_kernel.1} parent=31 // pred_region
          %p206 = scmp.lt.s32.totalorder %s16, 1
          %s207 = scalar_select %p206, %s16, 1
          %s208 = smul.addr %s207, 20
          %s209 = smul.addr %s208, 8
          %s210 = scalar_lea.vmem %s0, %s209
        $region36: #{run_policy_kernel.1} parent=31 // pred_fallthru
          _
      $region32: #{run_policy_kernel.1} parent=5 // pred_fallthru
        _
      %p211 = scmp.le.s32.totalorder 1, %s16
      %p212 = scmp.lt.s32.totalorder %s16, 3
      %p213 = pnand %p211, %p212
      %p214 = pneg %p213
      // Predicated region
      $region37: #{run_policy_kernel.1} parent=5 // pred_check
        _
      $region38: #{run_policy_kernel.1} parent=5 // pred_check_branch
        %216 = sbr.rel (%p213) target = $region40
      $region39: #{run_policy_kernel.1} parent=5 // pred_region
        %s217 = ssub.s32 %s16, 1
        // Predicated region
        $region41: #{run_policy_kernel.1} parent=39 // pred_check
          %p218 = pneg %p84
        $region42: #{run_policy_kernel.1} parent=39 // pred_check_branch
          %220 = sbr.rel (%p218) target = $region44
        $region43: #{run_policy_kernel.1} parent=39 // pred_region
          %221 = dma.done [#allocation4], 8192
        $region44: #{run_policy_kernel.1} parent=39 // pred_fallthru
          _
        // Predicated region
        $region45: #{run_policy_kernel.1} parent=39 // pred_check
          %p222 = pneg %p105
        $region46: #{run_policy_kernel.1} parent=39 // pred_check_branch
          %224 = sbr.rel (%p222) target = $region48
        $region47: #{run_policy_kernel.1} parent=39 // pred_region
          %225 = dma.done [#allocation7], 4096
        $region48: #{run_policy_kernel.1} parent=39 // pred_fallthru
          _
        %p226 = scmp.lt.s32.totalorder %s21, 1
        %s227 = scalar_select %p226, %s21, 1
        %s228 = smul.addr %s227, 20
        %s229 = smul.addr %s228, 8
        %s230 = scalar_lea.vmem %s0, %s229
        %p231 = pneg %p42
        %p232 = pneg %p39
        %p233 = pneg %p63
        %p234 = pneg %p60
        %p235 = pneg %p84
        %p236 = pneg %p81
        %p237 = pneg %p105
        %p238 = pneg %p102
        %p239 = pneg %p126
        %p240 = pneg %p123
        %p241 = pneg %p152
        %p242 = pneg %p149
        %s243 = sand.u32 %s139, 1
        %s244 = scalar_lea.sflag [#allocation5], %s243
        %s245 = sand.u32 %s139, 1
        %s246 = smul.addr %s245, 16
        %s247 = scalar_lea.vmem [#allocation8], %s246
        %p248 = scmp.lt.s32.totalorder %s21, 1
        %s249 = scalar_select %p248, %s21, 1
        %s250 = smul.addr %s249, 20
        %s251 = smul.addr %s250, 8
        %s252 = scalar_lea.vmem %s0, %s251
        %v253 = vld [vmem:[%s252] sm:$0xff]
        %v254 = vld [vmem:[%s252 + $0x8] sm:$0xff]
        %v255 = vld [vmem:[%s252 + $0x10] sm:$0xff]
        %v256 = vld [vmem:[%s252 + $0x18] sm:$0xff]
        %v257 = vld [vmem:[%s252 + $0x20] sm:$0xff]
        %v258 = vld [vmem:[%s252 + $0x28] sm:$0xff]
        %v259 = vld [vmem:[%s252 + $0x30] sm:$0xff]
        %v260 = vld [vmem:[%s252 + $0x38] sm:$0xff]
        %v261 = vld [vmem:[%s252 + $0x40] sm:$0xff]
        %v262 = vld [vmem:[%s252 + $0x48] sm:$0xff]
        %v263 = vld [vmem:[%s252 + $0x50] sm:$0xff]
        %v264 = vld [vmem:[%s252 + $0x58] sm:$0xff]
        %v265 = vld [vmem:[%s252 + $0x60] sm:$0xff]
        %v266 = vld [vmem:[%s252 + $0x68] sm:$0xff]
        %v267 = vld [vmem:[%s252 + $0x70] sm:$0xff]
        %v268 = vld [vmem:[%s252 + $0x78] sm:$0xff]
        %v269 = vld [vmem:[%s252 + $0x80] sm:$0xff]
        %v270 = vld [vmem:[%s252 + $0x88] sm:$0xff]
        %v271 = vld [vmem:[%s252 + $0x90] sm:$0xff]
        %v272 = vld [vmem:[%s252 + $0x98] sm:$0xff]
        %v273 = vlaneseq
        %v274 = vand.u32 %v273, 127
        %275 = vset.pattern.permute.xlu0 0
        %276 = vperm.xlu0 %275, %v253
        %v277 = vpop.permute.xlu0 %276
        %278 = vset.pattern.permute.xlu0 0
        %279 = vperm.xlu0 %278, %v254
        %v280 = vpop.permute.xlu0 %279
        %281 = vset.pattern.permute.xlu0 0
        %282 = vperm.xlu0 %281, %v255
        %v283 = vpop.permute.xlu0 %282
        %284 = vset.pattern.permute.xlu0 0
        %285 = vperm.xlu0 %284, %v256
        %v286 = vpop.permute.xlu0 %285
        %287 = vset.pattern.permute.xlu0 0
        %288 = vperm.xlu0 %287, %v257
        %v289 = vpop.permute.xlu0 %288
        %290 = vset.pattern.permute.xlu0 0
        %291 = vperm.xlu0 %290, %v258
        %v292 = vpop.permute.xlu0 %291
        %293 = vset.pattern.permute.xlu0 0
        %294 = vperm.xlu0 %293, %v259
        %v295 = vpop.permute.xlu0 %294
        %296 = vset.pattern.permute.xlu0 0
        %297 = vperm.xlu0 %296, %v260
        %v298 = vpop.permute.xlu0 %297
        %299 = vset.pattern.permute.xlu0 0
        %300 = vperm.xlu0 %299, %v261
        %v301 = vpop.permute.xlu0 %300
        %302 = vset.pattern.permute.xlu0 0
        %303 = vperm.xlu0 %302, %v262
        %v304 = vpop.permute.xlu0 %303
        %305 = vset.pattern.permute.xlu0 0
        %306 = vperm.xlu0 %305, %v263
        %v307 = vpop.permute.xlu0 %306
        %308 = vset.pattern.permute.xlu0 0
        %309 = vperm.xlu0 %308, %v264
        %v310 = vpop.permute.xlu0 %309
        %311 = vset.pattern.permute.xlu0 0
        %312 = vperm.xlu0 %311, %v265
        %v313 = vpop.permute.xlu0 %312
        %314 = vset.pattern.permute.xlu0 0
        %315 = vperm.xlu0 %314, %v266
        %v316 = vpop.permute.xlu0 %315
        %317 = vset.pattern.permute.xlu0 0
        %318 = vperm.xlu0 %317, %v267
        %v319 = vpop.permute.xlu0 %318
        %320 = vset.pattern.permute.xlu0 0
        %321 = vperm.xlu0 %320, %v268
        %v322 = vpop.permute.xlu0 %321
        %323 = vset.pattern.permute.xlu0 0
        %324 = vperm.xlu0 %323, %v269
        %v325 = vpop.permute.xlu0 %324
        %326 = vset.pattern.permute.xlu0 0
        %327 = vperm.xlu0 %326, %v270
        %v328 = vpop.permute.xlu0 %327
        %329 = vset.pattern.permute.xlu0 0
        %330 = vperm.xlu0 %329, %v271
        %v331 = vpop.permute.xlu0 %330
        %332 = vset.pattern.permute.xlu0 0
        %333 = vperm.xlu0 %332, %v272
        %v334 = vpop.permute.xlu0 %333
        %vm335 = vcmp.eq.s32.totalorder %v274, %v277
        %vm336 = vcmp.eq.s32.totalorder %v274, %v280
        %vm337 = vcmp.eq.s32.totalorder %v274, %v283
        %vm338 = vcmp.eq.s32.totalorder %v274, %v286
        %vm339 = vcmp.eq.s32.totalorder %v274, %v289
        %vm340 = vcmp.eq.s32.totalorder %v274, %v292
        %vm341 = vcmp.eq.s32.totalorder %v274, %v295
        %vm342 = vcmp.eq.s32.totalorder %v274, %v298
        %vm343 = vcmp.eq.s32.totalorder %v274, %v301
        %vm344 = vcmp.eq.s32.totalorder %v274, %v304
        %vm345 = vcmp.eq.s32.totalorder %v274, %v307
        %vm346 = vcmp.eq.s32.totalorder %v274, %v310
        %vm347 = vcmp.eq.s32.totalorder %v274, %v313
        %vm348 = vcmp.eq.s32.totalorder %v274, %v316
        %vm349 = vcmp.eq.s32.totalorder %v274, %v319
        %vm350 = vcmp.eq.s32.totalorder %v274, %v322
        %vm351 = vcmp.eq.s32.totalorder %v274, %v325
        %vm352 = vcmp.eq.s32.totalorder %v274, %v328
        %vm353 = vcmp.eq.s32.totalorder %v274, %v331
        %vm354 = vcmp.eq.s32.totalorder %v274, %v334
        %v355 = vsel %vm335, 1.0, 0.0
        %v356 = vsel %vm336, 1.0, 0.0
        %v357 = vsel %vm337, 1.0, 0.0
        %v358 = vsel %vm338, 1.0, 0.0
        %v359 = vsel %vm339, 1.0, 0.0
        %v360 = vsel %vm340, 1.0, 0.0
        %v361 = vsel %vm341, 1.0, 0.0
        %v362 = vsel %vm342, 1.0, 0.0
        %v363 = vsel %vm343, 1.0, 0.0
        %v364 = vsel %vm344, 1.0, 0.0
        %v365 = vsel %vm345, 1.0, 0.0
        %v366 = vsel %vm346, 1.0, 0.0
        %v367 = vsel %vm347, 1.0, 0.0
        %v368 = vsel %vm348, 1.0, 0.0
        %v369 = vsel %vm349, 1.0, 0.0
        %v370 = vsel %vm350, 1.0, 0.0
        %v371 = vsel %vm351, 1.0, 0.0
        %v372 = vsel %vm352, 1.0, 0.0
        %v373 = vsel %vm353, 1.0, 0.0
        %v374 = vsel %vm354, 1.0, 0.0
        %v375 = vld [vmem:[%s1] sm:$0xff]
        %v376 = vld [vmem:[%s1 + $0x8] sm:$0xff]
        %v377 = vld [vmem:[%s1 + $0x10] sm:$0xff]
        %v378 = vld [vmem:[%s1 + $0x18] sm:$0xff]
        %v379 = vld [vmem:[%s1 + $0x20] sm:$0xff]
        %v380 = vld [vmem:[%s1 + $0x28] sm:$0xff]
        %v381 = vld [vmem:[%s1 + $0x30] sm:$0xff]
        %v382 = vld [vmem:[%s1 + $0x38] sm:$0xff]
        %v383 = vld [vmem:[%s1 + $0x40] sm:$0xff]
        %v384 = vld [vmem:[%s1 + $0x48] sm:$0xff]
        %v385 = vld [vmem:[%s1 + $0x50] sm:$0xff]
        %v386 = vld [vmem:[%s1 + $0x58] sm:$0xff]
        %v387 = vld [vmem:[%s1 + $0x60] sm:$0xff]
        %v388 = vld [vmem:[%s1 + $0x68] sm:$0xff]
        %v389 = vld [vmem:[%s1 + $0x70] sm:$0xff]
        %v390 = vld [vmem:[%s1 + $0x78] sm:$0xff]
        %v391 = vld [vmem:[%s1 + $0x80] sm:$0xff]
        %v392 = vld [vmem:[%s1 + $0x88] sm:$0xff]
        %v393 = vld [vmem:[%s1 + $0x90] sm:$0xff]
        %v394 = vld [vmem:[%s1 + $0x98] sm:$0xff]
        %v395 = vld [vmem:[%s1 + $0xa0] sm:$0xff]
        %v396 = vld [vmem:[%s1 + $0xa8] sm:$0xff]
        %v397 = vld [vmem:[%s1 + $0xb0] sm:$0xff]
        %v398 = vld [vmem:[%s1 + $0xb8] sm:$0xff]
        %v399 = vld [vmem:[%s1 + $0xc0] sm:$0xff]
        %v400 = vld [vmem:[%s1 + $0xc8] sm:$0xff]
        %v401 = vld [vmem:[%s1 + $0xd0] sm:$0xff]
        %v402 = vld [vmem:[%s1 + $0xd8] sm:$0xff]
        %v403 = vld [vmem:[%s1 + $0xe0] sm:$0xff]
        %v404 = vld [vmem:[%s1 + $0xe8] sm:$0xff]
        %v405 = vld [vmem:[%s1 + $0xf0] sm:$0xff]
        %v406 = vld [vmem:[%s1 + $0xf8] sm:$0xff]
        %v407 = vld [vmem:[%s1 + $0x100] sm:$0xff]
        %v408 = vld [vmem:[%s1 + $0x108] sm:$0xff]
        %v409 = vld [vmem:[%s1 + $0x110] sm:$0xff]
        %v410 = vld [vmem:[%s1 + $0x118] sm:$0xff]
        %v411 = vld [vmem:[%s1 + $0x120] sm:$0xff]
        %v412 = vld [vmem:[%s1 + $0x128] sm:$0xff]
        %v413 = vld [vmem:[%s1 + $0x130] sm:$0xff]
        %v414 = vld [vmem:[%s1 + $0x138] sm:$0xff]
        %v415 = vld [vmem:[%s1 + $0x140] sm:$0xff]
        %v416 = vld [vmem:[%s1 + $0x148] sm:$0xff]
        %v417 = vld [vmem:[%s1 + $0x150] sm:$0xff]
        %v418 = vld [vmem:[%s1 + $0x158] sm:$0xff]
        %v419 = vld [vmem:[%s1 + $0x160] sm:$0xff]
        %v420 = vld [vmem:[%s1 + $0x168] sm:$0xff]
        %v421 = vld [vmem:[%s1 + $0x170] sm:$0xff]
        %v422 = vld [vmem:[%s1 + $0x178] sm:$0xff]
        %v423 = vld [vmem:[%s1 + $0x180] sm:$0xf]
        %v424 = vld [vmem:[%s1 + $0x188] sm:$0xf]
        %v425 = vld [vmem:[%s1 + $0x190] sm:$0xf]
        %v426 = vld [vmem:[%s1 + $0x198] sm:$0xf]
        %vm427 = vcmask 818176
        %v429 = vsel %vm427, %v355, 0
        %v432 = vsel %vm427, %v356, 0
        %v435 = vsel %vm427, %v357, 0
        %v438 = vsel %vm427, %v358, 0
        %v441 = vsel %vm427, %v359, 0
        %v444 = vsel %vm427, %v360, 0
        %v447 = vsel %vm427, %v361, 0
        %v450 = vsel %vm427, %v362, 0
        %v453 = vsel %vm427, %v363, 0
        %v456 = vsel %vm427, %v364, 0
        %v459 = vsel %vm427, %v365, 0
        %v462 = vsel %vm427, %v366, 0
        %v465 = vsel %vm427, %v367, 0
        %v468 = vsel %vm427, %v368, 0
        %v471 = vsel %vm427, %v369, 0
        %v474 = vsel %vm427, %v370, 0
        %v477 = vsel %vm427, %v371, 0
        %v480 = vsel %vm427, %v372, 0
        %v483 = vsel %vm427, %v373, 0
        %v486 = vsel %vm427, %v374, 0
        %vm488 = vcmask 1043456
        %v490 = vsel %vm488, %v423, 0
        %v493 = vsel %vm488, %v424, 0
        %v496 = vsel %vm488, %v425, 0
        %v499 = vsel %vm488, %v426, 0
        %501 = vmatprep.subr.mxu0 0.0
        %502 = vmatpush1.msra.mxu0 0.0
        %503 = vmatprep.subr.mxu0 0.0
        %504 = vmatpush1.msra.mxu0 0.0
        %505 = vmatprep.subr.mxu0 0.0
        %506 = vmatpush1.msra.mxu0 0.0
        %507 = vmatprep.subr.mxu0 %v493
        %508 = vmatpush1.msra.mxu0 %v490
        %509 = vmatprep.subr.mxu0 %v420
        %510 = vmatpush1.msra.mxu0 %v419
        %511 = vmatprep.subr.mxu0 %v416
        %512 = vmatpush1.msra.mxu0 %v415
        %513 = vmatprep.subr.mxu0 %v412
        %514 = vmatpush1.msra.mxu0 %v411
        %515 = vmatprep.subr.mxu0 %v408
        %516 = vmatpush1.msra.mxu0 %v407
        %517 = vmatprep.subr.mxu0 %v404
        %518 = vmatpush1.msra.mxu0 %v403
        %519 = vmatprep.subr.mxu0 %v400
        %520 = vmatpush1.msra.mxu0 %v399
        %521 = vmatprep.subr.mxu0 %v396
        %522 = vmatpush1.msra.mxu0 %v395
        %523 = vmatprep.subr.mxu0 %v392
        %524 = vmatpush1.msra.mxu0 %v391
        %525 = vmatprep.subr.mxu0 %v388
        %526 = vmatpush1.msra.mxu0 %v387
        %527 = vmatprep.subr.mxu0 %v384
        %528 = vmatpush1.msra.mxu0 %v383
        %529 = vmatprep.subr.mxu0 %v380
        %530 = vmatpush1.msra.mxu0 %v379
        %531 = vmatprep.subr.mxu0 %v376
        %532 = vmatpush1.msra.mxu0 %v375
        %533 = vmatprep.subr.mxu0 0.0
        %534 = vmatpush2.msra.mxu0 0.0
        %535 = vmatprep.subr.mxu0 0.0
        %536 = vmatpush2.msra.mxu0 0.0
        %537 = vmatprep.subr.mxu0 0.0
        %538 = vmatpush2.msra.mxu0 0.0
        %539 = vmatprep.subr.mxu0 0.0
        %540 = vmatpush2.msra.mxu0 0.0
        %541 = vmatprep.subr.mxu0 0.0
        %542 = vmatpush2.msra.mxu0 0.0
        %543 = vmatprep.subr.mxu0 0.0
        %544 = vmatpush2.msra.mxu0 0.0
        %545 = vmatprep.subr.mxu0 0.0
        %546 = vmatpush2.msra.mxu0 0.0
        %547 = vmatprep.subr.mxu0 0.0
        %548 = vmatpush2.msra.mxu0 0.0
        %549 = vmatprep.subr.mxu0 0.0
        %550 = vmatpush2.msra.mxu0 0.0
        %551 = vmatprep.subr.mxu0 0.0
        %552 = vmatpush2.msra.mxu0 0.0
        %553 = vmatprep.subr.mxu0 0.0
        %554 = vmatpush2.msra.mxu0 0.0
        %555 = vmatprep.subr.mxu0 0.0
        %556 = vmatpush2.msra.mxu0 0.0
        %557 = vmatprep.subr.mxu0 0.0
        %558 = vmatpush2.msra.mxu0 0.0
        %559 = vmatprep.subr.mxu0 0.0
        %560 = vmatpush2.msra.mxu0 0.0
        %561 = vmatprep.subr.mxu0 0.0
        %562 = vmatpush2.msra.mxu0 0.0
        %563 = vmatprep.subr.mxu0 0.0
        %564 = vmatpush2.msra.mxu0 0.0
        %565 = vmatprep.mubr.f32.mxu0 0.0
        %566 = vmatmul.mubr.f32.gmra.mxu0 %v429
        %v567 = vpop.f32.mrf.mxu0
        %v568 = vadd.f32 0.0, %v567
        %v569 = vpop.f32.mrf.mxu0
        %v570 = vadd.f32 0.0, %v569
        %571 = vmatprep.mubr.f32.mxu0 0.0
        %572 = vmatmul.mubr.f32.gmra.mxu0 %v432
        %v573 = vpop.f32.mrf.mxu0
        %v574 = vadd.f32 0.0, %v573
        %v575 = vpop.f32.mrf.mxu0
        %v576 = vadd.f32 0.0, %v575
        %577 = vmatprep.mubr.f32.mxu0 0.0
        %578 = vmatmul.mubr.f32.gmra.mxu0 %v435
        %v579 = vpop.f32.mrf.mxu0
        %v580 = vadd.f32 0.0, %v579
        %v581 = vpop.f32.mrf.mxu0
        %v582 = vadd.f32 0.0, %v581
        %583 = vmatprep.mubr.f32.mxu0 0.0
        %584 = vmatmul.mubr.f32.gmra.mxu0 %v438
        %v585 = vpop.f32.mrf.mxu0
        %v586 = vadd.f32 0.0, %v585
        %v587 = vpop.f32.mrf.mxu0
        %v588 = vadd.f32 0.0, %v587
        %589 = vmatprep.mubr.f32.mxu0 0.0
        %590 = vmatmul.mubr.f32.gmra.mxu0 %v441
        %v591 = vpop.f32.mrf.mxu0
        %v592 = vadd.f32 0.0, %v591
        %v593 = vpop.f32.mrf.mxu0
        %v594 = vadd.f32 0.0, %v593
        %595 = vmatprep.mubr.f32.mxu0 0.0
        %596 = vmatmul.mubr.f32.gmra.mxu0 %v444
        %v597 = vpop.f32.mrf.mxu0
        %v598 = vadd.f32 0.0, %v597
        %v599 = vpop.f32.mrf.mxu0
        %v600 = vadd.f32 0.0, %v599
        %601 = vmatprep.mubr.f32.mxu0 0.0
        %602 = vmatmul.mubr.f32.gmra.mxu0 %v447
        %v603 = vpop.f32.mrf.mxu0
        %v604 = vadd.f32 0.0, %v603
        %v605 = vpop.f32.mrf.mxu0
        %v606 = vadd.f32 0.0, %v605
        %607 = vmatprep.mubr.f32.mxu0 0.0
        %608 = vmatmul.mubr.f32.gmra.mxu0 %v450
        %v609 = vpop.f32.mrf.mxu0
        %v610 = vadd.f32 0.0, %v609
        %v611 = vpop.f32.mrf.mxu0
        %v612 = vadd.f32 0.0, %v611
        %613 = vmatprep.mubr.f32.mxu0 0.0
        %614 = vmatmul.mubr.f32.gmra.mxu0 %v453
        %v615 = vpop.f32.mrf.mxu0
        %v616 = vadd.f32 0.0, %v615
        %v617 = vpop.f32.mrf.mxu0
        %v618 = vadd.f32 0.0, %v617
        %619 = vmatprep.mubr.f32.mxu0 0.0
        %620 = vmatmul.mubr.f32.gmra.mxu0 %v456
        %v621 = vpop.f32.mrf.mxu0
        %v622 = vadd.f32 0.0, %v621
        %v623 = vpop.f32.mrf.mxu0
        %v624 = vadd.f32 0.0, %v623
        %625 = vmatprep.mubr.f32.mxu0 0.0
        %626 = vmatmul.mubr.f32.gmra.mxu0 %v459
        %v627 = vpop.f32.mrf.mxu0
        %v628 = vadd.f32 0.0, %v627
        %v629 = vpop.f32.mrf.mxu0
        %v630 = vadd.f32 0.0, %v629
        %631 = vmatprep.mubr.f32.mxu0 0.0
        %632 = vmatmul.mubr.f32.gmra.mxu0 %v462
        %v633 = vpop.f32.mrf.mxu0
        %v634 = vadd.f32 0.0, %v633
        %v635 = vpop.f32.mrf.mxu0
        %v636 = vadd.f32 0.0, %v635
        %637 = vmatprep.mubr.f32.mxu0 0.0
        %638 = vmatmul.mubr.f32.gmra.mxu0 %v465
        %v639 = vpop.f32.mrf.mxu0
        %v640 = vadd.f32 0.0, %v639
        %v641 = vpop.f32.mrf.mxu0
        %v642 = vadd.f32 0.0, %v641
        %643 = vmatprep.mubr.f32.mxu0 0.0
        %644 = vmatmul.mubr.f32.gmra.mxu0 %v468
        %v645 = vpop.f32.mrf.mxu0
        %v646 = vadd.f32 0.0, %v645
        %v647 = vpop.f32.mrf.mxu0
        %v648 = vadd.f32 0.0, %v647
        %649 = vmatprep.mubr.f32.mxu0 0.0
        %650 = vmatmul.mubr.f32.gmra.mxu0 %v471
        %v651 = vpop.f32.mrf.mxu0
        %v652 = vadd.f32 0.0, %v651
        %v653 = vpop.f32.mrf.mxu0
        %v654 = vadd.f32 0.0, %v653
        %655 = vmatprep.mubr.f32.mxu0 0.0
        %656 = vmatmul.mubr.f32.gmra.mxu0 %v474
        %v657 = vpop.f32.mrf.mxu0
        %v658 = vadd.f32 0.0, %v657
        %v659 = vpop.f32.mrf.mxu0
        %v660 = vadd.f32 0.0, %v659
        %661 = vmatprep.mubr.f32.mxu0 0.0
        %662 = vmatmul.mubr.f32.gmra.mxu0 %v477
        %v663 = vpop.f32.mrf.mxu0
        %v664 = vadd.f32 0.0, %v663
        %v665 = vpop.f32.mrf.mxu0
        %v666 = vadd.f32 0.0, %v665
        %667 = vmatprep.mubr.f32.mxu0 0.0
        %668 = vmatmul.mubr.f32.gmra.mxu0 %v480
        %v669 = vpop.f32.mrf.mxu0
        %v670 = vadd.f32 0.0, %v669
        %v671 = vpop.f32.mrf.mxu0
        %v672 = vadd.f32 0.0, %v671
        %673 = vmatprep.mubr.f32.mxu0 0.0
        %674 = vmatmul.mubr.f32.gmra.mxu0 %v483
        %v675 = vpop.f32.mrf.mxu0
        %v676 = vadd.f32 0.0, %v675
        %v677 = vpop.f32.mrf.mxu0
        %v678 = vadd.f32 0.0, %v677
        %679 = vmatprep.mubr.f32.mxu0 0.0
        %680 = vmatmul.mubr.f32.gmra.mxu0 %v486
        %v681 = vpop.f32.mrf.mxu0
        %v682 = vadd.f32 0.0, %v681
        %v683 = vpop.f32.mrf.mxu0
        %v684 = vadd.f32 0.0, %v683
        %685 = vdwg.mxu0
        %686 = vmatprep.subr.mxu0 0.0
        %687 = vmatpush1.msra.mxu0 0.0
        %688 = vmatprep.subr.mxu0 0.0
        %689 = vmatpush1.msra.mxu0 0.0
        %690 = vmatprep.subr.mxu0 0.0
        %691 = vmatpush1.msra.mxu0 0.0
        %692 = vmatprep.subr.mxu0 %v499
        %693 = vmatpush1.msra.mxu0 %v496
        %694 = vmatprep.subr.mxu0 %v422
        %695 = vmatpush1.msra.mxu0 %v421
        %696 = vmatprep.subr.mxu0 %v418
        %697 = vmatpush1.msra.mxu0 %v417
        %698 = vmatprep.subr.mxu0 %v414
        %699 = vmatpush1.msra.mxu0 %v413
        %700 = vmatprep.subr.mxu0 %v410
        %701 = vmatpush1.msra.mxu0 %v409
        %702 = vmatprep.subr.mxu0 %v406
        %703 = vmatpush1.msra.mxu0 %v405
        %704 = vmatprep.subr.mxu0 %v402
        %705 = vmatpush1.msra.mxu0 %v401
        %706 = vmatprep.subr.mxu0 %v398
        %707 = vmatpush1.msra.mxu0 %v397
        %708 = vmatprep.subr.mxu0 %v394
        %709 = vmatpush1.msra.mxu0 %v393
        %710 = vmatprep.subr.mxu0 %v390
        %711 = vmatpush1.msra.mxu0 %v389
        %712 = vmatprep.subr.mxu0 %v386
        %713 = vmatpush1.msra.mxu0 %v385
        %714 = vmatprep.subr.mxu0 %v382
        %715 = vmatpush1.msra.mxu0 %v381
        %716 = vmatprep.subr.mxu0 %v378
        %717 = vmatpush1.msra.mxu0 %v377
        %718 = vmatprep.subr.mxu0 0.0
        %719 = vmatpush2.msra.mxu0 0.0
        %720 = vmatprep.subr.mxu0 0.0
        %721 = vmatpush2.msra.mxu0 0.0
        %722 = vmatprep.subr.mxu0 0.0
        %723 = vmatpush2.msra.mxu0 0.0
        %724 = vmatprep.subr.mxu0 0.0
        %725 = vmatpush2.msra.mxu0 0.0
        %726 = vmatprep.subr.mxu0 0.0
        %727 = vmatpush2.msra.mxu0 0.0
        %728 = vmatprep.subr.mxu0 0.0
        %729 = vmatpush2.msra.mxu0 0.0
        %730 = vmatprep.subr.mxu0 0.0
        %731 = vmatpush2.msra.mxu0 0.0
        %732 = vmatprep.subr.mxu0 0.0
        %733 = vmatpush2.msra.mxu0 0.0
        %734 = vmatprep.subr.mxu0 0.0
        %735 = vmatpush2.msra.mxu0 0.0
        %736 = vmatprep.subr.mxu0 0.0
        %737 = vmatpush2.msra.mxu0 0.0
        %738 = vmatprep.subr.mxu0 0.0
        %739 = vmatpush2.msra.mxu0 0.0
        %740 = vmatprep.subr.mxu0 0.0
        %741 = vmatpush2.msra.mxu0 0.0
        %742 = vmatprep.subr.mxu0 0.0
        %743 = vmatpush2.msra.mxu0 0.0
        %744 = vmatprep.subr.mxu0 0.0
        %745 = vmatpush2.msra.mxu0 0.0
        %746 = vmatprep.subr.mxu0 0.0
        %747 = vmatpush2.msra.mxu0 0.0
        %748 = vmatprep.subr.mxu0 0.0
        %749 = vmatpush2.msra.mxu0 0.0
        %750 = vmatprep.mubr.f32.mxu0 0.0
        %751 = vmatmul.mubr.f32.gmra.mxu0 %v429
        %v752 = vpop.f32.mrf.mxu0
        %v753 = vadd.f32 0.0, %v752
        %v754 = vpop.f32.mrf.mxu0
        %v755 = vadd.f32 0.0, %v754
        %756 = vmatprep.mubr.f32.mxu0 0.0
        %757 = vmatmul.mubr.f32.gmra.mxu0 %v432
        %v758 = vpop.f32.mrf.mxu0
        %v759 = vadd.f32 0.0, %v758
        %v760 = vpop.f32.mrf.mxu0
        %v761 = vadd.f32 0.0, %v760
        %762 = vmatprep.mubr.f32.mxu0 0.0
        %763 = vmatmul.mubr.f32.gmra.mxu0 %v435
        %v764 = vpop.f32.mrf.mxu0
        %v765 = vadd.f32 0.0, %v764
        %v766 = vpop.f32.mrf.mxu0
        %v767 = vadd.f32 0.0, %v766
        %768 = vmatprep.mubr.f32.mxu0 0.0
        %769 = vmatmul.mubr.f32.gmra.mxu0 %v438
        %v770 = vpop.f32.mrf.mxu0
        %v771 = vadd.f32 0.0, %v770
        %v772 = vpop.f32.mrf.mxu0
        %v773 = vadd.f32 0.0, %v772
        %774 = vmatprep.mubr.f32.mxu0 0.0
        %775 = vmatmul.mubr.f32.gmra.mxu0 %v441
        %v776 = vpop.f32.mrf.mxu0
        %v777 = vadd.f32 0.0, %v776
        %v778 = vpop.f32.mrf.mxu0
        %v779 = vadd.f32 0.0, %v778
        %780 = vmatprep.mubr.f32.mxu0 0.0
        %781 = vmatmul.mubr.f32.gmra.mxu0 %v444
        %v782 = vpop.f32.mrf.mxu0
        %v783 = vadd.f32 0.0, %v782
        %v784 = vpop.f32.mrf.mxu0
        %v785 = vadd.f32 0.0, %v784
        %786 = vmatprep.mubr.f32.mxu0 0.0
        %787 = vmatmul.mubr.f32.gmra.mxu0 %v447
        %v788 = vpop.f32.mrf.mxu0
        %v789 = vadd.f32 0.0, %v788
        %v790 = vpop.f32.mrf.mxu0
        %v791 = vadd.f32 0.0, %v790
        %792 = vmatprep.mubr.f32.mxu0 0.0
        %793 = vmatmul.mubr.f32.gmra.mxu0 %v450
        %v794 = vpop.f32.mrf.mxu0
        %v795 = vadd.f32 0.0, %v794
        %v796 = vpop.f32.mrf.mxu0
        %v797 = vadd.f32 0.0, %v796
        %798 = vmatprep.mubr.f32.mxu0 0.0
        %799 = vmatmul.mubr.f32.gmra.mxu0 %v453
        %v800 = vpop.f32.mrf.mxu0
        %v801 = vadd.f32 0.0, %v800
        %v802 = vpop.f32.mrf.mxu0
        %v803 = vadd.f32 0.0, %v802
        %804 = vmatprep.mubr.f32.mxu0 0.0
        %805 = vmatmul.mubr.f32.gmra.mxu0 %v456
        %v806 = vpop.f32.mrf.mxu0
        %v807 = vadd.f32 0.0, %v806
        %v808 = vpop.f32.mrf.mxu0
        %v809 = vadd.f32 0.0, %v808
        %810 = vmatprep.mubr.f32.mxu0 0.0
        %811 = vmatmul.mubr.f32.gmra.mxu0 %v459
        %v812 = vpop.f32.mrf.mxu0
        %v813 = vadd.f32 0.0, %v812
        %v814 = vpop.f32.mrf.mxu0
        %v815 = vadd.f32 0.0, %v814
        %816 = vmatprep.mubr.f32.mxu0 0.0
        %817 = vmatmul.mubr.f32.gmra.mxu0 %v462
        %v818 = vpop.f32.mrf.mxu0
        %v819 = vadd.f32 0.0, %v818
        %v820 = vpop.f32.mrf.mxu0
        %v821 = vadd.f32 0.0, %v820
        %822 = vmatprep.mubr.f32.mxu0 0.0
        %823 = vmatmul.mubr.f32.gmra.mxu0 %v465
        %v824 = vpop.f32.mrf.mxu0
        %v825 = vadd.f32 0.0, %v824
        %v826 = vpop.f32.mrf.mxu0
        %v827 = vadd.f32 0.0, %v826
        %828 = vmatprep.mubr.f32.mxu0 0.0
        %829 = vmatmul.mubr.f32.gmra.mxu0 %v468
        %v830 = vpop.f32.mrf.mxu0
        %v831 = vadd.f32 0.0, %v830
        %v832 = vpop.f32.mrf.mxu0
        %v833 = vadd.f32 0.0, %v832
        %834 = vmatprep.mubr.f32.mxu0 0.0
        %835 = vmatmul.mubr.f32.gmra.mxu0 %v471
        %v836 = vpop.f32.mrf.mxu0
        %v837 = vadd.f32 0.0, %v836
        %v838 = vpop.f32.mrf.mxu0
        %v839 = vadd.f32 0.0, %v838
        %840 = vmatprep.mubr.f32.mxu0 0.0
        %841 = vmatmul.mubr.f32.gmra.mxu0 %v474
        %v842 = vpop.f32.mrf.mxu0
        %v843 = vadd.f32 0.0, %v842
        %v844 = vpop.f32.mrf.mxu0
        %v845 = vadd.f32 0.0, %v844
        %846 = vmatprep.mubr.f32.mxu0 0.0
        %847 = vmatmul.mubr.f32.gmra.mxu0 %v477
        %v848 = vpop.f32.mrf.mxu0
        %v849 = vadd.f32 0.0, %v848
        %v850 = vpop.f32.mrf.mxu0
        %v851 = vadd.f32 0.0, %v850
        %852 = vmatprep.mubr.f32.mxu0 0.0
        %853 = vmatmul.mubr.f32.gmra.mxu0 %v480
        %v854 = vpop.f32.mrf.mxu0
        %v855 = vadd.f32 0.0, %v854
        %v856 = vpop.f32.mrf.mxu0
        %v857 = vadd.f32 0.0, %v856
        %858 = vmatprep.mubr.f32.mxu0 0.0
        %859 = vmatmul.mubr.f32.gmra.mxu0 %v483
        %v860 = vpop.f32.mrf.mxu0
        %v861 = vadd.f32 0.0, %v860
        %v862 = vpop.f32.mrf.mxu0
        %v863 = vadd.f32 0.0, %v862
        %864 = vmatprep.mubr.f32.mxu0 0.0
        %865 = vmatmul.mubr.f32.gmra.mxu0 %v486
        %v866 = vpop.f32.mrf.mxu0
        %v867 = vadd.f32 0.0, %v866
        %v868 = vpop.f32.mrf.mxu0
        %v869 = vadd.f32 0.0, %v868
        %870 = vdwg.mxu0
        %871 = vst [vmem:[#allocation2] sm:$0xff] %v568
        %872 = vst [vmem:[#allocation2 + $0x8] sm:$0xff] %v570
        %873 = vst [vmem:[#allocation2 + $0x10] sm:$0xff] %v753
        %874 = vst [vmem:[#allocation2 + $0x18] sm:$0xff] %v755
        %875 = vst [vmem:[#allocation2 + $0x20] sm:$0xff] %v574
        %876 = vst [vmem:[#allocation2 + $0x28] sm:$0xff] %v576
        %877 = vst [vmem:[#allocation2 + $0x30] sm:$0xff] %v759
        %878 = vst [vmem:[#allocation2 + $0x38] sm:$0xff] %v761
        %879 = vst [vmem:[#allocation2 + $0x40] sm:$0xff] %v580
        %880 = vst [vmem:[#allocation2 + $0x48] sm:$0xff] %v582
        %881 = vst [vmem:[#allocation2 + $0x50] sm:$0xff] %v765
        %882 = vst [vmem:[#allocation2 + $0x58] sm:$0xff] %v767
        %883 = vst [vmem:[#allocation2 + $0x60] sm:$0xff] %v586
        %884 = vst [vmem:[#allocation2 + $0x68] sm:$0xff] %v588
        %885 = vst [vmem:[#allocation2 + $0x70] sm:$0xff] %v771
        %886 = vst [vmem:[#allocation2 + $0x78] sm:$0xff] %v773
        %887 = vst [vmem:[#allocation2 + $0x80] sm:$0xff] %v592
        %888 = vst [vmem:[#allocation2 + $0x88] sm:$0xff] %v594
        %889 = vst [vmem:[#allocation2 + $0x90] sm:$0xff] %v777
        %890 = vst [vmem:[#allocation2 + $0x98] sm:$0xff] %v779
        %891 = vst [vmem:[#allocation2 + $0xa0] sm:$0xff] %v598
        %892 = vst [vmem:[#allocation2 + $0xa8] sm:$0xff] %v600
        %893 = vst [vmem:[#allocation2 + $0xb0] sm:$0xff] %v783
        %894 = vst [vmem:[#allocation2 + $0xb8] sm:$0xff] %v785
        %895 = vst [vmem:[#allocation2 + $0xc0] sm:$0xff] %v604
        %896 = vst [vmem:[#allocation2 + $0xc8] sm:$0xff] %v606
        %897 = vst [vmem:[#allocation2 + $0xd0] sm:$0xff] %v789
        %898 = vst [vmem:[#allocation2 + $0xd8] sm:$0xff] %v791
        %899 = vst [vmem:[#allocation2 + $0xe0] sm:$0xff] %v610
        %900 = vst [vmem:[#allocation2 + $0xe8] sm:$0xff] %v612
        %901 = vst [vmem:[#allocation2 + $0xf0] sm:$0xff] %v795
        %902 = vst [vmem:[#allocation2 + $0xf8] sm:$0xff] %v797
        %903 = vst [vmem:[#allocation2 + $0x100] sm:$0xff] %v616
        %904 = vst [vmem:[#allocation2 + $0x108] sm:$0xff] %v618
        %905 = vst [vmem:[#allocation2 + $0x110] sm:$0xff] %v801
        %906 = vst [vmem:[#allocation2 + $0x118] sm:$0xff] %v803
        %907 = vst [vmem:[#allocation2 + $0x120] sm:$0xff] %v622
        %908 = vst [vmem:[#allocation2 + $0x128] sm:$0xff] %v624
        %909 = vst [vmem:[#allocation2 + $0x130] sm:$0xff] %v807
        %910 = vst [vmem:[#allocation2 + $0x138] sm:$0xff] %v809
        %911 = vst [vmem:[#allocation2 + $0x140] sm:$0xff] %v628
        %912 = vst [vmem:[#allocation2 + $0x148] sm:$0xff] %v630
        %913 = vst [vmem:[#allocation2 + $0x150] sm:$0xff] %v813
        %914 = vst [vmem:[#allocation2 + $0x158] sm:$0xff] %v815
        %915 = vst [vmem:[#allocation2 + $0x160] sm:$0xff] %v634
        %916 = vst [vmem:[#allocation2 + $0x168] sm:$0xff] %v636
        %917 = vst [vmem:[#allocation2 + $0x170] sm:$0xff] %v819
        %918 = vst [vmem:[#allocation2 + $0x178] sm:$0xff] %v821
        %919 = vst [vmem:[#allocation2 + $0x180] sm:$0xff] %v640
        %920 = vst [vmem:[#allocation2 + $0x188] sm:$0xff] %v642
        %921 = vst [vmem:[#allocation2 + $0x190] sm:$0xff] %v825
        %922 = vst [vmem:[#allocation2 + $0x198] sm:$0xff] %v827
        %923 = vst [vmem:[#allocation2 + $0x1a0] sm:$0xff] %v646
        %924 = vst [vmem:[#allocation2 + $0x1a8] sm:$0xff] %v648
        %925 = vst [vmem:[#allocation2 + $0x1b0] sm:$0xff] %v831
        %926 = vst [vmem:[#allocation2 + $0x1b8] sm:$0xff] %v833
        %927 = vst [vmem:[#allocation2 + $0x1c0] sm:$0xff] %v652
        %928 = vst [vmem:[#allocation2 + $0x1c8] sm:$0xff] %v654
        %929 = vst [vmem:[#allocation2 + $0x1d0] sm:$0xff] %v837
        %930 = vst [vmem:[#allocation2 + $0x1d8] sm:$0xff] %v839
        %931 = vst [vmem:[#allocation2 + $0x1e0] sm:$0xff] %v658
        %932 = vst [vmem:[#allocation2 + $0x1e8] sm:$0xff] %v660
        %933 = vst [vmem:[#allocation2 + $0x1f0] sm:$0xff] %v843
        %934 = vst [vmem:[#allocation2 + $0x1f8] sm:$0xff] %v845
        %935 = vst [vmem:[#allocation2 + $0x200] sm:$0xff] %v664
        %936 = vst [vmem:[#allocation2 + $0x208] sm:$0xff] %v666
        %937 = vst [vmem:[#allocation2 + $0x210] sm:$0xff] %v849
        %938 = vst [vmem:[#allocation2 + $0x218] sm:$0xff] %v851
        %939 = vst [vmem:[#allocation2 + $0x220] sm:$0xff] %v670
        %940 = vst [vmem:[#allocation2 + $0x228] sm:$0xff] %v672
        %941 = vst [vmem:[#allocation2 + $0x230] sm:$0xff] %v855
        %942 = vst [vmem:[#allocation2 + $0x238] sm:$0xff] %v857
        %943 = vst [vmem:[#allocation2 + $0x240] sm:$0xff] %v676
        %944 = vst [vmem:[#allocation2 + $0x248] sm:$0xff] %v678
        %945 = vst [vmem:[#allocation2 + $0x250] sm:$0xff] %v861
        %946 = vst [vmem:[#allocation2 + $0x258] sm:$0xff] %v863
        %947 = vst [vmem:[#allocation2 + $0x260] sm:$0xff] %v682
        %948 = vst [vmem:[#allocation2 + $0x268] sm:$0xff] %v684
        %949 = vst [vmem:[#allocation2 + $0x270] sm:$0xff] %v867
        %950 = vst [vmem:[#allocation2 + $0x278] sm:$0xff] %v869
        %v951 = vld [vmem:[#allocation2] sm:$0xff]
        %v952 = vld [vmem:[#allocation2 + $0x8] sm:$0xff]
        %v953 = vld [vmem:[#allocation2 + $0x10] sm:$0xff]
        %v954 = vld [vmem:[#allocation2 + $0x18] sm:$0xff]
        %v955 = vld [vmem:[#allocation3] sm:$0xff]
        %v956 = vld [vmem:[#allocation3 + $0x8] sm:$0xff]
        %v957 = vld [vmem:[#allocation3 + $0x10] sm:$0xff]
        %v958 = vld [vmem:[#allocation3 + $0x18] sm:$0xff]
        %v959 = vld [vmem:[#allocation3 + $0x20] sm:$0xff]
        %v960 = vld [vmem:[#allocation3 + $0x28] sm:$0xff]
        %v961 = vld [vmem:[#allocation3 + $0x30] sm:$0xff]
        %v962 = vld [vmem:[#allocation3 + $0x38] sm:$0xff]
        %v963 = vld [vmem:[#allocation3 + $0x40] sm:$0xff]
        %v964 = vld [vmem:[#allocation3 + $0x48] sm:$0xff]
        %v965 = vld [vmem:[#allocation3 + $0x50] sm:$0xff]
        %v966 = vld [vmem:[#allocation3 + $0x58] sm:$0xff]
        %v967 = vld [vmem:[#allocation3 + $0x60] sm:$0xff]
        %v968 = vld [vmem:[#allocation3 + $0x68] sm:$0xff]
        %v969 = vld [vmem:[#allocation3 + $0x70] sm:$0xff]
        %v970 = vld [vmem:[#allocation3 + $0x78] sm:$0xff]
        %v971 = vld [vmem:[#allocation3 + $0x80] sm:$0xff]
        %v972 = vld [vmem:[#allocation3 + $0x88] sm:$0xff]
        %v973 = vld [vmem:[#allocation3 + $0x90] sm:$0xff]
        %v974 = vld [vmem:[#allocation3 + $0x98] sm:$0xff]
        %v975 = vld [vmem:[#allocation3 + $0xa0] sm:$0xff]
        %v976 = vld [vmem:[#allocation3 + $0xa8] sm:$0xff]
        %v977 = vld [vmem:[#allocation3 + $0xb0] sm:$0xff]
        %v978 = vld [vmem:[#allocation3 + $0xb8] sm:$0xff]
        %v979 = vld [vmem:[#allocation3 + $0xc0] sm:$0xff]
        %v980 = vld [vmem:[#allocation3 + $0xc8] sm:$0xff]
        %v981 = vld [vmem:[#allocation3 + $0xd0] sm:$0xff]
        %v982 = vld [vmem:[#allocation3 + $0xd8] sm:$0xff]
        %v983 = vld [vmem:[#allocation3 + $0xe0] sm:$0xff]
        %v984 = vld [vmem:[#allocation3 + $0xe8] sm:$0xff]
        %v985 = vld [vmem:[#allocation3 + $0xf0] sm:$0xff]
        %v986 = vld [vmem:[#allocation3 + $0xf8] sm:$0xff]
        %v987 = vld [vmem:[#allocation3 + $0x100] sm:$0xff]
        %v988 = vld [vmem:[#allocation3 + $0x108] sm:$0xff]
        %v989 = vld [vmem:[#allocation3 + $0x110] sm:$0xff]
        %v990 = vld [vmem:[#allocation3 + $0x118] sm:$0xff]
        %v991 = vld [vmem:[#allocation3 + $0x120] sm:$0xff]
        %v992 = vld [vmem:[#allocation3 + $0x128] sm:$0xff]
        %v993 = vld [vmem:[#allocation3 + $0x130] sm:$0xff]
        %v994 = vld [vmem:[#allocation3 + $0x138] sm:$0xff]
        %v995 = vld [vmem:[#allocation3 + $0x140] sm:$0xff]
        %v996 = vld [vmem:[#allocation3 + $0x148] sm:$0xff]
        %v997 = vld [vmem:[#allocation3 + $0x150] sm:$0xff]
        %v998 = vld [vmem:[#allocation3 + $0x158] sm:$0xff]
        %v999 = vld [vmem:[#allocation3 + $0x160] sm:$0xff]
        %v1000 = vld [vmem:[#allocation3 + $0x168] sm:$0xff]
        %v1001 = vld [vmem:[#allocation3 + $0x170] sm:$0xff]
        %v1002 = vld [vmem:[#allocation3 + $0x178] sm:$0xff]
        %v1003 = vld [vmem:[#allocation3 + $0x180] sm:$0xff]
        %v1004 = vld [vmem:[#allocation3 + $0x188] sm:$0xff]
        %v1005 = vld [vmem:[#allocation3 + $0x190] sm:$0xff]
        %v1006 = vld [vmem:[#allocation3 + $0x198] sm:$0xff]
        %v1007 = vld [vmem:[#allocation3 + $0x1a0] sm:$0xff]
        %v1008 = vld [vmem:[#allocation3 + $0x1a8] sm:$0xff]
        %v1009 = vld [vmem:[#allocation3 + $0x1b0] sm:$0xff]
        %v1010 = vld [vmem:[#allocation3 + $0x1b8] sm:$0xff]
        %v1011 = vld [vmem:[#allocation3 + $0x1c0] sm:$0xff]
        %v1012 = vld [vmem:[#allocation3 + $0x1c8] sm:$0xff]
        %v1013 = vld [vmem:[#allocation3 + $0x1d0] sm:$0xff]
        %v1014 = vld [vmem:[#allocation3 + $0x1d8] sm:$0xff]
        %v1015 = vld [vmem:[#allocation3 + $0x1e0] sm:$0xff]
        %v1016 = vld [vmem:[#allocation3 + $0x1e8] sm:$0xff]
        %v1017 = vld [vmem:[#allocation3 + $0x1f0] sm:$0xff]
        %v1018 = vld [vmem:[#allocation3 + $0x1f8] sm:$0xff]
        %1019 = vmatprep.subr.mxu0 %v1016
        %1020 = vmatpush1.msra.mxu0 %v1015
        %1021 = vmatprep.subr.mxu0 %v1012
        %1022 = vmatpush1.msra.mxu0 %v1011
        %1023 = vmatprep.subr.mxu0 %v1008
        %1024 = vmatpush1.msra.mxu0 %v1007
        %1025 = vmatprep.subr.mxu0 %v1004
        %1026 = vmatpush1.msra.mxu0 %v1003
        %1027 = vmatprep.subr.mxu0 %v1000
        %1028 = vmatpush1.msra.mxu0 %v999
        %1029 = vmatprep.subr.mxu0 %v996
        %1030 = vmatpush1.msra.mxu0 %v995
        %1031 = vmatprep.subr.mxu0 %v992
        %1032 = vmatpush1.msra.mxu0 %v991
        %1033 = vmatprep.subr.mxu0 %v988
        %1034 = vmatpush1.msra.mxu0 %v987
        %1035 = vmatprep.subr.mxu0 %v984
        %1036 = vmatpush1.msra.mxu0 %v983
        %1037 = vmatprep.subr.mxu0 %v980
        %1038 = vmatpush1.msra.mxu0 %v979
        %1039 = vmatprep.subr.mxu0 %v976
        %1040 = vmatpush1.msra.mxu0 %v975
        %1041 = vmatprep.subr.mxu0 %v972
        %1042 = vmatpush1.msra.mxu0 %v971
        %1043 = vmatprep.subr.mxu0 %v968
        %1044 = vmatpush1.msra.mxu0 %v967
        %1045 = vmatprep.subr.mxu0 %v964
        %1046 = vmatpush1.msra.mxu0 %v963
        %1047 = vmatprep.subr.mxu0 %v960
        %1048 = vmatpush1.msra.mxu0 %v959
        %1049 = vmatprep.subr.mxu0 %v956
        %1050 = vmatpush1.msra.mxu0 %v955
        %1051 = vmatprep.subr.mxu0 0.0
        %1052 = vmatpush2.msra.mxu0 0.0
        %1053 = vmatprep.subr.mxu0 0.0
        %1054 = vmatpush2.msra.mxu0 0.0
        %1055 = vmatprep.subr.mxu0 0.0
        %1056 = vmatpush2.msra.mxu0 0.0
        %1057 = vmatprep.subr.mxu0 0.0
        %1058 = vmatpush2.msra.mxu0 0.0
        %1059 = vmatprep.subr.mxu0 0.0
        %1060 = vmatpush2.msra.mxu0 0.0
        %1061 = vmatprep.subr.mxu0 0.0
        %1062 = vmatpush2.msra.mxu0 0.0
        %1063 = vmatprep.subr.mxu0 0.0
        %1064 = vmatpush2.msra.mxu0 0.0
        %1065 = vmatprep.subr.mxu0 0.0
        %1066 = vmatpush2.msra.mxu0 0.0
        %1067 = vmatprep.subr.mxu0 0.0
        %1068 = vmatpush2.msra.mxu0 0.0
        %1069 = vmatprep.subr.mxu0 0.0
        %1070 = vmatpush2.msra.mxu0 0.0
        %1071 = vmatprep.subr.mxu0 0.0
        %1072 = vmatpush2.msra.mxu0 0.0
        %1073 = vmatprep.subr.mxu0 0.0
        %1074 = vmatpush2.msra.mxu0 0.0
        %1075 = vmatprep.subr.mxu0 0.0
        %1076 = vmatpush2.msra.mxu0 0.0
        %1077 = vmatprep.subr.mxu0 0.0
        %1078 = vmatpush2.msra.mxu0 0.0
        %1079 = vmatprep.subr.mxu0 0.0
        %1080 = vmatpush2.msra.mxu0 0.0
        %1081 = vmatprep.subr.mxu0 0.0
        %1082 = vmatpush2.msra.mxu0 0.0
        %1083 = vmatprep.mubr.f32.mxu0 0.0
        %1084 = vmatmul.mubr.f32.gmra.mxu0 0.0
        %v1085 = vpop.f32.mrf.mxu0
        %v1086 = vadd.f32 0.0, %v1085
        %v1087 = vpop.f32.mrf.mxu0
        %v1088 = vadd.f32 0.0, %v1087
        %1089 = vdwg.mxu0
        %1090 = vmatprep.subr.mxu0 %v1018
        %1091 = vmatpush1.msra.mxu0 %v1017
        %1092 = vmatprep.subr.mxu0 %v1014
        %1093 = vmatpush1.msra.mxu0 %v1013
        %1094 = vmatprep.subr.mxu0 %v1010
        %1095 = vmatpush1.msra.mxu0 %v1009
        %1096 = vmatprep.subr.mxu0 %v1006
        %1097 = vmatpush1.msra.mxu0 %v1005
        %1098 = vmatprep.subr.mxu0 %v1002
        %1099 = vmatpush1.msra.mxu0 %v1001
        %1100 = vmatprep.subr.mxu0 %v998
        %1101 = vmatpush1.msra.mxu0 %v997
        %1102 = vmatprep.subr.mxu0 %v994
        %1103 = vmatpush1.msra.mxu0 %v993
        %1104 = vmatprep.subr.mxu0 %v990
        %1105 = vmatpush1.msra.mxu0 %v989
        %1106 = vmatprep.subr.mxu0 %v986
        %1107 = vmatpush1.msra.mxu0 %v985
        %1108 = vmatprep.subr.mxu0 %v982
        %1109 = vmatpush1.msra.mxu0 %v981
        %1110 = vmatprep.subr.mxu0 %v978
        %1111 = vmatpush1.msra.mxu0 %v977
        %1112 = vmatprep.subr.mxu0 %v974
        %1113 = vmatpush1.msra.mxu0 %v973
        %1114 = vmatprep.subr.mxu0 %v970
        %1115 = vmatpush1.msra.mxu0 %v969
        %1116 = vmatprep.subr.mxu0 %v966
        %1117 = vmatpush1.msra.mxu0 %v965
        %1118 = vmatprep.subr.mxu0 %v962
        %1119 = vmatpush1.msra.mxu0 %v961
        %1120 = vmatprep.subr.mxu0 %v958
        %1121 = vmatpush1.msra.mxu0 %v957
        %1122 = vmatprep.subr.mxu0 0.0
        %1123 = vmatpush2.msra.mxu0 0.0
        %1124 = vmatprep.subr.mxu0 0.0
        %1125 = vmatpush2.msra.mxu0 0.0
        %1126 = vmatprep.subr.mxu0 0.0
        %1127 = vmatpush2.msra.mxu0 0.0
        %1128 = vmatprep.subr.mxu0 0.0
        %1129 = vmatpush2.msra.mxu0 0.0
        %1130 = vmatprep.subr.mxu0 0.0
        %1131 = vmatpush2.msra.mxu0 0.0
        %1132 = vmatprep.subr.mxu0 0.0
        %1133 = vmatpush2.msra.mxu0 0.0
        %1134 = vmatprep.subr.mxu0 0.0
        %1135 = vmatpush2.msra.mxu0 0.0
        %1136 = vmatprep.subr.mxu0 0.0
        %1137 = vmatpush2.msra.mxu0 0.0
        %1138 = vmatprep.subr.mxu0 0.0
        %1139 = vmatpush2.msra.mxu0 0.0
        %1140 = vmatprep.subr.mxu0 0.0
        %1141 = vmatpush2.msra.mxu0 0.0
        %1142 = vmatprep.subr.mxu0 0.0
        %1143 = vmatpush2.msra.mxu0 0.0
        %1144 = vmatprep.subr.mxu0 0.0
        %1145 = vmatpush2.msra.mxu0 0.0
        %1146 = vmatprep.subr.mxu0 0.0
        %1147 = vmatpush2.msra.mxu0 0.0
        %1148 = vmatprep.subr.mxu0 0.0
        %1149 = vmatpush2.msra.mxu0 0.0
        %1150 = vmatprep.subr.mxu0 0.0
        %1151 = vmatpush2.msra.mxu0 0.0
        %1152 = vmatprep.subr.mxu0 0.0
        %1153 = vmatpush2.msra.mxu0 0.0
        %1154 = vmatprep.mubr.f32.mxu0 0.0
        %1155 = vmatmul.mubr.f32.gmra.mxu0 0.0
        %v1156 = vpop.f32.mrf.mxu0
        %v1157 = vadd.f32 0.0, %v1156
        %v1158 = vpop.f32.mrf.mxu0
        %v1159 = vadd.f32 0.0, %v1158
        %1160 = vdwg.mxu0
        %v1161 = vadd.f32 %v951, %v1086
        %v1162 = vadd.f32 %v952, %v1088
        %v1163 = vadd.f32 %v953, %v1157
        %v1164 = vadd.f32 %v954, %v1159
        %v1165 = vsub.f32 0.0, %v1161
        %v1166 = vsub.f32 0.0, %v1162
        %v1167 = vsub.f32 0.0, %v1163
        %v1168 = vsub.f32 0.0, %v1164
        %v1169 = vmul.f32 %v1165, 1.442695
        %v1170 = vpow.pop %v1169
        %v1171 = vmul.f32 %v1166, 1.442695
        %v1172 = vpow.pop %v1171
        %v1173 = vmul.f32 %v1167, 1.442695
        %v1174 = vpow.pop %v1173
        %v1175 = vmul.f32 %v1168, 1.442695
        %v1176 = vpow.pop %v1175
        %v1177 = vadd.f32 %v1170, 1.0
        %v1178 = vadd.f32 %v1172, 1.0
        %v1179 = vadd.f32 %v1174, 1.0
        %v1180 = vadd.f32 %v1176, 1.0
        %v1181 = vrcp.pop %v1177
        %v1182 = vrcp.pop %v1178
        %v1183 = vrcp.pop %v1179
        %v1184 = vrcp.pop %v1180
        %v1185 = vmul.f32 %v1183, 2.0
        %v1186 = vsub.f32 %v1185, 1.0
        %v1187 = vmul.f32 %v1182, 0.0
        %v1188 = vmul.f32 %v1181, %v1186
        %v1189 = vadd.f32 %v1187, %v1188
        %v1190 = vtanh.pop %v1189
        %v1191 = vmul.f32 %v1184, %v1190
        %v1192 = vld [vmem:[#allocation2 + $0x20] sm:$0xff]
        %v1193 = vld [vmem:[#allocation2 + $0x28] sm:$0xff]
        %v1194 = vld [vmem:[#allocation2 + $0x30] sm:$0xff]
        %v1195 = vld [vmem:[#allocation2 + $0x38] sm:$0xff]
        %1196 = vmatprep.subr.mxu0 %v1016
        %1197 = vmatpush1.msra.mxu0 %v1015
        %1198 = vmatprep.subr.mxu0 %v1012
        %1199 = vmatpush1.msra.mxu0 %v1011
        %1200 = vmatprep.subr.mxu0 %v1008
        %1201 = vmatpush1.msra.mxu0 %v1007
        %1202 = vmatprep.subr.mxu0 %v1004
        %1203 = vmatpush1.msra.mxu0 %v1003
        %1204 = vmatprep.subr.mxu0 %v1000
        %1205 = vmatpush1.msra.mxu0 %v999
        %1206 = vmatprep.subr.mxu0 %v996
        %1207 = vmatpush1.msra.mxu0 %v995
        %1208 = vmatprep.subr.mxu0 %v992
        %1209 = vmatpush1.msra.mxu0 %v991
        %1210 = vmatprep.subr.mxu0 %v988
        %1211 = vmatpush1.msra.mxu0 %v987
        %1212 = vmatprep.subr.mxu0 %v984
        %1213 = vmatpush1.msra.mxu0 %v983
        %1214 = vmatprep.subr.mxu0 %v980
        %1215 = vmatpush1.msra.mxu0 %v979
        %1216 = vmatprep.subr.mxu0 %v976
        %1217 = vmatpush1.msra.mxu0 %v975
        %1218 = vmatprep.subr.mxu0 %v972
        %1219 = vmatpush1.msra.mxu0 %v971
        %1220 = vmatprep.subr.mxu0 %v968
        %1221 = vmatpush1.msra.mxu0 %v967
        %1222 = vmatprep.subr.mxu0 %v964
        %1223 = vmatpush1.msra.mxu0 %v963
        %1224 = vmatprep.subr.mxu0 %v960
        %1225 = vmatpush1.msra.mxu0 %v959
        %1226 = vmatprep.subr.mxu0 %v956
        %1227 = vmatpush1.msra.mxu0 %v955
        %1228 = vmatprep.subr.mxu0 0.0
        %1229 = vmatpush2.msra.mxu0 0.0
        %1230 = vmatprep.subr.mxu0 0.0
        %1231 = vmatpush2.msra.mxu0 0.0
        %1232 = vmatprep.subr.mxu0 0.0
        %1233 = vmatpush2.msra.mxu0 0.0
        %1234 = vmatprep.subr.mxu0 0.0
        %1235 = vmatpush2.msra.mxu0 0.0
        %1236 = vmatprep.subr.mxu0 0.0
        %1237 = vmatpush2.msra.mxu0 0.0
        %1238 = vmatprep.subr.mxu0 0.0
        %1239 = vmatpush2.msra.mxu0 0.0
        %1240 = vmatprep.subr.mxu0 0.0
        %1241 = vmatpush2.msra.mxu0 0.0
        %1242 = vmatprep.subr.mxu0 0.0
        %1243 = vmatpush2.msra.mxu0 0.0
        %1244 = vmatprep.subr.mxu0 0.0
        %1245 = vmatpush2.msra.mxu0 0.0
        %1246 = vmatprep.subr.mxu0 0.0
        %1247 = vmatpush2.msra.mxu0 0.0
        %1248 = vmatprep.subr.mxu0 0.0
        %1249 = vmatpush2.msra.mxu0 0.0
        %1250 = vmatprep.subr.mxu0 0.0
        %1251 = vmatpush2.msra.mxu0 0.0
        %1252 = vmatprep.subr.mxu0 0.0
        %1253 = vmatpush2.msra.mxu0 0.0
        %1254 = vmatprep.subr.mxu0 0.0
        %1255 = vmatpush2.msra.mxu0 0.0
        %1256 = vmatprep.subr.mxu0 0.0
        %1257 = vmatpush2.msra.mxu0 0.0
        %1258 = vmatprep.subr.mxu0 0.0
        %1259 = vmatpush2.msra.mxu0 0.0
        %1260 = vmatprep.mubr.f32.mxu0 0.0
        %1261 = vmatmul.mubr.f32.gmra.mxu0 %v1191
        %v1262 = vpop.f32.mrf.mxu0
        %v1263 = vadd.f32 0.0, %v1262
        %v1264 = vpop.f32.mrf.mxu0
        %v1265 = vadd.f32 0.0, %v1264
        %1266 = vdwg.mxu0
        %1267 = vmatprep.subr.mxu0 %v1018
        %1268 = vmatpush1.msra.mxu0 %v1017
        %1269 = vmatprep.subr.mxu0 %v1014
        %1270 = vmatpush1.msra.mxu0 %v1013
        %1271 = vmatprep.subr.mxu0 %v1010
        %1272 = vmatpush1.msra.mxu0 %v1009
        %1273 = vmatprep.subr.mxu0 %v1006
        %1274 = vmatpush1.msra.mxu0 %v1005
        %1275 = vmatprep.subr.mxu0 %v1002
        %1276 = vmatpush1.msra.mxu0 %v1001
        %1277 = vmatprep.subr.mxu0 %v998
        %1278 = vmatpush1.msra.mxu0 %v997
        %1279 = vmatprep.subr.mxu0 %v994
        %1280 = vmatpush1.msra.mxu0 %v993
        %1281 = vmatprep.subr.mxu0 %v990
        %1282 = vmatpush1.msra.mxu0 %v989
        %1283 = vmatprep.subr.mxu0 %v986
        %1284 = vmatpush1.msra.mxu0 %v985
        %1285 = vmatprep.subr.mxu0 %v982
        %1286 = vmatpush1.msra.mxu0 %v981
        %1287 = vmatprep.subr.mxu0 %v978
        %1288 = vmatpush1.msra.mxu0 %v977
        %1289 = vmatprep.subr.mxu0 %v974
        %1290 = vmatpush1.msra.mxu0 %v973
        %1291 = vmatprep.subr.mxu0 %v970
        %1292 = vmatpush1.msra.mxu0 %v969
        %1293 = vmatprep.subr.mxu0 %v966
        %1294 = vmatpush1.msra.mxu0 %v965
        %1295 = vmatprep.subr.mxu0 %v962
        %1296 = vmatpush1.msra.mxu0 %v961
        %1297 = vmatprep.subr.mxu0 %v958
        %1298 = vmatpush1.msra.mxu0 %v957
        %1299 = vmatprep.subr.mxu0 0.0
        %1300 = vmatpush2.msra.mxu0 0.0
        %1301 = vmatprep.subr.mxu0 0.0
        %1302 = vmatpush2.msra.mxu0 0.0
        %1303 = vmatprep.subr.mxu0 0.0
        %1304 = vmatpush2.msra.mxu0 0.0
        %1305 = vmatprep.subr.mxu0 0.0
        %1306 = vmatpush2.msra.mxu0 0.0
        %1307 = vmatprep.subr.mxu0 0.0
        %1308 = vmatpush2.msra.mxu0 0.0
        %1309 = vmatprep.subr.mxu0 0.0
        %1310 = vmatpush2.msra.mxu0 0.0
        %1311 = vmatprep.subr.mxu0 0.0
        %1312 = vmatpush2.msra.mxu0 0.0
        %1313 = vmatprep.subr.mxu0 0.0
        %1314 = vmatpush2.msra.mxu0 0.0
        %1315 = vmatprep.subr.mxu0 0.0
        %1316 = vmatpush2.msra.mxu0 0.0
        %1317 = vmatprep.subr.mxu0 0.0
        %1318 = vmatpush2.msra.mxu0 0.0
        %1319 = vmatprep.subr.mxu0 0.0
        %1320 = vmatpush2.msra.mxu0 0.0
        %1321 = vmatprep.subr.mxu0 0.0
        %1322 = vmatpush2.msra.mxu0 0.0
        %1323 = vmatprep.subr.mxu0 0.0
        %1324 = vmatpush2.msra.mxu0 0.0
        %1325 = vmatprep.subr.mxu0 0.0
        %1326 = vmatpush2.msra.mxu0 0.0
        %1327 = vmatprep.subr.mxu0 0.0
        %1328 = vmatpush2.msra.mxu0 0.0
        %1329 = vmatprep.subr.mxu0 0.0
        %1330 = vmatpush2.msra.mxu0 0.0
        %1331 = vmatprep.mubr.f32.mxu0 0.0
        %1332 = vmatmul.mubr.f32.gmra.mxu0 %v1191
        %v1333 = vpop.f32.mrf.mxu0
        %v1334 = vadd.f32 0.0, %v1333
        %v1335 = vpop.f32.mrf.mxu0
        %v1336 = vadd.f32 0.0, %v1335
        %1337 = vdwg.mxu0
        %v1338 = vadd.f32 %v1192, %v1263
        %v1339 = vadd.f32 %v1193, %v1265
        %v1340 = vadd.f32 %v1194, %v1334
        %v1341 = vadd.f32 %v1195, %v1336
        %v1342 = vsub.f32 0.0, %v1338
        %v1343 = vsub.f32 0.0, %v1339
        %v1344 = vsub.f32 0.0, %v1340
        %v1345 = vsub.f32 0.0, %v1341
        %v1346 = vmul.f32 %v1342, 1.442695
        %v1347 = vpow.pop %v1346
        %v1348 = vmul.f32 %v1343, 1.442695
        %v1349 = vpow.pop %v1348
        %v1350 = vmul.f32 %v1344, 1.442695
        %v1351 = vpow.pop %v1350
        %v1352 = vmul.f32 %v1345, 1.442695
        %v1353 = vpow.pop %v1352
        %v1354 = vadd.f32 %v1347, 1.0
        %v1355 = vadd.f32 %v1349, 1.0
        %v1356 = vadd.f32 %v1351, 1.0
        %v1357 = vadd.f32 %v1353, 1.0
        %v1358 = vrcp.pop %v1354
        %v1359 = vrcp.pop %v1355
        %v1360 = vrcp.pop %v1356
        %v1361 = vrcp.pop %v1357
        %v1362 = vmul.f32 %v1360, 2.0
        %v1363 = vsub.f32 %v1362, 1.0
        %v1364 = vmul.f32 %v1359, %v1189
        %v1365 = vmul.f32 %v1358, %v1363
        %v1366 = vadd.f32 %v1364, %v1365
        %v1367 = vtanh.pop %v1366
        %v1368 = vmul.f32 %v1361, %v1367
        %v1369 = vld [vmem:[#allocation2 + $0x40] sm:$0xff]
        %v1370 = vld [vmem:[#allocation2 + $0x48] sm:$0xff]
        %v1371 = vld [vmem:[#allocation2 + $0x50] sm:$0xff]
        %v1372 = vld [vmem:[#allocation2 + $0x58] sm:$0xff]
        %1373 = vmatprep.subr.mxu0 %v1016
        %1374 = vmatpush1.msra.mxu0 %v1015
        %1375 = vmatprep.subr.mxu0 %v1012
        %1376 = vmatpush1.msra.mxu0 %v1011
        %1377 = vmatprep.subr.mxu0 %v1008
        %1378 = vmatpush1.msra.mxu0 %v1007
        %1379 = vmatprep.subr.mxu0 %v1004
        %1380 = vmatpush1.msra.mxu0 %v1003
        %1381 = vmatprep.subr.mxu0 %v1000
        %1382 = vmatpush1.msra.mxu0 %v999
        %1383 = vmatprep.subr.mxu0 %v996
        %1384 = vmatpush1.msra.mxu0 %v995
        %1385 = vmatprep.subr.mxu0 %v992
        %1386 = vmatpush1.msra.mxu0 %v991
        %1387 = vmatprep.subr.mxu0 %v988
        %1388 = vmatpush1.msra.mxu0 %v987
        %1389 = vmatprep.subr.mxu0 %v984
        %1390 = vmatpush1.msra.mxu0 %v983
        %1391 = vmatprep.subr.mxu0 %v980
        %1392 = vmatpush1.msra.mxu0 %v979
        %1393 = vmatprep.subr.mxu0 %v976
        %1394 = vmatpush1.msra.mxu0 %v975
        %1395 = vmatprep.subr.mxu0 %v972
        %1396 = vmatpush1.msra.mxu0 %v971
        %1397 = vmatprep.subr.mxu0 %v968
        %1398 = vmatpush1.msra.mxu0 %v967
        %1399 = vmatprep.subr.mxu0 %v964
        %1400 = vmatpush1.msra.mxu0 %v963
        %1401 = vmatprep.subr.mxu0 %v960
        %1402 = vmatpush1.msra.mxu0 %v959
        %1403 = vmatprep.subr.mxu0 %v956
        %1404 = vmatpush1.msra.mxu0 %v955
        %1405 = vmatprep.subr.mxu0 0.0
        %1406 = vmatpush2.msra.mxu0 0.0
        %1407 = vmatprep.subr.mxu0 0.0
        %1408 = vmatpush2.msra.mxu0 0.0
        %1409 = vmatprep.subr.mxu0 0.0
        %1410 = vmatpush2.msra.mxu0 0.0
        %1411 = vmatprep.subr.mxu0 0.0
        %1412 = vmatpush2.msra.mxu0 0.0
        %1413 = vmatprep.subr.mxu0 0.0
        %1414 = vmatpush2.msra.mxu0 0.0
        %1415 = vmatprep.subr.mxu0 0.0
        %1416 = vmatpush2.msra.mxu0 0.0
        %1417 = vmatprep.subr.mxu0 0.0
        %1418 = vmatpush2.msra.mxu0 0.0
        %1419 = vmatprep.subr.mxu0 0.0
        %1420 = vmatpush2.msra.mxu0 0.0
        %1421 = vmatprep.subr.mxu0 0.0
        %1422 = vmatpush2.msra.mxu0 0.0
        %1423 = vmatprep.subr.mxu0 0.0
        %1424 = vmatpush2.msra.mxu0 0.0
        %1425 = vmatprep.subr.mxu0 0.0
        %1426 = vmatpush2.msra.mxu0 0.0
        %1427 = vmatprep.subr.mxu0 0.0
        %1428 = vmatpush2.msra.mxu0 0.0
        %1429 = vmatprep.subr.mxu0 0.0
        %1430 = vmatpush2.msra.mxu0 0.0
        %1431 = vmatprep.subr.mxu0 0.0
        %1432 = vmatpush2.msra.mxu0 0.0
        %1433 = vmatprep.subr.mxu0 0.0
        %1434 = vmatpush2.msra.mxu0 0.0
        %1435 = vmatprep.subr.mxu0 0.0
        %1436 = vmatpush2.msra.mxu0 0.0
        %1437 = vmatprep.mubr.f32.mxu0 0.0
        %1438 = vmatmul.mubr.f32.gmra.mxu0 %v1368
        %v1439 = vpop.f32.mrf.mxu0
        %v1440 = vadd.f32 0.0, %v1439
        %v1441 = vpop.f32.mrf.mxu0
        %v1442 = vadd.f32 0.0, %v1441
        %1443 = vdwg.mxu0
        %1444 = vmatprep.subr.mxu0 %v1018
        %1445 = vmatpush1.msra.mxu0 %v1017
        %1446 = vmatprep.subr.mxu0 %v1014
        %1447 = vmatpush1.msra.mxu0 %v1013
        %1448 = vmatprep.subr.mxu0 %v1010
        %1449 = vmatpush1.msra.mxu0 %v1009
        %1450 = vmatprep.subr.mxu0 %v1006
        %1451 = vmatpush1.msra.mxu0 %v1005
        %1452 = vmatprep.subr.mxu0 %v1002
        %1453 = vmatpush1.msra.mxu0 %v1001
        %1454 = vmatprep.subr.mxu0 %v998
        %1455 = vmatpush1.msra.mxu0 %v997
        %1456 = vmatprep.subr.mxu0 %v994
        %1457 = vmatpush1.msra.mxu0 %v993
        %1458 = vmatprep.subr.mxu0 %v990
        %1459 = vmatpush1.msra.mxu0 %v989
        %1460 = vmatprep.subr.mxu0 %v986
        %1461 = vmatpush1.msra.mxu0 %v985
        %1462 = vmatprep.subr.mxu0 %v982
        %1463 = vmatpush1.msra.mxu0 %v981
        %1464 = vmatprep.subr.mxu0 %v978
        %1465 = vmatpush1.msra.mxu0 %v977
        %1466 = vmatprep.subr.mxu0 %v974
        %1467 = vmatpush1.msra.mxu0 %v973
        %1468 = vmatprep.subr.mxu0 %v970
        %1469 = vmatpush1.msra.mxu0 %v969
        %1470 = vmatprep.subr.mxu0 %v966
        %1471 = vmatpush1.msra.mxu0 %v965
        %1472 = vmatprep.subr.mxu0 %v962
        %1473 = vmatpush1.msra.mxu0 %v961
        %1474 = vmatprep.subr.mxu0 %v958
        %1475 = vmatpush1.msra.mxu0 %v957
        %1476 = vmatprep.subr.mxu0 0.0
        %1477 = vmatpush2.msra.mxu0 0.0
        %1478 = vmatprep.subr.mxu0 0.0
        %1479 = vmatpush2.msra.mxu0 0.0
        %1480 = vmatprep.subr.mxu0 0.0
        %1481 = vmatpush2.msra.mxu0 0.0
        %1482 = vmatprep.subr.mxu0 0.0
        %1483 = vmatpush2.msra.mxu0 0.0
        %1484 = vmatprep.subr.mxu0 0.0
        %1485 = vmatpush2.msra.mxu0 0.0
        %1486 = vmatprep.subr.mxu0 0.0
        %1487 = vmatpush2.msra.mxu0 0.0
        %1488 = vmatprep.subr.mxu0 0.0
        %1489 = vmatpush2.msra.mxu0 0.0
        %1490 = vmatprep.subr.mxu0 0.0
        %1491 = vmatpush2.msra.mxu0 0.0
        %1492 = vmatprep.subr.mxu0 0.0
        %1493 = vmatpush2.msra.mxu0 0.0
        %1494 = vmatprep.subr.mxu0 0.0
        %1495 = vmatpush2.msra.mxu0 0.0
        %1496 = vmatprep.subr.mxu0 0.0
        %1497 = vmatpush2.msra.mxu0 0.0
        %1498 = vmatprep.subr.mxu0 0.0
        %1499 = vmatpush2.msra.mxu0 0.0
        %1500 = vmatprep.subr.mxu0 0.0
        %1501 = vmatpush2.msra.mxu0 0.0
        %1502 = vmatprep.subr.mxu0 0.0
        %1503 = vmatpush2.msra.mxu0 0.0
        %1504 = vmatprep.subr.mxu0 0.0
        %1505 = vmatpush2.msra.mxu0 0.0
        %1506 = vmatprep.subr.mxu0 0.0
        %1507 = vmatpush2.msra.mxu0 0.0
        %1508 = vmatprep.mubr.f32.mxu0 0.0
        %1509 = vmatmul.mubr.f32.gmra.mxu0 %v1368
        %v1510 = vpop.f32.mrf.mxu0
        %v1511 = vadd.f32 0.0, %v1510
        %v1512 = vpop.f32.mrf.mxu0
        %v1513 = vadd.f32 0.0, %v1512
        %1514 = vdwg.mxu0
        %v1515 = vadd.f32 %v1369, %v1440
        %v1516 = vadd.f32 %v1370, %v1442
        %v1517 = vadd.f32 %v1371, %v1511
        %v1518 = vadd.f32 %v1372, %v1513
        %v1519 = vsub.f32 0.0, %v1515
        %v1520 = vsub.f32 0.0, %v1516
        %v1521 = vsub.f32 0.0, %v1517
        %v1522 = vsub.f32 0.0, %v1518
        %v1523 = vmul.f32 %v1519, 1.442695
        %v1524 = vpow.pop %v1523
        %v1525 = vmul.f32 %v1520, 1.442695
        %v1526 = vpow.pop %v1525
        %v1527 = vmul.f32 %v1521, 1.442695
        %v1528 = vpow.pop %v1527
        %v1529 = vmul.f32 %v1522, 1.442695
        %v1530 = vpow.pop %v1529
        %v1531 = vadd.f32 %v1524, 1.0
        %v1532 = vadd.f32 %v1526, 1.0
        %v1533 = vadd.f32 %v1528, 1.0
        %v1534 = vadd.f32 %v1530, 1.0
        %v1535 = vrcp.pop %v1531
        %v1536 = vrcp.pop %v1532
        %v1537 = vrcp.pop %v1533
        %v1538 = vrcp.pop %v1534
        %v1539 = vmul.f32 %v1537, 2.0
        %v1540 = vsub.f32 %v1539, 1.0
        %v1541 = vmul.f32 %v1536, %v1366
        %v1542 = vmul.f32 %v1535, %v1540
        %v1543 = vadd.f32 %v1541, %v1542
        %v1544 = vtanh.pop %v1543
        %v1545 = vmul.f32 %v1538, %v1544
        %v1546 = vld [vmem:[#allocation2 + $0x60] sm:$0xff]
        %v1547 = vld [vmem:[#allocation2 + $0x68] sm:$0xff]
        %v1548 = vld [vmem:[#allocation2 + $0x70] sm:$0xff]
        %v1549 = vld [vmem:[#allocation2 + $0x78] sm:$0xff]
        %1550 = vmatprep.subr.mxu0 %v1016
        %1551 = vmatpush1.msra.mxu0 %v1015
        %1552 = vmatprep.subr.mxu0 %v1012
        %1553 = vmatpush1.msra.mxu0 %v1011
        %1554 = vmatprep.subr.mxu0 %v1008
        %1555 = vmatpush1.msra.mxu0 %v1007
        %1556 = vmatprep.subr.mxu0 %v1004
        %1557 = vmatpush1.msra.mxu0 %v1003
        %1558 = vmatprep.subr.mxu0 %v1000
        %1559 = vmatpush1.msra.mxu0 %v999
        %1560 = vmatprep.subr.mxu0 %v996
        %1561 = vmatpush1.msra.mxu0 %v995
        %1562 = vmatprep.subr.mxu0 %v992
        %1563 = vmatpush1.msra.mxu0 %v991
        %1564 = vmatprep.subr.mxu0 %v988
        %1565 = vmatpush1.msra.mxu0 %v987
        %1566 = vmatprep.subr.mxu0 %v984
        %1567 = vmatpush1.msra.mxu0 %v983
        %1568 = vmatprep.subr.mxu0 %v980
        %1569 = vmatpush1.msra.mxu0 %v979
        %1570 = vmatprep.subr.mxu0 %v976
        %1571 = vmatpush1.msra.mxu0 %v975
        %1572 = vmatprep.subr.mxu0 %v972
        %1573 = vmatpush1.msra.mxu0 %v971
        %1574 = vmatprep.subr.mxu0 %v968
        %1575 = vmatpush1.msra.mxu0 %v967
        %1576 = vmatprep.subr.mxu0 %v964
        %1577 = vmatpush1.msra.mxu0 %v963
        %1578 = vmatprep.subr.mxu0 %v960
        %1579 = vmatpush1.msra.mxu0 %v959
        %1580 = vmatprep.subr.mxu0 %v956
        %1581 = vmatpush1.msra.mxu0 %v955
        %1582 = vmatprep.subr.mxu0 0.0
        %1583 = vmatpush2.msra.mxu0 0.0
        %1584 = vmatprep.subr.mxu0 0.0
        %1585 = vmatpush2.msra.mxu0 0.0
        %1586 = vmatprep.subr.mxu0 0.0
        %1587 = vmatpush2.msra.mxu0 0.0
        %1588 = vmatprep.subr.mxu0 0.0
        %1589 = vmatpush2.msra.mxu0 0.0
        %1590 = vmatprep.subr.mxu0 0.0
        %1591 = vmatpush2.msra.mxu0 0.0
        %1592 = vmatprep.subr.mxu0 0.0
        %1593 = vmatpush2.msra.mxu0 0.0
        %1594 = vmatprep.subr.mxu0 0.0
        %1595 = vmatpush2.msra.mxu0 0.0
        %1596 = vmatprep.subr.mxu0 0.0
        %1597 = vmatpush2.msra.mxu0 0.0
        %1598 = vmatprep.subr.mxu0 0.0
        %1599 = vmatpush2.msra.mxu0 0.0
        %1600 = vmatprep.subr.mxu0 0.0
        %1601 = vmatpush2.msra.mxu0 0.0
        %1602 = vmatprep.subr.mxu0 0.0
        %1603 = vmatpush2.msra.mxu0 0.0
        %1604 = vmatprep.subr.mxu0 0.0
        %1605 = vmatpush2.msra.mxu0 0.0
        %1606 = vmatprep.subr.mxu0 0.0
        %1607 = vmatpush2.msra.mxu0 0.0
        %1608 = vmatprep.subr.mxu0 0.0
        %1609 = vmatpush2.msra.mxu0 0.0
        %1610 = vmatprep.subr.mxu0 0.0
        %1611 = vmatpush2.msra.mxu0 0.0
        %1612 = vmatprep.subr.mxu0 0.0
        %1613 = vmatpush2.msra.mxu0 0.0
        %1614 = vmatprep.mubr.f32.mxu0 0.0
        %1615 = vmatmul.mubr.f32.gmra.mxu0 %v1545
        %v1616 = vpop.f32.mrf.mxu0
        %v1617 = vadd.f32 0.0, %v1616
        %v1618 = vpop.f32.mrf.mxu0
        %v1619 = vadd.f32 0.0, %v1618
        %1620 = vdwg.mxu0
        %1621 = vmatprep.subr.mxu0 %v1018
        %1622 = vmatpush1.msra.mxu0 %v1017
        %1623 = vmatprep.subr.mxu0 %v1014
        %1624 = vmatpush1.msra.mxu0 %v1013
        %1625 = vmatprep.subr.mxu0 %v1010
        %1626 = vmatpush1.msra.mxu0 %v1009
        %1627 = vmatprep.subr.mxu0 %v1006
        %1628 = vmatpush1.msra.mxu0 %v1005
        %1629 = vmatprep.subr.mxu0 %v1002
        %1630 = vmatpush1.msra.mxu0 %v1001
        %1631 = vmatprep.subr.mxu0 %v998
        %1632 = vmatpush1.msra.mxu0 %v997
        %1633 = vmatprep.subr.mxu0 %v994
        %1634 = vmatpush1.msra.mxu0 %v993
        %1635 = vmatprep.subr.mxu0 %v990
        %1636 = vmatpush1.msra.mxu0 %v989
        %1637 = vmatprep.subr.mxu0 %v986
        %1638 = vmatpush1.msra.mxu0 %v985
        %1639 = vmatprep.subr.mxu0 %v982
        %1640 = vmatpush1.msra.mxu0 %v981
        %1641 = vmatprep.subr.mxu0 %v978
        %1642 = vmatpush1.msra.mxu0 %v977
        %1643 = vmatprep.subr.mxu0 %v974
        %1644 = vmatpush1.msra.mxu0 %v973
        %1645 = vmatprep.subr.mxu0 %v970
        %1646 = vmatpush1.msra.mxu0 %v969
        %1647 = vmatprep.subr.mxu0 %v966
        %1648 = vmatpush1.msra.mxu0 %v965
        %1649 = vmatprep.subr.mxu0 %v962
        %1650 = vmatpush1.msra.mxu0 %v961
        %1651 = vmatprep.subr.mxu0 %v958
        %1652 = vmatpush1.msra.mxu0 %v957
        %1653 = vmatprep.subr.mxu0 0.0
        %1654 = vmatpush2.msra.mxu0 0.0
        %1655 = vmatprep.subr.mxu0 0.0
        %1656 = vmatpush2.msra.mxu0 0.0
        %1657 = vmatprep.subr.mxu0 0.0
        %1658 = vmatpush2.msra.mxu0 0.0
        %1659 = vmatprep.subr.mxu0 0.0
        %1660 = vmatpush2.msra.mxu0 0.0
        %1661 = vmatprep.subr.mxu0 0.0
        %1662 = vmatpush2.msra.mxu0 0.0
        %1663 = vmatprep.subr.mxu0 0.0
        %1664 = vmatpush2.msra.mxu0 0.0
        %1665 = vmatprep.subr.mxu0 0.0
        %1666 = vmatpush2.msra.mxu0 0.0
        %1667 = vmatprep.subr.mxu0 0.0
        %1668 = vmatpush2.msra.mxu0 0.0
        %1669 = vmatprep.subr.mxu0 0.0
        %1670 = vmatpush2.msra.mxu0 0.0
        %1671 = vmatprep.subr.mxu0 0.0
        %1672 = vmatpush2.msra.mxu0 0.0
        %1673 = vmatprep.subr.mxu0 0.0
        %1674 = vmatpush2.msra.mxu0 0.0
        %1675 = vmatprep.subr.mxu0 0.0
        %1676 = vmatpush2.msra.mxu0 0.0
        %1677 = vmatprep.subr.mxu0 0.0
        %1678 = vmatpush2.msra.mxu0 0.0
        %1679 = vmatprep.subr.mxu0 0.0
        %1680 = vmatpush2.msra.mxu0 0.0
        %1681 = vmatprep.subr.mxu0 0.0
        %1682 = vmatpush2.msra.mxu0 0.0
        %1683 = vmatprep.subr.mxu0 0.0
        %1684 = vmatpush2.msra.mxu0 0.0
        %1685 = vmatprep.mubr.f32.mxu0 0.0
        %1686 = vmatmul.mubr.f32.gmra.mxu0 %v1545
        %v1687 = vpop.f32.mrf.mxu0
        %v1688 = vadd.f32 0.0, %v1687
        %v1689 = vpop.f32.mrf.mxu0
        %v1690 = vadd.f32 0.0, %v1689
        %1691 = vdwg.mxu0
        %v1692 = vadd.f32 %v1546, %v1617
        %v1693 = vadd.f32 %v1547, %v1619
        %v1694 = vadd.f32 %v1548, %v1688
        %v1695 = vadd.f32 %v1549, %v1690
        %v1696 = vsub.f32 0.0, %v1692
        %v1697 = vsub.f32 0.0, %v1693
        %v1698 = vsub.f32 0.0, %v1694
        %v1699 = vsub.f32 0.0, %v1695
        %v1700 = vmul.f32 %v1696, 1.442695
        %v1701 = vpow.pop %v1700
        %v1702 = vmul.f32 %v1697, 1.442695
        %v1703 = vpow.pop %v1702
        %v1704 = vmul.f32 %v1698, 1.442695
        %v1705 = vpow.pop %v1704
        %v1706 = vmul.f32 %v1699, 1.442695
        %v1707 = vpow.pop %v1706
        %v1708 = vadd.f32 %v1701, 1.0
        %v1709 = vadd.f32 %v1703, 1.0
        %v1710 = vadd.f32 %v1705, 1.0
        %v1711 = vadd.f32 %v1707, 1.0
        %v1712 = vrcp.pop %v1708
        %v1713 = vrcp.pop %v1709
        %v1714 = vrcp.pop %v1710
        %v1715 = vrcp.pop %v1711
        %v1716 = vmul.f32 %v1714, 2.0
        %v1717 = vsub.f32 %v1716, 1.0
        %v1718 = vmul.f32 %v1713, %v1543
        %v1719 = vmul.f32 %v1712, %v1717
        %v1720 = vadd.f32 %v1718, %v1719
        %v1721 = vtanh.pop %v1720
        %v1722 = vmul.f32 %v1715, %v1721
        %v1723 = vld [vmem:[#allocation2 + $0x80] sm:$0xff]
        %v1724 = vld [vmem:[#allocation2 + $0x88] sm:$0xff]
        %v1725 = vld [vmem:[#allocation2 + $0x90] sm:$0xff]
        %v1726 = vld [vmem:[#allocation2 + $0x98] sm:$0xff]
        %1727 = vmatprep.subr.mxu0 %v1016
        %1728 = vmatpush1.msra.mxu0 %v1015
        %1729 = vmatprep.subr.mxu0 %v1012
        %1730 = vmatpush1.msra.mxu0 %v1011
        %1731 = vmatprep.subr.mxu0 %v1008
        %1732 = vmatpush1.msra.mxu0 %v1007
        %1733 = vmatprep.subr.mxu0 %v1004
        %1734 = vmatpush1.msra.mxu0 %v1003
        %1735 = vmatprep.subr.mxu0 %v1000
        %1736 = vmatpush1.msra.mxu0 %v999
        %1737 = vmatprep.subr.mxu0 %v996
        %1738 = vmatpush1.msra.mxu0 %v995
        %1739 = vmatprep.subr.mxu0 %v992
        %1740 = vmatpush1.msra.mxu0 %v991
        %1741 = vmatprep.subr.mxu0 %v988
        %1742 = vmatpush1.msra.mxu0 %v987
        %1743 = vmatprep.subr.mxu0 %v984
        %1744 = vmatpush1.msra.mxu0 %v983
        %1745 = vmatprep.subr.mxu0 %v980
        %1746 = vmatpush1.msra.mxu0 %v979
        %1747 = vmatprep.subr.mxu0 %v976
        %1748 = vmatpush1.msra.mxu0 %v975
        %1749 = vmatprep.subr.mxu0 %v972
        %1750 = vmatpush1.msra.mxu0 %v971
        %1751 = vmatprep.subr.mxu0 %v968
        %1752 = vmatpush1.msra.mxu0 %v967
        %1753 = vmatprep.subr.mxu0 %v964
        %1754 = vmatpush1.msra.mxu0 %v963
        %1755 = vmatprep.subr.mxu0 %v960
        %1756 = vmatpush1.msra.mxu0 %v959
        %1757 = vmatprep.subr.mxu0 %v956
        %1758 = vmatpush1.msra.mxu0 %v955
        %1759 = vmatprep.subr.mxu0 0.0
        %1760 = vmatpush2.msra.mxu0 0.0
        %1761 = vmatprep.subr.mxu0 0.0
        %1762 = vmatpush2.msra.mxu0 0.0
        %1763 = vmatprep.subr.mxu0 0.0
        %1764 = vmatpush2.msra.mxu0 0.0
        %1765 = vmatprep.subr.mxu0 0.0
        %1766 = vmatpush2.msra.mxu0 0.0
        %1767 = vmatprep.subr.mxu0 0.0
        %1768 = vmatpush2.msra.mxu0 0.0
        %1769 = vmatprep.subr.mxu0 0.0
        %1770 = vmatpush2.msra.mxu0 0.0
        %1771 = vmatprep.subr.mxu0 0.0
        %1772 = vmatpush2.msra.mxu0 0.0
        %1773 = vmatprep.subr.mxu0 0.0
        %1774 = vmatpush2.msra.mxu0 0.0
        %1775 = vmatprep.subr.mxu0 0.0
        %1776 = vmatpush2.msra.mxu0 0.0
        %1777 = vmatprep.subr.mxu0 0.0
        %1778 = vmatpush2.msra.mxu0 0.0
        %1779 = vmatprep.subr.mxu0 0.0
        %1780 = vmatpush2.msra.mxu0 0.0
        %1781 = vmatprep.subr.mxu0 0.0
        %1782 = vmatpush2.msra.mxu0 0.0
        %1783 = vmatprep.subr.mxu0 0.0
        %1784 = vmatpush2.msra.mxu0 0.0
        %1785 = vmatprep.subr.mxu0 0.0
        %1786 = vmatpush2.msra.mxu0 0.0
        %1787 = vmatprep.subr.mxu0 0.0
        %1788 = vmatpush2.msra.mxu0 0.0
        %1789 = vmatprep.subr.mxu0 0.0
        %1790 = vmatpush2.msra.mxu0 0.0
        %1791 = vmatprep.mubr.f32.mxu0 0.0
        %1792 = vmatmul.mubr.f32.gmra.mxu0 %v1722
        %v1793 = vpop.f32.mrf.mxu0
        %v1794 = vadd.f32 0.0, %v1793
        %v1795 = vpop.f32.mrf.mxu0
        %v1796 = vadd.f32 0.0, %v1795
        %1797 = vdwg.mxu0
        %1798 = vmatprep.subr.mxu0 %v1018
        %1799 = vmatpush1.msra.mxu0 %v1017
        %1800 = vmatprep.subr.mxu0 %v1014
        %1801 = vmatpush1.msra.mxu0 %v1013
        %1802 = vmatprep.subr.mxu0 %v1010
        %1803 = vmatpush1.msra.mxu0 %v1009
        %1804 = vmatprep.subr.mxu0 %v1006
        %1805 = vmatpush1.msra.mxu0 %v1005
        %1806 = vmatprep.subr.mxu0 %v1002
        %1807 = vmatpush1.msra.mxu0 %v1001
        %1808 = vmatprep.subr.mxu0 %v998
        %1809 = vmatpush1.msra.mxu0 %v997
        %1810 = vmatprep.subr.mxu0 %v994
        %1811 = vmatpush1.msra.mxu0 %v993
        %1812 = vmatprep.subr.mxu0 %v990
        %1813 = vmatpush1.msra.mxu0 %v989
        %1814 = vmatprep.subr.mxu0 %v986
        %1815 = vmatpush1.msra.mxu0 %v985
        %1816 = vmatprep.subr.mxu0 %v982
        %1817 = vmatpush1.msra.mxu0 %v981
        %1818 = vmatprep.subr.mxu0 %v978
        %1819 = vmatpush1.msra.mxu0 %v977
        %1820 = vmatprep.subr.mxu0 %v974
        %1821 = vmatpush1.msra.mxu0 %v973
        %1822 = vmatprep.subr.mxu0 %v970
        %1823 = vmatpush1.msra.mxu0 %v969
        %1824 = vmatprep.subr.mxu0 %v966
        %1825 = vmatpush1.msra.mxu0 %v965
        %1826 = vmatprep.subr.mxu0 %v962
        %1827 = vmatpush1.msra.mxu0 %v961
        %1828 = vmatprep.subr.mxu0 %v958
        %1829 = vmatpush1.msra.mxu0 %v957
        %1830 = vmatprep.subr.mxu0 0.0
        %1831 = vmatpush2.msra.mxu0 0.0
        %1832 = vmatprep.subr.mxu0 0.0
        %1833 = vmatpush2.msra.mxu0 0.0
        %1834 = vmatprep.subr.mxu0 0.0
        %1835 = vmatpush2.msra.mxu0 0.0
        %1836 = vmatprep.subr.mxu0 0.0
        %1837 = vmatpush2.msra.mxu0 0.0
        %1838 = vmatprep.subr.mxu0 0.0
        %1839 = vmatpush2.msra.mxu0 0.0
        %1840 = vmatprep.subr.mxu0 0.0
        %1841 = vmatpush2.msra.mxu0 0.0
        %1842 = vmatprep.subr.mxu0 0.0
        %1843 = vmatpush2.msra.mxu0 0.0
        %1844 = vmatprep.subr.mxu0 0.0
        %1845 = vmatpush2.msra.mxu0 0.0
        %1846 = vmatprep.subr.mxu0 0.0
        %1847 = vmatpush2.msra.mxu0 0.0
        %1848 = vmatprep.subr.mxu0 0.0
        %1849 = vmatpush2.msra.mxu0 0.0
        %1850 = vmatprep.subr.mxu0 0.0
        %1851 = vmatpush2.msra.mxu0 0.0
        %1852 = vmatprep.subr.mxu0 0.0
        %1853 = vmatpush2.msra.mxu0 0.0
        %1854 = vmatprep.subr.mxu0 0.0
        %1855 = vmatpush2.msra.mxu0 0.0
        %1856 = vmatprep.subr.mxu0 0.0
        %1857 = vmatpush2.msra.mxu0 0.0
        %1858 = vmatprep.subr.mxu0 0.0
        %1859 = vmatpush2.msra.mxu0 0.0
        %1860 = vmatprep.subr.mxu0 0.0
        %1861 = vmatpush2.msra.mxu0 0.0
        %1862 = vmatprep.mubr.f32.mxu0 0.0
        %1863 = vmatmul.mubr.f32.gmra.mxu0 %v1722
        %v1864 = vpop.f32.mrf.mxu0
        %v1865 = vadd.f32 0.0, %v1864
        %v1866 = vpop.f32.mrf.mxu0
        %v1867 = vadd.f32 0.0, %v1866
        %1868 = vdwg.mxu0
        %v1869 = vadd.f32 %v1723, %v1794
        %v1870 = vadd.f32 %v1724, %v1796
        %v1871 = vadd.f32 %v1725, %v1865
        %v1872 = vadd.f32 %v1726, %v1867
        %v1873 = vsub.f32 0.0, %v1869
        %v1874 = vsub.f32 0.0, %v1870
        %v1875 = vsub.f32 0.0, %v1871
        %v1876 = vsub.f32 0.0, %v1872
        %v1877 = vmul.f32 %v1873, 1.442695
        %v1878 = vpow.pop %v1877
        %v1879 = vmul.f32 %v1874, 1.442695
        %v1880 = vpow.pop %v1879
        %v1881 = vmul.f32 %v1875, 1.442695
        %v1882 = vpow.pop %v1881
        %v1883 = vmul.f32 %v1876, 1.442695
        %v1884 = vpow.pop %v1883
        %v1885 = vadd.f32 %v1878, 1.0
        %v1886 = vadd.f32 %v1880, 1.0
        %v1887 = vadd.f32 %v1882, 1.0
        %v1888 = vadd.f32 %v1884, 1.0
        %v1889 = vrcp.pop %v1885
        %v1890 = vrcp.pop %v1886
        %v1891 = vrcp.pop %v1887
        %v1892 = vrcp.pop %v1888
        %v1893 = vmul.f32 %v1891, 2.0
        %v1894 = vsub.f32 %v1893, 1.0
        %v1895 = vmul.f32 %v1890, %v1720
        %v1896 = vmul.f32 %v1889, %v1894
        %v1897 = vadd.f32 %v1895, %v1896
        %v1898 = vtanh.pop %v1897
        %v1899 = vmul.f32 %v1892, %v1898
        %v1900 = vld [vmem:[#allocation2 + $0xa0] sm:$0xff]
        %v1901 = vld [vmem:[#allocation2 + $0xa8] sm:$0xff]
        %v1902 = vld [vmem:[#allocation2 + $0xb0] sm:$0xff]
        %v1903 = vld [vmem:[#allocation2 + $0xb8] sm:$0xff]
        %1904 = vmatprep.subr.mxu0 %v1016
        %1905 = vmatpush1.msra.mxu0 %v1015
        %1906 = vmatprep.subr.mxu0 %v1012
        %1907 = vmatpush1.msra.mxu0 %v1011
        %1908 = vmatprep.subr.mxu0 %v1008
        %1909 = vmatpush1.msra.mxu0 %v1007
        %1910 = vmatprep.subr.mxu0 %v1004
        %1911 = vmatpush1.msra.mxu0 %v1003
        %1912 = vmatprep.subr.mxu0 %v1000
        %1913 = vmatpush1.msra.mxu0 %v999
        %1914 = vmatprep.subr.mxu0 %v996
        %1915 = vmatpush1.msra.mxu0 %v995
        %1916 = vmatprep.subr.mxu0 %v992
        %1917 = vmatpush1.msra.mxu0 %v991
        %1918 = vmatprep.subr.mxu0 %v988
        %1919 = vmatpush1.msra.mxu0 %v987
        %1920 = vmatprep.subr.mxu0 %v984
        %1921 = vmatpush1.msra.mxu0 %v983
        %1922 = vmatprep.subr.mxu0 %v980
        %1923 = vmatpush1.msra.mxu0 %v979
        %1924 = vmatprep.subr.mxu0 %v976
        %1925 = vmatpush1.msra.mxu0 %v975
        %1926 = vmatprep.subr.mxu0 %v972
        %1927 = vmatpush1.msra.mxu0 %v971
        %1928 = vmatprep.subr.mxu0 %v968
        %1929 = vmatpush1.msra.mxu0 %v967
        %1930 = vmatprep.subr.mxu0 %v964
        %1931 = vmatpush1.msra.mxu0 %v963
        %1932 = vmatprep.subr.mxu0 %v960
        %1933 = vmatpush1.msra.mxu0 %v959
        %1934 = vmatprep.subr.mxu0 %v956
        %1935 = vmatpush1.msra.mxu0 %v955
        %1936 = vmatprep.subr.mxu0 0.0
        %1937 = vmatpush2.msra.mxu0 0.0
        %1938 = vmatprep.subr.mxu0 0.0
        %1939 = vmatpush2.msra.mxu0 0.0
        %1940 = vmatprep.subr.mxu0 0.0
        %1941 = vmatpush2.msra.mxu0 0.0
        %1942 = vmatprep.subr.mxu0 0.0
        %1943 = vmatpush2.msra.mxu0 0.0
        %1944 = vmatprep.subr.mxu0 0.0
        %1945 = vmatpush2.msra.mxu0 0.0
        %1946 = vmatprep.subr.mxu0 0.0
        %1947 = vmatpush2.msra.mxu0 0.0
        %1948 = vmatprep.subr.mxu0 0.0
        %1949 = vmatpush2.msra.mxu0 0.0
        %1950 = vmatprep.subr.mxu0 0.0
        %1951 = vmatpush2.msra.mxu0 0.0
        %1952 = vmatprep.subr.mxu0 0.0
        %1953 = vmatpush2.msra.mxu0 0.0
        %1954 = vmatprep.subr.mxu0 0.0
        %1955 = vmatpush2.msra.mxu0 0.0
        %1956 = vmatprep.subr.mxu0 0.0
        %1957 = vmatpush2.msra.mxu0 0.0
        %1958 = vmatprep.subr.mxu0 0.0
        %1959 = vmatpush2.msra.mxu0 0.0
        %1960 = vmatprep.subr.mxu0 0.0
        %1961 = vmatpush2.msra.mxu0 0.0
        %1962 = vmatprep.subr.mxu0 0.0
        %1963 = vmatpush2.msra.mxu0 0.0
        %1964 = vmatprep.subr.mxu0 0.0
        %1965 = vmatpush2.msra.mxu0 0.0
        %1966 = vmatprep.subr.mxu0 0.0
        %1967 = vmatpush2.msra.mxu0 0.0
        %1968 = vmatprep.mubr.f32.mxu0 0.0
        %1969 = vmatmul.mubr.f32.gmra.mxu0 %v1899
        %v1970 = vpop.f32.mrf.mxu0
        %v1971 = vadd.f32 0.0, %v1970
        %v1972 = vpop.f32.mrf.mxu0
        %v1973 = vadd.f32 0.0, %v1972
        %1974 = vdwg.mxu0
        %1975 = vmatprep.subr.mxu0 %v1018
        %1976 = vmatpush1.msra.mxu0 %v1017
        %1977 = vmatprep.subr.mxu0 %v1014
        %1978 = vmatpush1.msra.mxu0 %v1013
        %1979 = vmatprep.subr.mxu0 %v1010
        %1980 = vmatpush1.msra.mxu0 %v1009
        %1981 = vmatprep.subr.mxu0 %v1006
        %1982 = vmatpush1.msra.mxu0 %v1005
        %1983 = vmatprep.subr.mxu0 %v1002
        %1984 = vmatpush1.msra.mxu0 %v1001
        %1985 = vmatprep.subr.mxu0 %v998
        %1986 = vmatpush1.msra.mxu0 %v997
        %1987 = vmatprep.subr.mxu0 %v994
        %1988 = vmatpush1.msra.mxu0 %v993
        %1989 = vmatprep.subr.mxu0 %v990
        %1990 = vmatpush1.msra.mxu0 %v989
        %1991 = vmatprep.subr.mxu0 %v986
        %1992 = vmatpush1.msra.mxu0 %v985
        %1993 = vmatprep.subr.mxu0 %v982
        %1994 = vmatpush1.msra.mxu0 %v981
        %1995 = vmatprep.subr.mxu0 %v978
        %1996 = vmatpush1.msra.mxu0 %v977
        %1997 = vmatprep.subr.mxu0 %v974
        %1998 = vmatpush1.msra.mxu0 %v973
        %1999 = vmatprep.subr.mxu0 %v970
        %2000 = vmatpush1.msra.mxu0 %v969
        %2001 = vmatprep.subr.mxu0 %v966
        %2002 = vmatpush1.msra.mxu0 %v965
        %2003 = vmatprep.subr.mxu0 %v962
        %2004 = vmatpush1.msra.mxu0 %v961
        %2005 = vmatprep.subr.mxu0 %v958
        %2006 = vmatpush1.msra.mxu0 %v957
        %2007 = vmatprep.subr.mxu0 0.0
        %2008 = vmatpush2.msra.mxu0 0.0
        %2009 = vmatprep.subr.mxu0 0.0
        %2010 = vmatpush2.msra.mxu0 0.0
        %2011 = vmatprep.subr.mxu0 0.0
        %2012 = vmatpush2.msra.mxu0 0.0
        %2013 = vmatprep.subr.mxu0 0.0
        %2014 = vmatpush2.msra.mxu0 0.0
        %2015 = vmatprep.subr.mxu0 0.0
        %2016 = vmatpush2.msra.mxu0 0.0
        %2017 = vmatprep.subr.mxu0 0.0
        %2018 = vmatpush2.msra.mxu0 0.0
        %2019 = vmatprep.subr.mxu0 0.0
        %2020 = vmatpush2.msra.mxu0 0.0
        %2021 = vmatprep.subr.mxu0 0.0
        %2022 = vmatpush2.msra.mxu0 0.0
        %2023 = vmatprep.subr.mxu0 0.0
        %2024 = vmatpush2.msra.mxu0 0.0
        %2025 = vmatprep.subr.mxu0 0.0
        %2026 = vmatpush2.msra.mxu0 0.0
        %2027 = vmatprep.subr.mxu0 0.0
        %2028 = vmatpush2.msra.mxu0 0.0
        %2029 = vmatprep.subr.mxu0 0.0
        %2030 = vmatpush2.msra.mxu0 0.0
        %2031 = vmatprep.subr.mxu0 0.0
        %2032 = vmatpush2.msra.mxu0 0.0
        %2033 = vmatprep.subr.mxu0 0.0
        %2034 = vmatpush2.msra.mxu0 0.0
        %2035 = vmatprep.subr.mxu0 0.0
        %2036 = vmatpush2.msra.mxu0 0.0
        %2037 = vmatprep.subr.mxu0 0.0
        %2038 = vmatpush2.msra.mxu0 0.0
        %2039 = vmatprep.mubr.f32.mxu0 0.0
        %2040 = vmatmul.mubr.f32.gmra.mxu0 %v1899
        %v2041 = vpop.f32.mrf.mxu0
        %v2042 = vadd.f32 0.0, %v2041
        %v2043 = vpop.f32.mrf.mxu0
        %v2044 = vadd.f32 0.0, %v2043
        %2045 = vdwg.mxu0
        %v2046 = vadd.f32 %v1900, %v1971
        %v2047 = vadd.f32 %v1901, %v1973
        %v2048 = vadd.f32 %v1902, %v2042
        %v2049 = vadd.f32 %v1903, %v2044
        %v2050 = vsub.f32 0.0, %v2046
        %v2051 = vsub.f32 0.0, %v2047
        %v2052 = vsub.f32 0.0, %v2048
        %v2053 = vsub.f32 0.0, %v2049
        %v2054 = vmul.f32 %v2050, 1.442695
        %v2055 = vpow.pop %v2054
        %v2056 = vmul.f32 %v2051, 1.442695
        %v2057 = vpow.pop %v2056
        %v2058 = vmul.f32 %v2052, 1.442695
        %v2059 = vpow.pop %v2058
        %v2060 = vmul.f32 %v2053, 1.442695
        %v2061 = vpow.pop %v2060
        %v2062 = vadd.f32 %v2055, 1.0
        %v2063 = vadd.f32 %v2057, 1.0
        %v2064 = vadd.f32 %v2059, 1.0
        %v2065 = vadd.f32 %v2061, 1.0
        %v2066 = vrcp.pop %v2062
        %v2067 = vrcp.pop %v2063
        %v2068 = vrcp.pop %v2064
        %v2069 = vrcp.pop %v2065
        %v2070 = vmul.f32 %v2068, 2.0
        %v2071 = vsub.f32 %v2070, 1.0
        %v2072 = vmul.f32 %v2067, %v1897
        %v2073 = vmul.f32 %v2066, %v2071
        %v2074 = vadd.f32 %v2072, %v2073
        %v2075 = vtanh.pop %v2074
        %v2076 = vmul.f32 %v2069, %v2075
        %v2077 = vld [vmem:[#allocation2 + $0xc0] sm:$0xff]
        %v2078 = vld [vmem:[#allocation2 + $0xc8] sm:$0xff]
        %v2079 = vld [vmem:[#allocation2 + $0xd0] sm:$0xff]
        %v2080 = vld [vmem:[#allocation2 + $0xd8] sm:$0xff]
        %2081 = vmatprep.subr.mxu0 %v1016
        %2082 = vmatpush1.msra.mxu0 %v1015
        %2083 = vmatprep.subr.mxu0 %v1012
        %2084 = vmatpush1.msra.mxu0 %v1011
        %2085 = vmatprep.subr.mxu0 %v1008
        %2086 = vmatpush1.msra.mxu0 %v1007
        %2087 = vmatprep.subr.mxu0 %v1004
        %2088 = vmatpush1.msra.mxu0 %v1003
        %2089 = vmatprep.subr.mxu0 %v1000
        %2090 = vmatpush1.msra.mxu0 %v999
        %2091 = vmatprep.subr.mxu0 %v996
        %2092 = vmatpush1.msra.mxu0 %v995
        %2093 = vmatprep.subr.mxu0 %v992
        %2094 = vmatpush1.msra.mxu0 %v991
        %2095 = vmatprep.subr.mxu0 %v988
        %2096 = vmatpush1.msra.mxu0 %v987
        %2097 = vmatprep.subr.mxu0 %v984
        %2098 = vmatpush1.msra.mxu0 %v983
        %2099 = vmatprep.subr.mxu0 %v980
        %2100 = vmatpush1.msra.mxu0 %v979
        %2101 = vmatprep.subr.mxu0 %v976
        %2102 = vmatpush1.msra.mxu0 %v975
        %2103 = vmatprep.subr.mxu0 %v972
        %2104 = vmatpush1.msra.mxu0 %v971
        %2105 = vmatprep.subr.mxu0 %v968
        %2106 = vmatpush1.msra.mxu0 %v967
        %2107 = vmatprep.subr.mxu0 %v964
        %2108 = vmatpush1.msra.mxu0 %v963
        %2109 = vmatprep.subr.mxu0 %v960
        %2110 = vmatpush1.msra.mxu0 %v959
        %2111 = vmatprep.subr.mxu0 %v956
        %2112 = vmatpush1.msra.mxu0 %v955
        %2113 = vmatprep.subr.mxu0 0.0
        %2114 = vmatpush2.msra.mxu0 0.0
        %2115 = vmatprep.subr.mxu0 0.0
        %2116 = vmatpush2.msra.mxu0 0.0
        %2117 = vmatprep.subr.mxu0 0.0
        %2118 = vmatpush2.msra.mxu0 0.0
        %2119 = vmatprep.subr.mxu0 0.0
        %2120 = vmatpush2.msra.mxu0 0.0
        %2121 = vmatprep.subr.mxu0 0.0
        %2122 = vmatpush2.msra.mxu0 0.0
        %2123 = vmatprep.subr.mxu0 0.0
        %2124 = vmatpush2.msra.mxu0 0.0
        %2125 = vmatprep.subr.mxu0 0.0
        %2126 = vmatpush2.msra.mxu0 0.0
        %2127 = vmatprep.subr.mxu0 0.0
        %2128 = vmatpush2.msra.mxu0 0.0
        %2129 = vmatprep.subr.mxu0 0.0
        %2130 = vmatpush2.msra.mxu0 0.0
        %2131 = vmatprep.subr.mxu0 0.0
        %2132 = vmatpush2.msra.mxu0 0.0
        %2133 = vmatprep.subr.mxu0 0.0
        %2134 = vmatpush2.msra.mxu0 0.0
        %2135 = vmatprep.subr.mxu0 0.0
        %2136 = vmatpush2.msra.mxu0 0.0
        %2137 = vmatprep.subr.mxu0 0.0
        %2138 = vmatpush2.msra.mxu0 0.0
        %2139 = vmatprep.subr.mxu0 0.0
        %2140 = vmatpush2.msra.mxu0 0.0
        %2141 = vmatprep.subr.mxu0 0.0
        %2142 = vmatpush2.msra.mxu0 0.0
        %2143 = vmatprep.subr.mxu0 0.0
        %2144 = vmatpush2.msra.mxu0 0.0
        %2145 = vmatprep.mubr.f32.mxu0 0.0
        %2146 = vmatmul.mubr.f32.gmra.mxu0 %v2076
        %v2147 = vpop.f32.mrf.mxu0
        %v2148 = vadd.f32 0.0, %v2147
        %v2149 = vpop.f32.mrf.mxu0
        %v2150 = vadd.f32 0.0, %v2149
        %2151 = vdwg.mxu0
        %2152 = vmatprep.subr.mxu0 %v1018
        %2153 = vmatpush1.msra.mxu0 %v1017
        %2154 = vmatprep.subr.mxu0 %v1014
        %2155 = vmatpush1.msra.mxu0 %v1013
        %2156 = vmatprep.subr.mxu0 %v1010
        %2157 = vmatpush1.msra.mxu0 %v1009
        %2158 = vmatprep.subr.mxu0 %v1006
        %2159 = vmatpush1.msra.mxu0 %v1005
        %2160 = vmatprep.subr.mxu0 %v1002
        %2161 = vmatpush1.msra.mxu0 %v1001
        %2162 = vmatprep.subr.mxu0 %v998
        %2163 = vmatpush1.msra.mxu0 %v997
        %2164 = vmatprep.subr.mxu0 %v994
        %2165 = vmatpush1.msra.mxu0 %v993
        %2166 = vmatprep.subr.mxu0 %v990
        %2167 = vmatpush1.msra.mxu0 %v989
        %2168 = vmatprep.subr.mxu0 %v986
        %2169 = vmatpush1.msra.mxu0 %v985
        %2170 = vmatprep.subr.mxu0 %v982
        %2171 = vmatpush1.msra.mxu0 %v981
        %2172 = vmatprep.subr.mxu0 %v978
        %2173 = vmatpush1.msra.mxu0 %v977
        %2174 = vmatprep.subr.mxu0 %v974
        %2175 = vmatpush1.msra.mxu0 %v973
        %2176 = vmatprep.subr.mxu0 %v970
        %2177 = vmatpush1.msra.mxu0 %v969
        %2178 = vmatprep.subr.mxu0 %v966
        %2179 = vmatpush1.msra.mxu0 %v965
        %2180 = vmatprep.subr.mxu0 %v962
        %2181 = vmatpush1.msra.mxu0 %v961
        %2182 = vmatprep.subr.mxu0 %v958
        %2183 = vmatpush1.msra.mxu0 %v957
        %2184 = vmatprep.subr.mxu0 0.0
        %2185 = vmatpush2.msra.mxu0 0.0
        %2186 = vmatprep.subr.mxu0 0.0
        %2187 = vmatpush2.msra.mxu0 0.0
        %2188 = vmatprep.subr.mxu0 0.0
        %2189 = vmatpush2.msra.mxu0 0.0
        %2190 = vmatprep.subr.mxu0 0.0
        %2191 = vmatpush2.msra.mxu0 0.0
        %2192 = vmatprep.subr.mxu0 0.0
        %2193 = vmatpush2.msra.mxu0 0.0
        %2194 = vmatprep.subr.mxu0 0.0
        %2195 = vmatpush2.msra.mxu0 0.0
        %2196 = vmatprep.subr.mxu0 0.0
        %2197 = vmatpush2.msra.mxu0 0.0
        %2198 = vmatprep.subr.mxu0 0.0
        %2199 = vmatpush2.msra.mxu0 0.0
        %2200 = vmatprep.subr.mxu0 0.0
        %2201 = vmatpush2.msra.mxu0 0.0
        %2202 = vmatprep.subr.mxu0 0.0
        %2203 = vmatpush2.msra.mxu0 0.0
        %2204 = vmatprep.subr.mxu0 0.0
        %2205 = vmatpush2.msra.mxu0 0.0
        %2206 = vmatprep.subr.mxu0 0.0
        %2207 = vmatpush2.msra.mxu0 0.0
        %2208 = vmatprep.subr.mxu0 0.0
        %2209 = vmatpush2.msra.mxu0 0.0
        %2210 = vmatprep.subr.mxu0 0.0
        %2211 = vmatpush2.msra.mxu0 0.0
        %2212 = vmatprep.subr.mxu0 0.0
        %2213 = vmatpush2.msra.mxu0 0.0
        %2214 = vmatprep.subr.mxu0 0.0
        %2215 = vmatpush2.msra.mxu0 0.0
        %2216 = vmatprep.mubr.f32.mxu0 0.0
        %2217 = vmatmul.mubr.f32.gmra.mxu0 %v2076
        %v2218 = vpop.f32.mrf.mxu0
        %v2219 = vadd.f32 0.0, %v2218
        %v2220 = vpop.f32.mrf.mxu0
        %v2221 = vadd.f32 0.0, %v2220
        %2222 = vdwg.mxu0
        %v2223 = vadd.f32 %v2077, %v2148
        %v2224 = vadd.f32 %v2078, %v2150
        %v2225 = vadd.f32 %v2079, %v2219
        %v2226 = vadd.f32 %v2080, %v2221
        %v2227 = vsub.f32 0.0, %v2223
        %v2228 = vsub.f32 0.0, %v2224
        %v2229 = vsub.f32 0.0, %v2225
        %v2230 = vsub.f32 0.0, %v2226
        %v2231 = vmul.f32 %v2227, 1.442695
        %v2232 = vpow.pop %v2231
        %v2233 = vmul.f32 %v2228, 1.442695
        %v2234 = vpow.pop %v2233
        %v2235 = vmul.f32 %v2229, 1.442695
        %v2236 = vpow.pop %v2235
        %v2237 = vmul.f32 %v2230, 1.442695
        %v2238 = vpow.pop %v2237
        %v2239 = vadd.f32 %v2232, 1.0
        %v2240 = vadd.f32 %v2234, 1.0
        %v2241 = vadd.f32 %v2236, 1.0
        %v2242 = vadd.f32 %v2238, 1.0
        %v2243 = vrcp.pop %v2239
        %v2244 = vrcp.pop %v2240
        %v2245 = vrcp.pop %v2241
        %v2246 = vrcp.pop %v2242
        %v2247 = vmul.f32 %v2245, 2.0
        %v2248 = vsub.f32 %v2247, 1.0
        %v2249 = vmul.f32 %v2244, %v2074
        %v2250 = vmul.f32 %v2243, %v2248
        %v2251 = vadd.f32 %v2249, %v2250
        %v2252 = vtanh.pop %v2251
        %v2253 = vmul.f32 %v2246, %v2252
        %v2254 = vld [vmem:[#allocation2 + $0xe0] sm:$0xff]
        %v2255 = vld [vmem:[#allocation2 + $0xe8] sm:$0xff]
        %v2256 = vld [vmem:[#allocation2 + $0xf0] sm:$0xff]
        %v2257 = vld [vmem:[#allocation2 + $0xf8] sm:$0xff]
        %2258 = vmatprep.subr.mxu0 %v1016
        %2259 = vmatpush1.msra.mxu0 %v1015
        %2260 = vmatprep.subr.mxu0 %v1012
        %2261 = vmatpush1.msra.mxu0 %v1011
        %2262 = vmatprep.subr.mxu0 %v1008
        %2263 = vmatpush1.msra.mxu0 %v1007
        %2264 = vmatprep.subr.mxu0 %v1004
        %2265 = vmatpush1.msra.mxu0 %v1003
        %2266 = vmatprep.subr.mxu0 %v1000
        %2267 = vmatpush1.msra.mxu0 %v999
        %2268 = vmatprep.subr.mxu0 %v996
        %2269 = vmatpush1.msra.mxu0 %v995
        %2270 = vmatprep.subr.mxu0 %v992
        %2271 = vmatpush1.msra.mxu0 %v991
        %2272 = vmatprep.subr.mxu0 %v988
        %2273 = vmatpush1.msra.mxu0 %v987
        %2274 = vmatprep.subr.mxu0 %v984
        %2275 = vmatpush1.msra.mxu0 %v983
        %2276 = vmatprep.subr.mxu0 %v980
        %2277 = vmatpush1.msra.mxu0 %v979
        %2278 = vmatprep.subr.mxu0 %v976
        %2279 = vmatpush1.msra.mxu0 %v975
        %2280 = vmatprep.subr.mxu0 %v972
        %2281 = vmatpush1.msra.mxu0 %v971
        %2282 = vmatprep.subr.mxu0 %v968
        %2283 = vmatpush1.msra.mxu0 %v967
        %2284 = vmatprep.subr.mxu0 %v964
        %2285 = vmatpush1.msra.mxu0 %v963
        %2286 = vmatprep.subr.mxu0 %v960
        %2287 = vmatpush1.msra.mxu0 %v959
        %2288 = vmatprep.subr.mxu0 %v956
        %2289 = vmatpush1.msra.mxu0 %v955
        %2290 = vmatprep.subr.mxu0 0.0
        %2291 = vmatpush2.msra.mxu0 0.0
        %2292 = vmatprep.subr.mxu0 0.0
        %2293 = vmatpush2.msra.mxu0 0.0
        %2294 = vmatprep.subr.mxu0 0.0
        %2295 = vmatpush2.msra.mxu0 0.0
        %2296 = vmatprep.subr.mxu0 0.0
        %2297 = vmatpush2.msra.mxu0 0.0
        %2298 = vmatprep.subr.mxu0 0.0
        %2299 = vmatpush2.msra.mxu0 0.0
        %2300 = vmatprep.subr.mxu0 0.0
        %2301 = vmatpush2.msra.mxu0 0.0
        %2302 = vmatprep.subr.mxu0 0.0
        %2303 = vmatpush2.msra.mxu0 0.0
        %2304 = vmatprep.subr.mxu0 0.0
        %2305 = vmatpush2.msra.mxu0 0.0
        %2306 = vmatprep.subr.mxu0 0.0
        %2307 = vmatpush2.msra.mxu0 0.0
        %2308 = vmatprep.subr.mxu0 0.0
        %2309 = vmatpush2.msra.mxu0 0.0
        %2310 = vmatprep.subr.mxu0 0.0
        %2311 = vmatpush2.msra.mxu0 0.0
        %2312 = vmatprep.subr.mxu0 0.0
        %2313 = vmatpush2.msra.mxu0 0.0
        %2314 = vmatprep.subr.mxu0 0.0
        %2315 = vmatpush2.msra.mxu0 0.0
        %2316 = vmatprep.subr.mxu0 0.0
        %2317 = vmatpush2.msra.mxu0 0.0
        %2318 = vmatprep.subr.mxu0 0.0
        %2319 = vmatpush2.msra.mxu0 0.0
        %2320 = vmatprep.subr.mxu0 0.0
        %2321 = vmatpush2.msra.mxu0 0.0
        %2322 = vmatprep.mubr.f32.mxu0 0.0
        %2323 = vmatmul.mubr.f32.gmra.mxu0 %v2253
        %v2324 = vpop.f32.mrf.mxu0
        %v2325 = vadd.f32 0.0, %v2324
        %v2326 = vpop.f32.mrf.mxu0
        %v2327 = vadd.f32 0.0, %v2326
        %2328 = vdwg.mxu0
        %2329 = vmatprep.subr.mxu0 %v1018
        %2330 = vmatpush1.msra.mxu0 %v1017
        %2331 = vmatprep.subr.mxu0 %v1014
        %2332 = vmatpush1.msra.mxu0 %v1013
        %2333 = vmatprep.subr.mxu0 %v1010
        %2334 = vmatpush1.msra.mxu0 %v1009
        %2335 = vmatprep.subr.mxu0 %v1006
        %2336 = vmatpush1.msra.mxu0 %v1005
        %2337 = vmatprep.subr.mxu0 %v1002
        %2338 = vmatpush1.msra.mxu0 %v1001
        %2339 = vmatprep.subr.mxu0 %v998
        %2340 = vmatpush1.msra.mxu0 %v997
        %2341 = vmatprep.subr.mxu0 %v994
        %2342 = vmatpush1.msra.mxu0 %v993
        %2343 = vmatprep.subr.mxu0 %v990
        %2344 = vmatpush1.msra.mxu0 %v989
        %2345 = vmatprep.subr.mxu0 %v986
        %2346 = vmatpush1.msra.mxu0 %v985
        %2347 = vmatprep.subr.mxu0 %v982
        %2348 = vmatpush1.msra.mxu0 %v981
        %2349 = vmatprep.subr.mxu0 %v978
        %2350 = vmatpush1.msra.mxu0 %v977
        %2351 = vmatprep.subr.mxu0 %v974
        %2352 = vmatpush1.msra.mxu0 %v973
        %2353 = vmatprep.subr.mxu0 %v970
        %2354 = vmatpush1.msra.mxu0 %v969
        %2355 = vmatprep.subr.mxu0 %v966
        %2356 = vmatpush1.msra.mxu0 %v965
        %2357 = vmatprep.subr.mxu0 %v962
        %2358 = vmatpush1.msra.mxu0 %v961
        %2359 = vmatprep.subr.mxu0 %v958
        %2360 = vmatpush1.msra.mxu0 %v957
        %2361 = vmatprep.subr.mxu0 0.0
        %2362 = vmatpush2.msra.mxu0 0.0
        %2363 = vmatprep.subr.mxu0 0.0
        %2364 = vmatpush2.msra.mxu0 0.0
        %2365 = vmatprep.subr.mxu0 0.0
        %2366 = vmatpush2.msra.mxu0 0.0
        %2367 = vmatprep.subr.mxu0 0.0
        %2368 = vmatpush2.msra.mxu0 0.0
        %2369 = vmatprep.subr.mxu0 0.0
        %2370 = vmatpush2.msra.mxu0 0.0
        %2371 = vmatprep.subr.mxu0 0.0
        %2372 = vmatpush2.msra.mxu0 0.0
        %2373 = vmatprep.subr.mxu0 0.0
        %2374 = vmatpush2.msra.mxu0 0.0
        %2375 = vmatprep.subr.mxu0 0.0
        %2376 = vmatpush2.msra.mxu0 0.0
        %2377 = vmatprep.subr.mxu0 0.0
        %2378 = vmatpush2.msra.mxu0 0.0
        %2379 = vmatprep.subr.mxu0 0.0
        %2380 = vmatpush2.msra.mxu0 0.0
        %2381 = vmatprep.subr.mxu0 0.0
        %2382 = vmatpush2.msra.mxu0 0.0
        %2383 = vmatprep.subr.mxu0 0.0
        %2384 = vmatpush2.msra.mxu0 0.0
        %2385 = vmatprep.subr.mxu0 0.0
        %2386 = vmatpush2.msra.mxu0 0.0
        %2387 = vmatprep.subr.mxu0 0.0
        %2388 = vmatpush2.msra.mxu0 0.0
        %2389 = vmatprep.subr.mxu0 0.0
        %2390 = vmatpush2.msra.mxu0 0.0
        %2391 = vmatprep.subr.mxu0 0.0
        %2392 = vmatpush2.msra.mxu0 0.0
        %2393 = vmatprep.mubr.f32.mxu0 0.0
        %2394 = vmatmul.mubr.f32.gmra.mxu0 %v2253
        %v2395 = vpop.f32.mrf.mxu0
        %v2396 = vadd.f32 0.0, %v2395
        %v2397 = vpop.f32.mrf.mxu0
        %v2398 = vadd.f32 0.0, %v2397
        %2399 = vdwg.mxu0
        %v2400 = vadd.f32 %v2254, %v2325
        %v2401 = vadd.f32 %v2255, %v2327
        %v2402 = vadd.f32 %v2256, %v2396
        %v2403 = vadd.f32 %v2257, %v2398
        %v2404 = vsub.f32 0.0, %v2400
        %v2405 = vsub.f32 0.0, %v2401
        %v2406 = vsub.f32 0.0, %v2402
        %v2407 = vsub.f32 0.0, %v2403
        %v2408 = vmul.f32 %v2404, 1.442695
        %v2409 = vpow.pop %v2408
        %v2410 = vmul.f32 %v2405, 1.442695
        %v2411 = vpow.pop %v2410
        %v2412 = vmul.f32 %v2406, 1.442695
        %v2413 = vpow.pop %v2412
        %v2414 = vmul.f32 %v2407, 1.442695
        %v2415 = vpow.pop %v2414
        %v2416 = vadd.f32 %v2409, 1.0
        %v2417 = vadd.f32 %v2411, 1.0
        %v2418 = vadd.f32 %v2413, 1.0
        %v2419 = vadd.f32 %v2415, 1.0
        %v2420 = vrcp.pop %v2416
        %v2421 = vrcp.pop %v2417
        %v2422 = vrcp.pop %v2418
        %v2423 = vrcp.pop %v2419
        %v2424 = vmul.f32 %v2422, 2.0
        %v2425 = vsub.f32 %v2424, 1.0
        %v2426 = vmul.f32 %v2421, %v2251
        %v2427 = vmul.f32 %v2420, %v2425
        %v2428 = vadd.f32 %v2426, %v2427
        %v2429 = vtanh.pop %v2428
        %v2430 = vmul.f32 %v2423, %v2429
        %v2431 = vld [vmem:[#allocation2 + $0x100] sm:$0xff]
        %v2432 = vld [vmem:[#allocation2 + $0x108] sm:$0xff]
        %v2433 = vld [vmem:[#allocation2 + $0x110] sm:$0xff]
        %v2434 = vld [vmem:[#allocation2 + $0x118] sm:$0xff]
        %2435 = vmatprep.subr.mxu0 %v1016
        %2436 = vmatpush1.msra.mxu0 %v1015
        %2437 = vmatprep.subr.mxu0 %v1012
        %2438 = vmatpush1.msra.mxu0 %v1011
        %2439 = vmatprep.subr.mxu0 %v1008
        %2440 = vmatpush1.msra.mxu0 %v1007
        %2441 = vmatprep.subr.mxu0 %v1004
        %2442 = vmatpush1.msra.mxu0 %v1003
        %2443 = vmatprep.subr.mxu0 %v1000
        %2444 = vmatpush1.msra.mxu0 %v999
        %2445 = vmatprep.subr.mxu0 %v996
        %2446 = vmatpush1.msra.mxu0 %v995
        %2447 = vmatprep.subr.mxu0 %v992
        %2448 = vmatpush1.msra.mxu0 %v991
        %2449 = vmatprep.subr.mxu0 %v988
        %2450 = vmatpush1.msra.mxu0 %v987
        %2451 = vmatprep.subr.mxu0 %v984
        %2452 = vmatpush1.msra.mxu0 %v983
        %2453 = vmatprep.subr.mxu0 %v980
        %2454 = vmatpush1.msra.mxu0 %v979
        %2455 = vmatprep.subr.mxu0 %v976
        %2456 = vmatpush1.msra.mxu0 %v975
        %2457 = vmatprep.subr.mxu0 %v972
        %2458 = vmatpush1.msra.mxu0 %v971
        %2459 = vmatprep.subr.mxu0 %v968
        %2460 = vmatpush1.msra.mxu0 %v967
        %2461 = vmatprep.subr.mxu0 %v964
        %2462 = vmatpush1.msra.mxu0 %v963
        %2463 = vmatprep.subr.mxu0 %v960
        %2464 = vmatpush1.msra.mxu0 %v959
        %2465 = vmatprep.subr.mxu0 %v956
        %2466 = vmatpush1.msra.mxu0 %v955
        %2467 = vmatprep.subr.mxu0 0.0
        %2468 = vmatpush2.msra.mxu0 0.0
        %2469 = vmatprep.subr.mxu0 0.0
        %2470 = vmatpush2.msra.mxu0 0.0
        %2471 = vmatprep.subr.mxu0 0.0
        %2472 = vmatpush2.msra.mxu0 0.0
        %2473 = vmatprep.subr.mxu0 0.0
        %2474 = vmatpush2.msra.mxu0 0.0
        %2475 = vmatprep.subr.mxu0 0.0
        %2476 = vmatpush2.msra.mxu0 0.0
        %2477 = vmatprep.subr.mxu0 0.0
        %2478 = vmatpush2.msra.mxu0 0.0
        %2479 = vmatprep.subr.mxu0 0.0
        %2480 = vmatpush2.msra.mxu0 0.0
        %2481 = vmatprep.subr.mxu0 0.0
        %2482 = vmatpush2.msra.mxu0 0.0
        %2483 = vmatprep.subr.mxu0 0.0
        %2484 = vmatpush2.msra.mxu0 0.0
        %2485 = vmatprep.subr.mxu0 0.0
        %2486 = vmatpush2.msra.mxu0 0.0
        %2487 = vmatprep.subr.mxu0 0.0
        %2488 = vmatpush2.msra.mxu0 0.0
        %2489 = vmatprep.subr.mxu0 0.0
        %2490 = vmatpush2.msra.mxu0 0.0
        %2491 = vmatprep.subr.mxu0 0.0
        %2492 = vmatpush2.msra.mxu0 0.0
        %2493 = vmatprep.subr.mxu0 0.0
        %2494 = vmatpush2.msra.mxu0 0.0
        %2495 = vmatprep.subr.mxu0 0.0
        %2496 = vmatpush2.msra.mxu0 0.0
        %2497 = vmatprep.subr.mxu0 0.0
        %2498 = vmatpush2.msra.mxu0 0.0
        %2499 = vmatprep.mubr.f32.mxu0 0.0
        %2500 = vmatmul.mubr.f32.gmra.mxu0 %v2430
        %v2501 = vpop.f32.mrf.mxu0
        %v2502 = vadd.f32 0.0, %v2501
        %v2503 = vpop.f32.mrf.mxu0
        %v2504 = vadd.f32 0.0, %v2503
        %2505 = vdwg.mxu0
        %2506 = vmatprep.subr.mxu0 %v1018
        %2507 = vmatpush1.msra.mxu0 %v1017
        %2508 = vmatprep.subr.mxu0 %v1014
        %2509 = vmatpush1.msra.mxu0 %v1013
        %2510 = vmatprep.subr.mxu0 %v1010
        %2511 = vmatpush1.msra.mxu0 %v1009
        %2512 = vmatprep.subr.mxu0 %v1006
        %2513 = vmatpush1.msra.mxu0 %v1005
        %2514 = vmatprep.subr.mxu0 %v1002
        %2515 = vmatpush1.msra.mxu0 %v1001
        %2516 = vmatprep.subr.mxu0 %v998
        %2517 = vmatpush1.msra.mxu0 %v997
        %2518 = vmatprep.subr.mxu0 %v994
        %2519 = vmatpush1.msra.mxu0 %v993
        %2520 = vmatprep.subr.mxu0 %v990
        %2521 = vmatpush1.msra.mxu0 %v989
        %2522 = vmatprep.subr.mxu0 %v986
        %2523 = vmatpush1.msra.mxu0 %v985
        %2524 = vmatprep.subr.mxu0 %v982
        %2525 = vmatpush1.msra.mxu0 %v981
        %2526 = vmatprep.subr.mxu0 %v978
        %2527 = vmatpush1.msra.mxu0 %v977
        %2528 = vmatprep.subr.mxu0 %v974
        %2529 = vmatpush1.msra.mxu0 %v973
        %2530 = vmatprep.subr.mxu0 %v970
        %2531 = vmatpush1.msra.mxu0 %v969
        %2532 = vmatprep.subr.mxu0 %v966
        %2533 = vmatpush1.msra.mxu0 %v965
        %2534 = vmatprep.subr.mxu0 %v962
        %2535 = vmatpush1.msra.mxu0 %v961
        %2536 = vmatprep.subr.mxu0 %v958
        %2537 = vmatpush1.msra.mxu0 %v957
        %2538 = vmatprep.subr.mxu0 0.0
        %2539 = vmatpush2.msra.mxu0 0.0
        %2540 = vmatprep.subr.mxu0 0.0
        %2541 = vmatpush2.msra.mxu0 0.0
        %2542 = vmatprep.subr.mxu0 0.0
        %2543 = vmatpush2.msra.mxu0 0.0
        %2544 = vmatprep.subr.mxu0 0.0
        %2545 = vmatpush2.msra.mxu0 0.0
        %2546 = vmatprep.subr.mxu0 0.0
        %2547 = vmatpush2.msra.mxu0 0.0
        %2548 = vmatprep.subr.mxu0 0.0
        %2549 = vmatpush2.msra.mxu0 0.0
        %2550 = vmatprep.subr.mxu0 0.0
        %2551 = vmatpush2.msra.mxu0 0.0
        %2552 = vmatprep.subr.mxu0 0.0
        %2553 = vmatpush2.msra.mxu0 0.0
        %2554 = vmatprep.subr.mxu0 0.0
        %2555 = vmatpush2.msra.mxu0 0.0
        %2556 = vmatprep.subr.mxu0 0.0
        %2557 = vmatpush2.msra.mxu0 0.0
        %2558 = vmatprep.subr.mxu0 0.0
        %2559 = vmatpush2.msra.mxu0 0.0
        %2560 = vmatprep.subr.mxu0 0.0
        %2561 = vmatpush2.msra.mxu0 0.0
        %2562 = vmatprep.subr.mxu0 0.0
        %2563 = vmatpush2.msra.mxu0 0.0
        %2564 = vmatprep.subr.mxu0 0.0
        %2565 = vmatpush2.msra.mxu0 0.0
        %2566 = vmatprep.subr.mxu0 0.0
        %2567 = vmatpush2.msra.mxu0 0.0
        %2568 = vmatprep.subr.mxu0 0.0
        %2569 = vmatpush2.msra.mxu0 0.0
        %2570 = vmatprep.mubr.f32.mxu0 0.0
        %2571 = vmatmul.mubr.f32.gmra.mxu0 %v2430
        %v2572 = vpop.f32.mrf.mxu0
        %v2573 = vadd.f32 0.0, %v2572
        %v2574 = vpop.f32.mrf.mxu0
        %v2575 = vadd.f32 0.0, %v2574
        %2576 = vdwg.mxu0
        %v2577 = vadd.f32 %v2431, %v2502
        %v2578 = vadd.f32 %v2432, %v2504
        %v2579 = vadd.f32 %v2433, %v2573
        %v2580 = vadd.f32 %v2434, %v2575
        %v2581 = vsub.f32 0.0, %v2577
        %v2582 = vsub.f32 0.0, %v2578
        %v2583 = vsub.f32 0.0, %v2579
        %v2584 = vsub.f32 0.0, %v2580
        %v2585 = vmul.f32 %v2581, 1.442695
        %v2586 = vpow.pop %v2585
        %v2587 = vmul.f32 %v2582, 1.442695
        %v2588 = vpow.pop %v2587
        %v2589 = vmul.f32 %v2583, 1.442695
        %v2590 = vpow.pop %v2589
        %v2591 = vmul.f32 %v2584, 1.442695
        %v2592 = vpow.pop %v2591
        %v2593 = vadd.f32 %v2586, 1.0
        %v2594 = vadd.f32 %v2588, 1.0
        %v2595 = vadd.f32 %v2590, 1.0
        %v2596 = vadd.f32 %v2592, 1.0
        %v2597 = vrcp.pop %v2593
        %v2598 = vrcp.pop %v2594
        %v2599 = vrcp.pop %v2595
        %v2600 = vrcp.pop %v2596
        %v2601 = vmul.f32 %v2599, 2.0
        %v2602 = vsub.f32 %v2601, 1.0
        %v2603 = vmul.f32 %v2598, %v2428
        %v2604 = vmul.f32 %v2597, %v2602
        %v2605 = vadd.f32 %v2603, %v2604
        %v2606 = vtanh.pop %v2605
        %v2607 = vmul.f32 %v2600, %v2606
        %v2608 = vld [vmem:[#allocation2 + $0x120] sm:$0xff]
        %v2609 = vld [vmem:[#allocation2 + $0x128] sm:$0xff]
        %v2610 = vld [vmem:[#allocation2 + $0x130] sm:$0xff]
        %v2611 = vld [vmem:[#allocation2 + $0x138] sm:$0xff]
        %2612 = vmatprep.subr.mxu0 %v1016
        %2613 = vmatpush1.msra.mxu0 %v1015
        %2614 = vmatprep.subr.mxu0 %v1012
        %2615 = vmatpush1.msra.mxu0 %v1011
        %2616 = vmatprep.subr.mxu0 %v1008
        %2617 = vmatpush1.msra.mxu0 %v1007
        %2618 = vmatprep.subr.mxu0 %v1004
        %2619 = vmatpush1.msra.mxu0 %v1003
        %2620 = vmatprep.subr.mxu0 %v1000
        %2621 = vmatpush1.msra.mxu0 %v999
        %2622 = vmatprep.subr.mxu0 %v996
        %2623 = vmatpush1.msra.mxu0 %v995
        %2624 = vmatprep.subr.mxu0 %v992
        %2625 = vmatpush1.msra.mxu0 %v991
        %2626 = vmatprep.subr.mxu0 %v988
        %2627 = vmatpush1.msra.mxu0 %v987
        %2628 = vmatprep.subr.mxu0 %v984
        %2629 = vmatpush1.msra.mxu0 %v983
        %2630 = vmatprep.subr.mxu0 %v980
        %2631 = vmatpush1.msra.mxu0 %v979
        %2632 = vmatprep.subr.mxu0 %v976
        %2633 = vmatpush1.msra.mxu0 %v975
        %2634 = vmatprep.subr.mxu0 %v972
        %2635 = vmatpush1.msra.mxu0 %v971
        %2636 = vmatprep.subr.mxu0 %v968
        %2637 = vmatpush1.msra.mxu0 %v967
        %2638 = vmatprep.subr.mxu0 %v964
        %2639 = vmatpush1.msra.mxu0 %v963
        %2640 = vmatprep.subr.mxu0 %v960
        %2641 = vmatpush1.msra.mxu0 %v959
        %2642 = vmatprep.subr.mxu0 %v956
        %2643 = vmatpush1.msra.mxu0 %v955
        %2644 = vmatprep.subr.mxu0 0.0
        %2645 = vmatpush2.msra.mxu0 0.0
        %2646 = vmatprep.subr.mxu0 0.0
        %2647 = vmatpush2.msra.mxu0 0.0
        %2648 = vmatprep.subr.mxu0 0.0
        %2649 = vmatpush2.msra.mxu0 0.0
        %2650 = vmatprep.subr.mxu0 0.0
        %2651 = vmatpush2.msra.mxu0 0.0
        %2652 = vmatprep.subr.mxu0 0.0
        %2653 = vmatpush2.msra.mxu0 0.0
        %2654 = vmatprep.subr.mxu0 0.0
        %2655 = vmatpush2.msra.mxu0 0.0
        %2656 = vmatprep.subr.mxu0 0.0
        %2657 = vmatpush2.msra.mxu0 0.0
        %2658 = vmatprep.subr.mxu0 0.0
        %2659 = vmatpush2.msra.mxu0 0.0
        %2660 = vmatprep.subr.mxu0 0.0
        %2661 = vmatpush2.msra.mxu0 0.0
        %2662 = vmatprep.subr.mxu0 0.0
        %2663 = vmatpush2.msra.mxu0 0.0
        %2664 = vmatprep.subr.mxu0 0.0
        %2665 = vmatpush2.msra.mxu0 0.0
        %2666 = vmatprep.subr.mxu0 0.0
        %2667 = vmatpush2.msra.mxu0 0.0
        %2668 = vmatprep.subr.mxu0 0.0
        %2669 = vmatpush2.msra.mxu0 0.0
        %2670 = vmatprep.subr.mxu0 0.0
        %2671 = vmatpush2.msra.mxu0 0.0
        %2672 = vmatprep.subr.mxu0 0.0
        %2673 = vmatpush2.msra.mxu0 0.0
        %2674 = vmatprep.subr.mxu0 0.0
        %2675 = vmatpush2.msra.mxu0 0.0
        %2676 = vmatprep.mubr.f32.mxu0 0.0
        %2677 = vmatmul.mubr.f32.gmra.mxu0 %v2607
        %v2678 = vpop.f32.mrf.mxu0
        %v2679 = vadd.f32 0.0, %v2678
        %v2680 = vpop.f32.mrf.mxu0
        %v2681 = vadd.f32 0.0, %v2680
        %2682 = vdwg.mxu0
        %2683 = vmatprep.subr.mxu0 %v1018
        %2684 = vmatpush1.msra.mxu0 %v1017
        %2685 = vmatprep.subr.mxu0 %v1014
        %2686 = vmatpush1.msra.mxu0 %v1013
        %2687 = vmatprep.subr.mxu0 %v1010
        %2688 = vmatpush1.msra.mxu0 %v1009
        %2689 = vmatprep.subr.mxu0 %v1006
        %2690 = vmatpush1.msra.mxu0 %v1005
        %2691 = vmatprep.subr.mxu0 %v1002
        %2692 = vmatpush1.msra.mxu0 %v1001
        %2693 = vmatprep.subr.mxu0 %v998
        %2694 = vmatpush1.msra.mxu0 %v997
        %2695 = vmatprep.subr.mxu0 %v994
        %2696 = vmatpush1.msra.mxu0 %v993
        %2697 = vmatprep.subr.mxu0 %v990
        %2698 = vmatpush1.msra.mxu0 %v989
        %2699 = vmatprep.subr.mxu0 %v986
        %2700 = vmatpush1.msra.mxu0 %v985
        %2701 = vmatprep.subr.mxu0 %v982
        %2702 = vmatpush1.msra.mxu0 %v981
        %2703 = vmatprep.subr.mxu0 %v978
        %2704 = vmatpush1.msra.mxu0 %v977
        %2705 = vmatprep.subr.mxu0 %v974
        %2706 = vmatpush1.msra.mxu0 %v973
        %2707 = vmatprep.subr.mxu0 %v970
        %2708 = vmatpush1.msra.mxu0 %v969
        %2709 = vmatprep.subr.mxu0 %v966
        %2710 = vmatpush1.msra.mxu0 %v965
        %2711 = vmatprep.subr.mxu0 %v962
        %2712 = vmatpush1.msra.mxu0 %v961
        %2713 = vmatprep.subr.mxu0 %v958
        %2714 = vmatpush1.msra.mxu0 %v957
        %2715 = vmatprep.subr.mxu0 0.0
        %2716 = vmatpush2.msra.mxu0 0.0
        %2717 = vmatprep.subr.mxu0 0.0
        %2718 = vmatpush2.msra.mxu0 0.0
        %2719 = vmatprep.subr.mxu0 0.0
        %2720 = vmatpush2.msra.mxu0 0.0
        %2721 = vmatprep.subr.mxu0 0.0
        %2722 = vmatpush2.msra.mxu0 0.0
        %2723 = vmatprep.subr.mxu0 0.0
        %2724 = vmatpush2.msra.mxu0 0.0
        %2725 = vmatprep.subr.mxu0 0.0
        %2726 = vmatpush2.msra.mxu0 0.0
        %2727 = vmatprep.subr.mxu0 0.0
        %2728 = vmatpush2.msra.mxu0 0.0
        %2729 = vmatprep.subr.mxu0 0.0
        %2730 = vmatpush2.msra.mxu0 0.0
        %2731 = vmatprep.subr.mxu0 0.0
        %2732 = vmatpush2.msra.mxu0 0.0
        %2733 = vmatprep.subr.mxu0 0.0
        %2734 = vmatpush2.msra.mxu0 0.0
        %2735 = vmatprep.subr.mxu0 0.0
        %2736 = vmatpush2.msra.mxu0 0.0
        %2737 = vmatprep.subr.mxu0 0.0
        %2738 = vmatpush2.msra.mxu0 0.0
        %2739 = vmatprep.subr.mxu0 0.0
        %2740 = vmatpush2.msra.mxu0 0.0
        %2741 = vmatprep.subr.mxu0 0.0
        %2742 = vmatpush2.msra.mxu0 0.0
        %2743 = vmatprep.subr.mxu0 0.0
        %2744 = vmatpush2.msra.mxu0 0.0
        %2745 = vmatprep.subr.mxu0 0.0
        %2746 = vmatpush2.msra.mxu0 0.0
        %2747 = vmatprep.mubr.f32.mxu0 0.0
        %2748 = vmatmul.mubr.f32.gmra.mxu0 %v2607
        %v2749 = vpop.f32.mrf.mxu0
        %v2750 = vadd.f32 0.0, %v2749
        %v2751 = vpop.f32.mrf.mxu0
        %v2752 = vadd.f32 0.0, %v2751
        %2753 = vdwg.mxu0
        %v2754 = vadd.f32 %v2608, %v2679
        %v2755 = vadd.f32 %v2609, %v2681
        %v2756 = vadd.f32 %v2610, %v2750
        %v2757 = vadd.f32 %v2611, %v2752
        %v2758 = vsub.f32 0.0, %v2754
        %v2759 = vsub.f32 0.0, %v2755
        %v2760 = vsub.f32 0.0, %v2756
        %v2761 = vsub.f32 0.0, %v2757
        %v2762 = vmul.f32 %v2758, 1.442695
        %v2763 = vpow.pop %v2762
        %v2764 = vmul.f32 %v2759, 1.442695
        %v2765 = vpow.pop %v2764
        %v2766 = vmul.f32 %v2760, 1.442695
        %v2767 = vpow.pop %v2766
        %v2768 = vmul.f32 %v2761, 1.442695
        %v2769 = vpow.pop %v2768
        %v2770 = vadd.f32 %v2763, 1.0
        %v2771 = vadd.f32 %v2765, 1.0
        %v2772 = vadd.f32 %v2767, 1.0
        %v2773 = vadd.f32 %v2769, 1.0
        %v2774 = vrcp.pop %v2770
        %v2775 = vrcp.pop %v2771
        %v2776 = vrcp.pop %v2772
        %v2777 = vrcp.pop %v2773
        %v2778 = vmul.f32 %v2776, 2.0
        %v2779 = vsub.f32 %v2778, 1.0
        %v2780 = vmul.f32 %v2775, %v2605
        %v2781 = vmul.f32 %v2774, %v2779
        %v2782 = vadd.f32 %v2780, %v2781
        %v2783 = vtanh.pop %v2782
        %v2784 = vmul.f32 %v2777, %v2783
        %v2785 = vld [vmem:[#allocation2 + $0x140] sm:$0xff]
        %v2786 = vld [vmem:[#allocation2 + $0x148] sm:$0xff]
        %v2787 = vld [vmem:[#allocation2 + $0x150] sm:$0xff]
        %v2788 = vld [vmem:[#allocation2 + $0x158] sm:$0xff]
        %2789 = vmatprep.subr.mxu0 %v1016
        %2790 = vmatpush1.msra.mxu0 %v1015
        %2791 = vmatprep.subr.mxu0 %v1012
        %2792 = vmatpush1.msra.mxu0 %v1011
        %2793 = vmatprep.subr.mxu0 %v1008
        %2794 = vmatpush1.msra.mxu0 %v1007
        %2795 = vmatprep.subr.mxu0 %v1004
        %2796 = vmatpush1.msra.mxu0 %v1003
        %2797 = vmatprep.subr.mxu0 %v1000
        %2798 = vmatpush1.msra.mxu0 %v999
        %2799 = vmatprep.subr.mxu0 %v996
        %2800 = vmatpush1.msra.mxu0 %v995
        %2801 = vmatprep.subr.mxu0 %v992
        %2802 = vmatpush1.msra.mxu0 %v991
        %2803 = vmatprep.subr.mxu0 %v988
        %2804 = vmatpush1.msra.mxu0 %v987
        %2805 = vmatprep.subr.mxu0 %v984
        %2806 = vmatpush1.msra.mxu0 %v983
        %2807 = vmatprep.subr.mxu0 %v980
        %2808 = vmatpush1.msra.mxu0 %v979
        %2809 = vmatprep.subr.mxu0 %v976
        %2810 = vmatpush1.msra.mxu0 %v975
        %2811 = vmatprep.subr.mxu0 %v972
        %2812 = vmatpush1.msra.mxu0 %v971
        %2813 = vmatprep.subr.mxu0 %v968
        %2814 = vmatpush1.msra.mxu0 %v967
        %2815 = vmatprep.subr.mxu0 %v964
        %2816 = vmatpush1.msra.mxu0 %v963
        %2817 = vmatprep.subr.mxu0 %v960
        %2818 = vmatpush1.msra.mxu0 %v959
        %2819 = vmatprep.subr.mxu0 %v956
        %2820 = vmatpush1.msra.mxu0 %v955
        %2821 = vmatprep.subr.mxu0 0.0
        %2822 = vmatpush2.msra.mxu0 0.0
        %2823 = vmatprep.subr.mxu0 0.0
        %2824 = vmatpush2.msra.mxu0 0.0
        %2825 = vmatprep.subr.mxu0 0.0
        %2826 = vmatpush2.msra.mxu0 0.0
        %2827 = vmatprep.subr.mxu0 0.0
        %2828 = vmatpush2.msra.mxu0 0.0
        %2829 = vmatprep.subr.mxu0 0.0
        %2830 = vmatpush2.msra.mxu0 0.0
        %2831 = vmatprep.subr.mxu0 0.0
        %2832 = vmatpush2.msra.mxu0 0.0
        %2833 = vmatprep.subr.mxu0 0.0
        %2834 = vmatpush2.msra.mxu0 0.0
        %2835 = vmatprep.subr.mxu0 0.0
        %2836 = vmatpush2.msra.mxu0 0.0
        %2837 = vmatprep.subr.mxu0 0.0
        %2838 = vmatpush2.msra.mxu0 0.0
        %2839 = vmatprep.subr.mxu0 0.0
        %2840 = vmatpush2.msra.mxu0 0.0
        %2841 = vmatprep.subr.mxu0 0.0
        %2842 = vmatpush2.msra.mxu0 0.0
        %2843 = vmatprep.subr.mxu0 0.0
        %2844 = vmatpush2.msra.mxu0 0.0
        %2845 = vmatprep.subr.mxu0 0.0
        %2846 = vmatpush2.msra.mxu0 0.0
        %2847 = vmatprep.subr.mxu0 0.0
        %2848 = vmatpush2.msra.mxu0 0.0
        %2849 = vmatprep.subr.mxu0 0.0
        %2850 = vmatpush2.msra.mxu0 0.0
        %2851 = vmatprep.subr.mxu0 0.0
        %2852 = vmatpush2.msra.mxu0 0.0
        %2853 = vmatprep.mubr.f32.mxu0 0.0
        %2854 = vmatmul.mubr.f32.gmra.mxu0 %v2784
        %v2855 = vpop.f32.mrf.mxu0
        %v2856 = vadd.f32 0.0, %v2855
        %v2857 = vpop.f32.mrf.mxu0
        %v2858 = vadd.f32 0.0, %v2857
        %2859 = vdwg.mxu0
        %2860 = vmatprep.subr.mxu0 %v1018
        %2861 = vmatpush1.msra.mxu0 %v1017
        %2862 = vmatprep.subr.mxu0 %v1014
        %2863 = vmatpush1.msra.mxu0 %v1013
        %2864 = vmatprep.subr.mxu0 %v1010
        %2865 = vmatpush1.msra.mxu0 %v1009
        %2866 = vmatprep.subr.mxu0 %v1006
        %2867 = vmatpush1.msra.mxu0 %v1005
        %2868 = vmatprep.subr.mxu0 %v1002
        %2869 = vmatpush1.msra.mxu0 %v1001
        %2870 = vmatprep.subr.mxu0 %v998
        %2871 = vmatpush1.msra.mxu0 %v997
        %2872 = vmatprep.subr.mxu0 %v994
        %2873 = vmatpush1.msra.mxu0 %v993
        %2874 = vmatprep.subr.mxu0 %v990
        %2875 = vmatpush1.msra.mxu0 %v989
        %2876 = vmatprep.subr.mxu0 %v986
        %2877 = vmatpush1.msra.mxu0 %v985
        %2878 = vmatprep.subr.mxu0 %v982
        %2879 = vmatpush1.msra.mxu0 %v981
        %2880 = vmatprep.subr.mxu0 %v978
        %2881 = vmatpush1.msra.mxu0 %v977
        %2882 = vmatprep.subr.mxu0 %v974
        %2883 = vmatpush1.msra.mxu0 %v973
        %2884 = vmatprep.subr.mxu0 %v970
        %2885 = vmatpush1.msra.mxu0 %v969
        %2886 = vmatprep.subr.mxu0 %v966
        %2887 = vmatpush1.msra.mxu0 %v965
        %2888 = vmatprep.subr.mxu0 %v962
        %2889 = vmatpush1.msra.mxu0 %v961
        %2890 = vmatprep.subr.mxu0 %v958
        %2891 = vmatpush1.msra.mxu0 %v957
        %2892 = vmatprep.subr.mxu0 0.0
        %2893 = vmatpush2.msra.mxu0 0.0
        %2894 = vmatprep.subr.mxu0 0.0
        %2895 = vmatpush2.msra.mxu0 0.0
        %2896 = vmatprep.subr.mxu0 0.0
        %2897 = vmatpush2.msra.mxu0 0.0
        %2898 = vmatprep.subr.mxu0 0.0
        %2899 = vmatpush2.msra.mxu0 0.0
        %2900 = vmatprep.subr.mxu0 0.0
        %2901 = vmatpush2.msra.mxu0 0.0
        %2902 = vmatprep.subr.mxu0 0.0
        %2903 = vmatpush2.msra.mxu0 0.0
        %2904 = vmatprep.subr.mxu0 0.0
        %2905 = vmatpush2.msra.mxu0 0.0
        %2906 = vmatprep.subr.mxu0 0.0
        %2907 = vmatpush2.msra.mxu0 0.0
        %2908 = vmatprep.subr.mxu0 0.0
        %2909 = vmatpush2.msra.mxu0 0.0
        %2910 = vmatprep.subr.mxu0 0.0
        %2911 = vmatpush2.msra.mxu0 0.0
        %2912 = vmatprep.subr.mxu0 0.0
        %2913 = vmatpush2.msra.mxu0 0.0
        %2914 = vmatprep.subr.mxu0 0.0
        %2915 = vmatpush2.msra.mxu0 0.0
        %2916 = vmatprep.subr.mxu0 0.0
        %2917 = vmatpush2.msra.mxu0 0.0
        %2918 = vmatprep.subr.mxu0 0.0
        %2919 = vmatpush2.msra.mxu0 0.0
        %2920 = vmatprep.subr.mxu0 0.0
        %2921 = vmatpush2.msra.mxu0 0.0
        %2922 = vmatprep.subr.mxu0 0.0
        %2923 = vmatpush2.msra.mxu0 0.0
        %2924 = vmatprep.mubr.f32.mxu0 0.0
        %2925 = vmatmul.mubr.f32.gmra.mxu0 %v2784
        %v2926 = vpop.f32.mrf.mxu0
        %v2927 = vadd.f32 0.0, %v2926
        %v2928 = vpop.f32.mrf.mxu0
        %v2929 = vadd.f32 0.0, %v2928
        %2930 = vdwg.mxu0
        %v2931 = vadd.f32 %v2785, %v2856
        %v2932 = vadd.f32 %v2786, %v2858
        %v2933 = vadd.f32 %v2787, %v2927
        %v2934 = vadd.f32 %v2788, %v2929
        %v2935 = vsub.f32 0.0, %v2931
        %v2936 = vsub.f32 0.0, %v2932
        %v2937 = vsub.f32 0.0, %v2933
        %v2938 = vsub.f32 0.0, %v2934
        %v2939 = vmul.f32 %v2935, 1.442695
        %v2940 = vpow.pop %v2939
        %v2941 = vmul.f32 %v2936, 1.442695
        %v2942 = vpow.pop %v2941
        %v2943 = vmul.f32 %v2937, 1.442695
        %v2944 = vpow.pop %v2943
        %v2945 = vmul.f32 %v2938, 1.442695
        %v2946 = vpow.pop %v2945
        %v2947 = vadd.f32 %v2940, 1.0
        %v2948 = vadd.f32 %v2942, 1.0
        %v2949 = vadd.f32 %v2944, 1.0
        %v2950 = vadd.f32 %v2946, 1.0
        %v2951 = vrcp.pop %v2947
        %v2952 = vrcp.pop %v2948
        %v2953 = vrcp.pop %v2949
        %v2954 = vrcp.pop %v2950
        %v2955 = vmul.f32 %v2953, 2.0
        %v2956 = vsub.f32 %v2955, 1.0
        %v2957 = vmul.f32 %v2952, %v2782
        %v2958 = vmul.f32 %v2951, %v2956
        %v2959 = vadd.f32 %v2957, %v2958
        %v2960 = vtanh.pop %v2959
        %v2961 = vmul.f32 %v2954, %v2960
        %v2962 = vld [vmem:[#allocation2 + $0x160] sm:$0xff]
        %v2963 = vld [vmem:[#allocation2 + $0x168] sm:$0xff]
        %v2964 = vld [vmem:[#allocation2 + $0x170] sm:$0xff]
        %v2965 = vld [vmem:[#allocation2 + $0x178] sm:$0xff]
        %2966 = vmatprep.subr.mxu0 %v1016
        %2967 = vmatpush1.msra.mxu0 %v1015
        %2968 = vmatprep.subr.mxu0 %v1012
        %2969 = vmatpush1.msra.mxu0 %v1011
        %2970 = vmatprep.subr.mxu0 %v1008
        %2971 = vmatpush1.msra.mxu0 %v1007
        %2972 = vmatprep.subr.mxu0 %v1004
        %2973 = vmatpush1.msra.mxu0 %v1003
        %2974 = vmatprep.subr.mxu0 %v1000
        %2975 = vmatpush1.msra.mxu0 %v999
        %2976 = vmatprep.subr.mxu0 %v996
        %2977 = vmatpush1.msra.mxu0 %v995
        %2978 = vmatprep.subr.mxu0 %v992
        %2979 = vmatpush1.msra.mxu0 %v991
        %2980 = vmatprep.subr.mxu0 %v988
        %2981 = vmatpush1.msra.mxu0 %v987
        %2982 = vmatprep.subr.mxu0 %v984
        %2983 = vmatpush1.msra.mxu0 %v983
        %2984 = vmatprep.subr.mxu0 %v980
        %2985 = vmatpush1.msra.mxu0 %v979
        %2986 = vmatprep.subr.mxu0 %v976
        %2987 = vmatpush1.msra.mxu0 %v975
        %2988 = vmatprep.subr.mxu0 %v972
        %2989 = vmatpush1.msra.mxu0 %v971
        %2990 = vmatprep.subr.mxu0 %v968
        %2991 = vmatpush1.msra.mxu0 %v967
        %2992 = vmatprep.subr.mxu0 %v964
        %2993 = vmatpush1.msra.mxu0 %v963
        %2994 = vmatprep.subr.mxu0 %v960
        %2995 = vmatpush1.msra.mxu0 %v959
        %2996 = vmatprep.subr.mxu0 %v956
        %2997 = vmatpush1.msra.mxu0 %v955
        %2998 = vmatprep.subr.mxu0 0.0
        %2999 = vmatpush2.msra.mxu0 0.0
        %3000 = vmatprep.subr.mxu0 0.0
        %3001 = vmatpush2.msra.mxu0 0.0
        %3002 = vmatprep.subr.mxu0 0.0
        %3003 = vmatpush2.msra.mxu0 0.0
        %3004 = vmatprep.subr.mxu0 0.0
        %3005 = vmatpush2.msra.mxu0 0.0
        %3006 = vmatprep.subr.mxu0 0.0
        %3007 = vmatpush2.msra.mxu0 0.0
        %3008 = vmatprep.subr.mxu0 0.0
        %3009 = vmatpush2.msra.mxu0 0.0
        %3010 = vmatprep.subr.mxu0 0.0
        %3011 = vmatpush2.msra.mxu0 0.0
        %3012 = vmatprep.subr.mxu0 0.0
        %3013 = vmatpush2.msra.mxu0 0.0
        %3014 = vmatprep.subr.mxu0 0.0
        %3015 = vmatpush2.msra.mxu0 0.0
        %3016 = vmatprep.subr.mxu0 0.0
        %3017 = vmatpush2.msra.mxu0 0.0
        %3018 = vmatprep.subr.mxu0 0.0
        %3019 = vmatpush2.msra.mxu0 0.0
        %3020 = vmatprep.subr.mxu0 0.0
        %3021 = vmatpush2.msra.mxu0 0.0
        %3022 = vmatprep.subr.mxu0 0.0
        %3023 = vmatpush2.msra.mxu0 0.0
        %3024 = vmatprep.subr.mxu0 0.0
        %3025 = vmatpush2.msra.mxu0 0.0
        %3026 = vmatprep.subr.mxu0 0.0
        %3027 = vmatpush2.msra.mxu0 0.0
        %3028 = vmatprep.subr.mxu0 0.0
        %3029 = vmatpush2.msra.mxu0 0.0
        %3030 = vmatprep.mubr.f32.mxu0 0.0
        %3031 = vmatmul.mubr.f32.gmra.mxu0 %v2961
        %v3032 = vpop.f32.mrf.mxu0
        %v3033 = vadd.f32 0.0, %v3032
        %v3034 = vpop.f32.mrf.mxu0
        %v3035 = vadd.f32 0.0, %v3034
        %3036 = vdwg.mxu0
        %3037 = vmatprep.subr.mxu0 %v1018
        %3038 = vmatpush1.msra.mxu0 %v1017
        %3039 = vmatprep.subr.mxu0 %v1014
        %3040 = vmatpush1.msra.mxu0 %v1013
        %3041 = vmatprep.subr.mxu0 %v1010
        %3042 = vmatpush1.msra.mxu0 %v1009
        %3043 = vmatprep.subr.mxu0 %v1006
        %3044 = vmatpush1.msra.mxu0 %v1005
        %3045 = vmatprep.subr.mxu0 %v1002
        %3046 = vmatpush1.msra.mxu0 %v1001
        %3047 = vmatprep.subr.mxu0 %v998
        %3048 = vmatpush1.msra.mxu0 %v997
        %3049 = vmatprep.subr.mxu0 %v994
        %3050 = vmatpush1.msra.mxu0 %v993
        %3051 = vmatprep.subr.mxu0 %v990
        %3052 = vmatpush1.msra.mxu0 %v989
        %3053 = vmatprep.subr.mxu0 %v986
        %3054 = vmatpush1.msra.mxu0 %v985
        %3055 = vmatprep.subr.mxu0 %v982
        %3056 = vmatpush1.msra.mxu0 %v981
        %3057 = vmatprep.subr.mxu0 %v978
        %3058 = vmatpush1.msra.mxu0 %v977
        %3059 = vmatprep.subr.mxu0 %v974
        %3060 = vmatpush1.msra.mxu0 %v973
        %3061 = vmatprep.subr.mxu0 %v970
        %3062 = vmatpush1.msra.mxu0 %v969
        %3063 = vmatprep.subr.mxu0 %v966
        %3064 = vmatpush1.msra.mxu0 %v965
        %3065 = vmatprep.subr.mxu0 %v962
        %3066 = vmatpush1.msra.mxu0 %v961
        %3067 = vmatprep.subr.mxu0 %v958
        %3068 = vmatpush1.msra.mxu0 %v957
        %3069 = vmatprep.subr.mxu0 0.0
        %3070 = vmatpush2.msra.mxu0 0.0
        %3071 = vmatprep.subr.mxu0 0.0
        %3072 = vmatpush2.msra.mxu0 0.0
        %3073 = vmatprep.subr.mxu0 0.0
        %3074 = vmatpush2.msra.mxu0 0.0
        %3075 = vmatprep.subr.mxu0 0.0
        %3076 = vmatpush2.msra.mxu0 0.0
        %3077 = vmatprep.subr.mxu0 0.0
        %3078 = vmatpush2.msra.mxu0 0.0
        %3079 = vmatprep.subr.mxu0 0.0
        %3080 = vmatpush2.msra.mxu0 0.0
        %3081 = vmatprep.subr.mxu0 0.0
        %3082 = vmatpush2.msra.mxu0 0.0
        %3083 = vmatprep.subr.mxu0 0.0
        %3084 = vmatpush2.msra.mxu0 0.0
        %3085 = vmatprep.subr.mxu0 0.0
        %3086 = vmatpush2.msra.mxu0 0.0
        %3087 = vmatprep.subr.mxu0 0.0
        %3088 = vmatpush2.msra.mxu0 0.0
        %3089 = vmatprep.subr.mxu0 0.0
        %3090 = vmatpush2.msra.mxu0 0.0
        %3091 = vmatprep.subr.mxu0 0.0
        %3092 = vmatpush2.msra.mxu0 0.0
        %3093 = vmatprep.subr.mxu0 0.0
        %3094 = vmatpush2.msra.mxu0 0.0
        %3095 = vmatprep.subr.mxu0 0.0
        %3096 = vmatpush2.msra.mxu0 0.0
        %3097 = vmatprep.subr.mxu0 0.0
        %3098 = vmatpush2.msra.mxu0 0.0
        %3099 = vmatprep.subr.mxu0 0.0
        %3100 = vmatpush2.msra.mxu0 0.0
        %3101 = vmatprep.mubr.f32.mxu0 0.0
        %3102 = vmatmul.mubr.f32.gmra.mxu0 %v2961
        %v3103 = vpop.f32.mrf.mxu0
        %v3104 = vadd.f32 0.0, %v3103
        %v3105 = vpop.f32.mrf.mxu0
        %v3106 = vadd.f32 0.0, %v3105
        %3107 = vdwg.mxu0
        %v3108 = vadd.f32 %v2962, %v3033
        %v3109 = vadd.f32 %v2963, %v3035
        %v3110 = vadd.f32 %v2964, %v3104
        %v3111 = vadd.f32 %v2965, %v3106
        %v3112 = vsub.f32 0.0, %v3108
        %v3113 = vsub.f32 0.0, %v3109
        %v3114 = vsub.f32 0.0, %v3110
        %v3115 = vsub.f32 0.0, %v3111
        %v3116 = vmul.f32 %v3112, 1.442695
        %v3117 = vpow.pop %v3116
        %v3118 = vmul.f32 %v3113, 1.442695
        %v3119 = vpow.pop %v3118
        %v3120 = vmul.f32 %v3114, 1.442695
        %v3121 = vpow.pop %v3120
        %v3122 = vmul.f32 %v3115, 1.442695
        %v3123 = vpow.pop %v3122
        %v3124 = vadd.f32 %v3117, 1.0
        %v3125 = vadd.f32 %v3119, 1.0
        %v3126 = vadd.f32 %v3121, 1.0
        %v3127 = vadd.f32 %v3123, 1.0
        %v3128 = vrcp.pop %v3124
        %v3129 = vrcp.pop %v3125
        %v3130 = vrcp.pop %v3126
        %v3131 = vrcp.pop %v3127
        %v3132 = vmul.f32 %v3130, 2.0
        %v3133 = vsub.f32 %v3132, 1.0
        %v3134 = vmul.f32 %v3129, %v2959
        %v3135 = vmul.f32 %v3128, %v3133
        %v3136 = vadd.f32 %v3134, %v3135
        %v3137 = vtanh.pop %v3136
        %v3138 = vmul.f32 %v3131, %v3137
        %v3139 = vld [vmem:[#allocation2 + $0x180] sm:$0xff]
        %v3140 = vld [vmem:[#allocation2 + $0x188] sm:$0xff]
        %v3141 = vld [vmem:[#allocation2 + $0x190] sm:$0xff]
        %v3142 = vld [vmem:[#allocation2 + $0x198] sm:$0xff]
        %3143 = vmatprep.subr.mxu0 %v1016
        %3144 = vmatpush1.msra.mxu0 %v1015
        %3145 = vmatprep.subr.mxu0 %v1012
        %3146 = vmatpush1.msra.mxu0 %v1011
        %3147 = vmatprep.subr.mxu0 %v1008
        %3148 = vmatpush1.msra.mxu0 %v1007
        %3149 = vmatprep.subr.mxu0 %v1004
        %3150 = vmatpush1.msra.mxu0 %v1003
        %3151 = vmatprep.subr.mxu0 %v1000
        %3152 = vmatpush1.msra.mxu0 %v999
        %3153 = vmatprep.subr.mxu0 %v996
        %3154 = vmatpush1.msra.mxu0 %v995
        %3155 = vmatprep.subr.mxu0 %v992
        %3156 = vmatpush1.msra.mxu0 %v991
        %3157 = vmatprep.subr.mxu0 %v988
        %3158 = vmatpush1.msra.mxu0 %v987
        %3159 = vmatprep.subr.mxu0 %v984
        %3160 = vmatpush1.msra.mxu0 %v983
        %3161 = vmatprep.subr.mxu0 %v980
        %3162 = vmatpush1.msra.mxu0 %v979
        %3163 = vmatprep.subr.mxu0 %v976
        %3164 = vmatpush1.msra.mxu0 %v975
        %3165 = vmatprep.subr.mxu0 %v972
        %3166 = vmatpush1.msra.mxu0 %v971
        %3167 = vmatprep.subr.mxu0 %v968
        %3168 = vmatpush1.msra.mxu0 %v967
        %3169 = vmatprep.subr.mxu0 %v964
        %3170 = vmatpush1.msra.mxu0 %v963
        %3171 = vmatprep.subr.mxu0 %v960
        %3172 = vmatpush1.msra.mxu0 %v959
        %3173 = vmatprep.subr.mxu0 %v956
        %3174 = vmatpush1.msra.mxu0 %v955
        %3175 = vmatprep.subr.mxu0 0.0
        %3176 = vmatpush2.msra.mxu0 0.0
        %3177 = vmatprep.subr.mxu0 0.0
        %3178 = vmatpush2.msra.mxu0 0.0
        %3179 = vmatprep.subr.mxu0 0.0
        %3180 = vmatpush2.msra.mxu0 0.0
        %3181 = vmatprep.subr.mxu0 0.0
        %3182 = vmatpush2.msra.mxu0 0.0
        %3183 = vmatprep.subr.mxu0 0.0
        %3184 = vmatpush2.msra.mxu0 0.0
        %3185 = vmatprep.subr.mxu0 0.0
        %3186 = vmatpush2.msra.mxu0 0.0
        %3187 = vmatprep.subr.mxu0 0.0
        %3188 = vmatpush2.msra.mxu0 0.0
        %3189 = vmatprep.subr.mxu0 0.0
        %3190 = vmatpush2.msra.mxu0 0.0
        %3191 = vmatprep.subr.mxu0 0.0
        %3192 = vmatpush2.msra.mxu0 0.0
        %3193 = vmatprep.subr.mxu0 0.0
        %3194 = vmatpush2.msra.mxu0 0.0
        %3195 = vmatprep.subr.mxu0 0.0
        %3196 = vmatpush2.msra.mxu0 0.0
        %3197 = vmatprep.subr.mxu0 0.0
        %3198 = vmatpush2.msra.mxu0 0.0
        %3199 = vmatprep.subr.mxu0 0.0
        %3200 = vmatpush2.msra.mxu0 0.0
        %3201 = vmatprep.subr.mxu0 0.0
        %3202 = vmatpush2.msra.mxu0 0.0
        %3203 = vmatprep.subr.mxu0 0.0
        %3204 = vmatpush2.msra.mxu0 0.0
        %3205 = vmatprep.subr.mxu0 0.0
        %3206 = vmatpush2.msra.mxu0 0.0
        %3207 = vmatprep.mubr.f32.mxu0 0.0
        %3208 = vmatmul.mubr.f32.gmra.mxu0 %v3138
        %v3209 = vpop.f32.mrf.mxu0
        %v3210 = vadd.f32 0.0, %v3209
        %v3211 = vpop.f32.mrf.mxu0
        %v3212 = vadd.f32 0.0, %v3211
        %3213 = vdwg.mxu0
        %3214 = vmatprep.subr.mxu0 %v1018
        %3215 = vmatpush1.msra.mxu0 %v1017
        %3216 = vmatprep.subr.mxu0 %v1014
        %3217 = vmatpush1.msra.mxu0 %v1013
        %3218 = vmatprep.subr.mxu0 %v1010
        %3219 = vmatpush1.msra.mxu0 %v1009
        %3220 = vmatprep.subr.mxu0 %v1006
        %3221 = vmatpush1.msra.mxu0 %v1005
        %3222 = vmatprep.subr.mxu0 %v1002
        %3223 = vmatpush1.msra.mxu0 %v1001
        %3224 = vmatprep.subr.mxu0 %v998
        %3225 = vmatpush1.msra.mxu0 %v997
        %3226 = vmatprep.subr.mxu0 %v994
        %3227 = vmatpush1.msra.mxu0 %v993
        %3228 = vmatprep.subr.mxu0 %v990
        %3229 = vmatpush1.msra.mxu0 %v989
        %3230 = vmatprep.subr.mxu0 %v986
        %3231 = vmatpush1.msra.mxu0 %v985
        %3232 = vmatprep.subr.mxu0 %v982
        %3233 = vmatpush1.msra.mxu0 %v981
        %3234 = vmatprep.subr.mxu0 %v978
        %3235 = vmatpush1.msra.mxu0 %v977
        %3236 = vmatprep.subr.mxu0 %v974
        %3237 = vmatpush1.msra.mxu0 %v973
        %3238 = vmatprep.subr.mxu0 %v970
        %3239 = vmatpush1.msra.mxu0 %v969
        %3240 = vmatprep.subr.mxu0 %v966
        %3241 = vmatpush1.msra.mxu0 %v965
        %3242 = vmatprep.subr.mxu0 %v962
        %3243 = vmatpush1.msra.mxu0 %v961
        %3244 = vmatprep.subr.mxu0 %v958
        %3245 = vmatpush1.msra.mxu0 %v957
        %3246 = vmatprep.subr.mxu0 0.0
        %3247 = vmatpush2.msra.mxu0 0.0
        %3248 = vmatprep.subr.mxu0 0.0
        %3249 = vmatpush2.msra.mxu0 0.0
        %3250 = vmatprep.subr.mxu0 0.0
        %3251 = vmatpush2.msra.mxu0 0.0
        %3252 = vmatprep.subr.mxu0 0.0
        %3253 = vmatpush2.msra.mxu0 0.0
        %3254 = vmatprep.subr.mxu0 0.0
        %3255 = vmatpush2.msra.mxu0 0.0
        %3256 = vmatprep.subr.mxu0 0.0
        %3257 = vmatpush2.msra.mxu0 0.0
        %3258 = vmatprep.subr.mxu0 0.0
        %3259 = vmatpush2.msra.mxu0 0.0
        %3260 = vmatprep.subr.mxu0 0.0
        %3261 = vmatpush2.msra.mxu0 0.0
        %3262 = vmatprep.subr.mxu0 0.0
        %3263 = vmatpush2.msra.mxu0 0.0
        %3264 = vmatprep.subr.mxu0 0.0
        %3265 = vmatpush2.msra.mxu0 0.0
        %3266 = vmatprep.subr.mxu0 0.0
        %3267 = vmatpush2.msra.mxu0 0.0
        %3268 = vmatprep.subr.mxu0 0.0
        %3269 = vmatpush2.msra.mxu0 0.0
        %3270 = vmatprep.subr.mxu0 0.0
        %3271 = vmatpush2.msra.mxu0 0.0
        %3272 = vmatprep.subr.mxu0 0.0
        %3273 = vmatpush2.msra.mxu0 0.0
        %3274 = vmatprep.subr.mxu0 0.0
        %3275 = vmatpush2.msra.mxu0 0.0
        %3276 = vmatprep.subr.mxu0 0.0
        %3277 = vmatpush2.msra.mxu0 0.0
        %3278 = vmatprep.mubr.f32.mxu0 0.0
        %3279 = vmatmul.mubr.f32.gmra.mxu0 %v3138
        %v3280 = vpop.f32.mrf.mxu0
        %v3281 = vadd.f32 0.0, %v3280
        %v3282 = vpop.f32.mrf.mxu0
        %v3283 = vadd.f32 0.0, %v3282
        %3284 = vdwg.mxu0
        %v3285 = vadd.f32 %v3139, %v3210
        %v3286 = vadd.f32 %v3140, %v3212
        %v3287 = vadd.f32 %v3141, %v3281
        %v3288 = vadd.f32 %v3142, %v3283
        %v3289 = vsub.f32 0.0, %v3285
        %v3290 = vsub.f32 0.0, %v3286
        %v3291 = vsub.f32 0.0, %v3287
        %v3292 = vsub.f32 0.0, %v3288
        %v3293 = vmul.f32 %v3289, 1.442695
        %v3294 = vpow.pop %v3293
        %v3295 = vmul.f32 %v3290, 1.442695
        %v3296 = vpow.pop %v3295
        %v3297 = vmul.f32 %v3291, 1.442695
        %v3298 = vpow.pop %v3297
        %v3299 = vmul.f32 %v3292, 1.442695
        %v3300 = vpow.pop %v3299
        %v3301 = vadd.f32 %v3294, 1.0
        %v3302 = vadd.f32 %v3296, 1.0
        %v3303 = vadd.f32 %v3298, 1.0
        %v3304 = vadd.f32 %v3300, 1.0
        %v3305 = vrcp.pop %v3301
        %v3306 = vrcp.pop %v3302
        %v3307 = vrcp.pop %v3303
        %v3308 = vrcp.pop %v3304
        %v3309 = vmul.f32 %v3307, 2.0
        %v3310 = vsub.f32 %v3309, 1.0
        %v3311 = vmul.f32 %v3306, %v3136
        %v3312 = vmul.f32 %v3305, %v3310
        %v3313 = vadd.f32 %v3311, %v3312
        %v3314 = vtanh.pop %v3313
        %v3315 = vmul.f32 %v3308, %v3314
        %v3316 = vld [vmem:[#allocation2 + $0x1a0] sm:$0xff]
        %v3317 = vld [vmem:[#allocation2 + $0x1a8] sm:$0xff]
        %v3318 = vld [vmem:[#allocation2 + $0x1b0] sm:$0xff]
        %v3319 = vld [vmem:[#allocation2 + $0x1b8] sm:$0xff]
        %3320 = vmatprep.subr.mxu0 %v1016
        %3321 = vmatpush1.msra.mxu0 %v1015
        %3322 = vmatprep.subr.mxu0 %v1012
        %3323 = vmatpush1.msra.mxu0 %v1011
        %3324 = vmatprep.subr.mxu0 %v1008
        %3325 = vmatpush1.msra.mxu0 %v1007
        %3326 = vmatprep.subr.mxu0 %v1004
        %3327 = vmatpush1.msra.mxu0 %v1003
        %3328 = vmatprep.subr.mxu0 %v1000
        %3329 = vmatpush1.msra.mxu0 %v999
        %3330 = vmatprep.subr.mxu0 %v996
        %3331 = vmatpush1.msra.mxu0 %v995
        %3332 = vmatprep.subr.mxu0 %v992
        %3333 = vmatpush1.msra.mxu0 %v991
        %3334 = vmatprep.subr.mxu0 %v988
        %3335 = vmatpush1.msra.mxu0 %v987
        %3336 = vmatprep.subr.mxu0 %v984
        %3337 = vmatpush1.msra.mxu0 %v983
        %3338 = vmatprep.subr.mxu0 %v980
        %3339 = vmatpush1.msra.mxu0 %v979
        %3340 = vmatprep.subr.mxu0 %v976
        %3341 = vmatpush1.msra.mxu0 %v975
        %3342 = vmatprep.subr.mxu0 %v972
        %3343 = vmatpush1.msra.mxu0 %v971
        %3344 = vmatprep.subr.mxu0 %v968
        %3345 = vmatpush1.msra.mxu0 %v967
        %3346 = vmatprep.subr.mxu0 %v964
        %3347 = vmatpush1.msra.mxu0 %v963
        %3348 = vmatprep.subr.mxu0 %v960
        %3349 = vmatpush1.msra.mxu0 %v959
        %3350 = vmatprep.subr.mxu0 %v956
        %3351 = vmatpush1.msra.mxu0 %v955
        %3352 = vmatprep.subr.mxu0 0.0
        %3353 = vmatpush2.msra.mxu0 0.0
        %3354 = vmatprep.subr.mxu0 0.0
        %3355 = vmatpush2.msra.mxu0 0.0
        %3356 = vmatprep.subr.mxu0 0.0
        %3357 = vmatpush2.msra.mxu0 0.0
        %3358 = vmatprep.subr.mxu0 0.0
        %3359 = vmatpush2.msra.mxu0 0.0
        %3360 = vmatprep.subr.mxu0 0.0
        %3361 = vmatpush2.msra.mxu0 0.0
        %3362 = vmatprep.subr.mxu0 0.0
        %3363 = vmatpush2.msra.mxu0 0.0
        %3364 = vmatprep.subr.mxu0 0.0
        %3365 = vmatpush2.msra.mxu0 0.0
        %3366 = vmatprep.subr.mxu0 0.0
        %3367 = vmatpush2.msra.mxu0 0.0
        %3368 = vmatprep.subr.mxu0 0.0
        %3369 = vmatpush2.msra.mxu0 0.0
        %3370 = vmatprep.subr.mxu0 0.0
        %3371 = vmatpush2.msra.mxu0 0.0
        %3372 = vmatprep.subr.mxu0 0.0
        %3373 = vmatpush2.msra.mxu0 0.0
        %3374 = vmatprep.subr.mxu0 0.0
        %3375 = vmatpush2.msra.mxu0 0.0
        %3376 = vmatprep.subr.mxu0 0.0
        %3377 = vmatpush2.msra.mxu0 0.0
        %3378 = vmatprep.subr.mxu0 0.0
        %3379 = vmatpush2.msra.mxu0 0.0
        %3380 = vmatprep.subr.mxu0 0.0
        %3381 = vmatpush2.msra.mxu0 0.0
        %3382 = vmatprep.subr.mxu0 0.0
        %3383 = vmatpush2.msra.mxu0 0.0
        %3384 = vmatprep.mubr.f32.mxu0 0.0
        %3385 = vmatmul.mubr.f32.gmra.mxu0 %v3315
        %v3386 = vpop.f32.mrf.mxu0
        %v3387 = vadd.f32 0.0, %v3386
        %v3388 = vpop.f32.mrf.mxu0
        %v3389 = vadd.f32 0.0, %v3388
        %3390 = vdwg.mxu0
        %3391 = vmatprep.subr.mxu0 %v1018
        %3392 = vmatpush1.msra.mxu0 %v1017
        %3393 = vmatprep.subr.mxu0 %v1014
        %3394 = vmatpush1.msra.mxu0 %v1013
        %3395 = vmatprep.subr.mxu0 %v1010
        %3396 = vmatpush1.msra.mxu0 %v1009
        %3397 = vmatprep.subr.mxu0 %v1006
        %3398 = vmatpush1.msra.mxu0 %v1005
        %3399 = vmatprep.subr.mxu0 %v1002
        %3400 = vmatpush1.msra.mxu0 %v1001
        %3401 = vmatprep.subr.mxu0 %v998
        %3402 = vmatpush1.msra.mxu0 %v997
        %3403 = vmatprep.subr.mxu0 %v994
        %3404 = vmatpush1.msra.mxu0 %v993
        %3405 = vmatprep.subr.mxu0 %v990
        %3406 = vmatpush1.msra.mxu0 %v989
        %3407 = vmatprep.subr.mxu0 %v986
        %3408 = vmatpush1.msra.mxu0 %v985
        %3409 = vmatprep.subr.mxu0 %v982
        %3410 = vmatpush1.msra.mxu0 %v981
        %3411 = vmatprep.subr.mxu0 %v978
        %3412 = vmatpush1.msra.mxu0 %v977
        %3413 = vmatprep.subr.mxu0 %v974
        %3414 = vmatpush1.msra.mxu0 %v973
        %3415 = vmatprep.subr.mxu0 %v970
        %3416 = vmatpush1.msra.mxu0 %v969
        %3417 = vmatprep.subr.mxu0 %v966
        %3418 = vmatpush1.msra.mxu0 %v965
        %3419 = vmatprep.subr.mxu0 %v962
        %3420 = vmatpush1.msra.mxu0 %v961
        %3421 = vmatprep.subr.mxu0 %v958
        %3422 = vmatpush1.msra.mxu0 %v957
        %3423 = vmatprep.subr.mxu0 0.0
        %3424 = vmatpush2.msra.mxu0 0.0
        %3425 = vmatprep.subr.mxu0 0.0
        %3426 = vmatpush2.msra.mxu0 0.0
        %3427 = vmatprep.subr.mxu0 0.0
        %3428 = vmatpush2.msra.mxu0 0.0
        %3429 = vmatprep.subr.mxu0 0.0
        %3430 = vmatpush2.msra.mxu0 0.0
        %3431 = vmatprep.subr.mxu0 0.0
        %3432 = vmatpush2.msra.mxu0 0.0
        %3433 = vmatprep.subr.mxu0 0.0
        %3434 = vmatpush2.msra.mxu0 0.0
        %3435 = vmatprep.subr.mxu0 0.0
        %3436 = vmatpush2.msra.mxu0 0.0
        %3437 = vmatprep.subr.mxu0 0.0
        %3438 = vmatpush2.msra.mxu0 0.0
        %3439 = vmatprep.subr.mxu0 0.0
        %3440 = vmatpush2.msra.mxu0 0.0
        %3441 = vmatprep.subr.mxu0 0.0
        %3442 = vmatpush2.msra.mxu0 0.0
        %3443 = vmatprep.subr.mxu0 0.0
        %3444 = vmatpush2.msra.mxu0 0.0
        %3445 = vmatprep.subr.mxu0 0.0
        %3446 = vmatpush2.msra.mxu0 0.0
        %3447 = vmatprep.subr.mxu0 0.0
        %3448 = vmatpush2.msra.mxu0 0.0
        %3449 = vmatprep.subr.mxu0 0.0
        %3450 = vmatpush2.msra.mxu0 0.0
        %3451 = vmatprep.subr.mxu0 0.0
        %3452 = vmatpush2.msra.mxu0 0.0
        %3453 = vmatprep.subr.mxu0 0.0
        %3454 = vmatpush2.msra.mxu0 0.0
        %3455 = vmatprep.mubr.f32.mxu0 0.0
        %3456 = vmatmul.mubr.f32.gmra.mxu0 %v3315
        %v3457 = vpop.f32.mrf.mxu0
        %v3458 = vadd.f32 0.0, %v3457
        %v3459 = vpop.f32.mrf.mxu0
        %v3460 = vadd.f32 0.0, %v3459
        %3461 = vdwg.mxu0
        %v3462 = vadd.f32 %v3316, %v3387
        %v3463 = vadd.f32 %v3317, %v3389
        %v3464 = vadd.f32 %v3318, %v3458
        %v3465 = vadd.f32 %v3319, %v3460
        %v3466 = vsub.f32 0.0, %v3462
        %v3467 = vsub.f32 0.0, %v3463
        %v3468 = vsub.f32 0.0, %v3464
        %v3469 = vsub.f32 0.0, %v3465
        %v3470 = vmul.f32 %v3466, 1.442695
        %v3471 = vpow.pop %v3470
        %v3472 = vmul.f32 %v3467, 1.442695
        %v3473 = vpow.pop %v3472
        %v3474 = vmul.f32 %v3468, 1.442695
        %v3475 = vpow.pop %v3474
        %v3476 = vmul.f32 %v3469, 1.442695
        %v3477 = vpow.pop %v3476
        %v3478 = vadd.f32 %v3471, 1.0
        %v3479 = vadd.f32 %v3473, 1.0
        %v3480 = vadd.f32 %v3475, 1.0
        %v3481 = vadd.f32 %v3477, 1.0
        %v3482 = vrcp.pop %v3478
        %v3483 = vrcp.pop %v3479
        %v3484 = vrcp.pop %v3480
        %v3485 = vrcp.pop %v3481
        %v3486 = vmul.f32 %v3484, 2.0
        %v3487 = vsub.f32 %v3486, 1.0
        %v3488 = vmul.f32 %v3483, %v3313
        %v3489 = vmul.f32 %v3482, %v3487
        %v3490 = vadd.f32 %v3488, %v3489
        %v3491 = vtanh.pop %v3490
        %v3492 = vmul.f32 %v3485, %v3491
        %v3493 = vld [vmem:[#allocation2 + $0x1c0] sm:$0xff]
        %v3494 = vld [vmem:[#allocation2 + $0x1c8] sm:$0xff]
        %v3495 = vld [vmem:[#allocation2 + $0x1d0] sm:$0xff]
        %v3496 = vld [vmem:[#allocation2 + $0x1d8] sm:$0xff]
        %3497 = vmatprep.subr.mxu0 %v1016
        %3498 = vmatpush1.msra.mxu0 %v1015
        %3499 = vmatprep.subr.mxu0 %v1012
        %3500 = vmatpush1.msra.mxu0 %v1011
        %3501 = vmatprep.subr.mxu0 %v1008
        %3502 = vmatpush1.msra.mxu0 %v1007
        %3503 = vmatprep.subr.mxu0 %v1004
        %3504 = vmatpush1.msra.mxu0 %v1003
        %3505 = vmatprep.subr.mxu0 %v1000
        %3506 = vmatpush1.msra.mxu0 %v999
        %3507 = vmatprep.subr.mxu0 %v996
        %3508 = vmatpush1.msra.mxu0 %v995
        %3509 = vmatprep.subr.mxu0 %v992
        %3510 = vmatpush1.msra.mxu0 %v991
        %3511 = vmatprep.subr.mxu0 %v988
        %3512 = vmatpush1.msra.mxu0 %v987
        %3513 = vmatprep.subr.mxu0 %v984
        %3514 = vmatpush1.msra.mxu0 %v983
        %3515 = vmatprep.subr.mxu0 %v980
        %3516 = vmatpush1.msra.mxu0 %v979
        %3517 = vmatprep.subr.mxu0 %v976
        %3518 = vmatpush1.msra.mxu0 %v975
        %3519 = vmatprep.subr.mxu0 %v972
        %3520 = vmatpush1.msra.mxu0 %v971
        %3521 = vmatprep.subr.mxu0 %v968
        %3522 = vmatpush1.msra.mxu0 %v967
        %3523 = vmatprep.subr.mxu0 %v964
        %3524 = vmatpush1.msra.mxu0 %v963
        %3525 = vmatprep.subr.mxu0 %v960
        %3526 = vmatpush1.msra.mxu0 %v959
        %3527 = vmatprep.subr.mxu0 %v956
        %3528 = vmatpush1.msra.mxu0 %v955
        %3529 = vmatprep.subr.mxu0 0.0
        %3530 = vmatpush2.msra.mxu0 0.0
        %3531 = vmatprep.subr.mxu0 0.0
        %3532 = vmatpush2.msra.mxu0 0.0
        %3533 = vmatprep.subr.mxu0 0.0
        %3534 = vmatpush2.msra.mxu0 0.0
        %3535 = vmatprep.subr.mxu0 0.0
        %3536 = vmatpush2.msra.mxu0 0.0
        %3537 = vmatprep.subr.mxu0 0.0
        %3538 = vmatpush2.msra.mxu0 0.0
        %3539 = vmatprep.subr.mxu0 0.0
        %3540 = vmatpush2.msra.mxu0 0.0
        %3541 = vmatprep.subr.mxu0 0.0
        %3542 = vmatpush2.msra.mxu0 0.0
        %3543 = vmatprep.subr.mxu0 0.0
        %3544 = vmatpush2.msra.mxu0 0.0
        %3545 = vmatprep.subr.mxu0 0.0
        %3546 = vmatpush2.msra.mxu0 0.0
        %3547 = vmatprep.subr.mxu0 0.0
        %3548 = vmatpush2.msra.mxu0 0.0
        %3549 = vmatprep.subr.mxu0 0.0
        %3550 = vmatpush2.msra.mxu0 0.0
        %3551 = vmatprep.subr.mxu0 0.0
        %3552 = vmatpush2.msra.mxu0 0.0
        %3553 = vmatprep.subr.mxu0 0.0
        %3554 = vmatpush2.msra.mxu0 0.0
        %3555 = vmatprep.subr.mxu0 0.0
        %3556 = vmatpush2.msra.mxu0 0.0
        %3557 = vmatprep.subr.mxu0 0.0
        %3558 = vmatpush2.msra.mxu0 0.0
        %3559 = vmatprep.subr.mxu0 0.0
        %3560 = vmatpush2.msra.mxu0 0.0
        %3561 = vmatprep.mubr.f32.mxu0 0.0
        %3562 = vmatmul.mubr.f32.gmra.mxu0 %v3492
        %v3563 = vpop.f32.mrf.mxu0
        %v3564 = vadd.f32 0.0, %v3563
        %v3565 = vpop.f32.mrf.mxu0
        %v3566 = vadd.f32 0.0, %v3565
        %3567 = vdwg.mxu0
        %3568 = vmatprep.subr.mxu0 %v1018
        %3569 = vmatpush1.msra.mxu0 %v1017
        %3570 = vmatprep.subr.mxu0 %v1014
        %3571 = vmatpush1.msra.mxu0 %v1013
        %3572 = vmatprep.subr.mxu0 %v1010
        %3573 = vmatpush1.msra.mxu0 %v1009
        %3574 = vmatprep.subr.mxu0 %v1006
        %3575 = vmatpush1.msra.mxu0 %v1005
        %3576 = vmatprep.subr.mxu0 %v1002
        %3577 = vmatpush1.msra.mxu0 %v1001
        %3578 = vmatprep.subr.mxu0 %v998
        %3579 = vmatpush1.msra.mxu0 %v997
        %3580 = vmatprep.subr.mxu0 %v994
        %3581 = vmatpush1.msra.mxu0 %v993
        %3582 = vmatprep.subr.mxu0 %v990
        %3583 = vmatpush1.msra.mxu0 %v989
        %3584 = vmatprep.subr.mxu0 %v986
        %3585 = vmatpush1.msra.mxu0 %v985
        %3586 = vmatprep.subr.mxu0 %v982
        %3587 = vmatpush1.msra.mxu0 %v981
        %3588 = vmatprep.subr.mxu0 %v978
        %3589 = vmatpush1.msra.mxu0 %v977
        %3590 = vmatprep.subr.mxu0 %v974
        %3591 = vmatpush1.msra.mxu0 %v973
        %3592 = vmatprep.subr.mxu0 %v970
        %3593 = vmatpush1.msra.mxu0 %v969
        %3594 = vmatprep.subr.mxu0 %v966
        %3595 = vmatpush1.msra.mxu0 %v965
        %3596 = vmatprep.subr.mxu0 %v962
        %3597 = vmatpush1.msra.mxu0 %v961
        %3598 = vmatprep.subr.mxu0 %v958
        %3599 = vmatpush1.msra.mxu0 %v957
        %3600 = vmatprep.subr.mxu0 0.0
        %3601 = vmatpush2.msra.mxu0 0.0
        %3602 = vmatprep.subr.mxu0 0.0
        %3603 = vmatpush2.msra.mxu0 0.0
        %3604 = vmatprep.subr.mxu0 0.0
        %3605 = vmatpush2.msra.mxu0 0.0
        %3606 = vmatprep.subr.mxu0 0.0
        %3607 = vmatpush2.msra.mxu0 0.0
        %3608 = vmatprep.subr.mxu0 0.0
        %3609 = vmatpush2.msra.mxu0 0.0
        %3610 = vmatprep.subr.mxu0 0.0
        %3611 = vmatpush2.msra.mxu0 0.0
        %3612 = vmatprep.subr.mxu0 0.0
        %3613 = vmatpush2.msra.mxu0 0.0
        %3614 = vmatprep.subr.mxu0 0.0
        %3615 = vmatpush2.msra.mxu0 0.0
        %3616 = vmatprep.subr.mxu0 0.0
        %3617 = vmatpush2.msra.mxu0 0.0
        %3618 = vmatprep.subr.mxu0 0.0
        %3619 = vmatpush2.msra.mxu0 0.0
        %3620 = vmatprep.subr.mxu0 0.0
        %3621 = vmatpush2.msra.mxu0 0.0
        %3622 = vmatprep.subr.mxu0 0.0
        %3623 = vmatpush2.msra.mxu0 0.0
        %3624 = vmatprep.subr.mxu0 0.0
        %3625 = vmatpush2.msra.mxu0 0.0
        %3626 = vmatprep.subr.mxu0 0.0
        %3627 = vmatpush2.msra.mxu0 0.0
        %3628 = vmatprep.subr.mxu0 0.0
        %3629 = vmatpush2.msra.mxu0 0.0
        %3630 = vmatprep.subr.mxu0 0.0
        %3631 = vmatpush2.msra.mxu0 0.0
        %3632 = vmatprep.mubr.f32.mxu0 0.0
        %3633 = vmatmul.mubr.f32.gmra.mxu0 %v3492
        %v3634 = vpop.f32.mrf.mxu0
        %v3635 = vadd.f32 0.0, %v3634
        %v3636 = vpop.f32.mrf.mxu0
        %v3637 = vadd.f32 0.0, %v3636
        %3638 = vdwg.mxu0
        %v3639 = vadd.f32 %v3493, %v3564
        %v3640 = vadd.f32 %v3494, %v3566
        %v3641 = vadd.f32 %v3495, %v3635
        %v3642 = vadd.f32 %v3496, %v3637
        %v3643 = vsub.f32 0.0, %v3639
        %v3644 = vsub.f32 0.0, %v3640
        %v3645 = vsub.f32 0.0, %v3641
        %v3646 = vsub.f32 0.0, %v3642
        %v3647 = vmul.f32 %v3643, 1.442695
        %v3648 = vpow.pop %v3647
        %v3649 = vmul.f32 %v3644, 1.442695
        %v3650 = vpow.pop %v3649
        %v3651 = vmul.f32 %v3645, 1.442695
        %v3652 = vpow.pop %v3651
        %v3653 = vmul.f32 %v3646, 1.442695
        %v3654 = vpow.pop %v3653
        %v3655 = vadd.f32 %v3648, 1.0
        %v3656 = vadd.f32 %v3650, 1.0
        %v3657 = vadd.f32 %v3652, 1.0
        %v3658 = vadd.f32 %v3654, 1.0
        %v3659 = vrcp.pop %v3655
        %v3660 = vrcp.pop %v3656
        %v3661 = vrcp.pop %v3657
        %v3662 = vrcp.pop %v3658
        %v3663 = vmul.f32 %v3661, 2.0
        %v3664 = vsub.f32 %v3663, 1.0
        %v3665 = vmul.f32 %v3660, %v3490
        %v3666 = vmul.f32 %v3659, %v3664
        %v3667 = vadd.f32 %v3665, %v3666
        %v3668 = vtanh.pop %v3667
        %v3669 = vmul.f32 %v3662, %v3668
        %v3670 = vld [vmem:[#allocation2 + $0x1e0] sm:$0xff]
        %v3671 = vld [vmem:[#allocation2 + $0x1e8] sm:$0xff]
        %v3672 = vld [vmem:[#allocation2 + $0x1f0] sm:$0xff]
        %v3673 = vld [vmem:[#allocation2 + $0x1f8] sm:$0xff]
        %3674 = vmatprep.subr.mxu0 %v1016
        %3675 = vmatpush1.msra.mxu0 %v1015
        %3676 = vmatprep.subr.mxu0 %v1012
        %3677 = vmatpush1.msra.mxu0 %v1011
        %3678 = vmatprep.subr.mxu0 %v1008
        %3679 = vmatpush1.msra.mxu0 %v1007
        %3680 = vmatprep.subr.mxu0 %v1004
        %3681 = vmatpush1.msra.mxu0 %v1003
        %3682 = vmatprep.subr.mxu0 %v1000
        %3683 = vmatpush1.msra.mxu0 %v999
        %3684 = vmatprep.subr.mxu0 %v996
        %3685 = vmatpush1.msra.mxu0 %v995
        %3686 = vmatprep.subr.mxu0 %v992
        %3687 = vmatpush1.msra.mxu0 %v991
        %3688 = vmatprep.subr.mxu0 %v988
        %3689 = vmatpush1.msra.mxu0 %v987
        %3690 = vmatprep.subr.mxu0 %v984
        %3691 = vmatpush1.msra.mxu0 %v983
        %3692 = vmatprep.subr.mxu0 %v980
        %3693 = vmatpush1.msra.mxu0 %v979
        %3694 = vmatprep.subr.mxu0 %v976
        %3695 = vmatpush1.msra.mxu0 %v975
        %3696 = vmatprep.subr.mxu0 %v972
        %3697 = vmatpush1.msra.mxu0 %v971
        %3698 = vmatprep.subr.mxu0 %v968
        %3699 = vmatpush1.msra.mxu0 %v967
        %3700 = vmatprep.subr.mxu0 %v964
        %3701 = vmatpush1.msra.mxu0 %v963
        %3702 = vmatprep.subr.mxu0 %v960
        %3703 = vmatpush1.msra.mxu0 %v959
        %3704 = vmatprep.subr.mxu0 %v956
        %3705 = vmatpush1.msra.mxu0 %v955
        %3706 = vmatprep.subr.mxu0 0.0
        %3707 = vmatpush2.msra.mxu0 0.0
        %3708 = vmatprep.subr.mxu0 0.0
        %3709 = vmatpush2.msra.mxu0 0.0
        %3710 = vmatprep.subr.mxu0 0.0
        %3711 = vmatpush2.msra.mxu0 0.0
        %3712 = vmatprep.subr.mxu0 0.0
        %3713 = vmatpush2.msra.mxu0 0.0
        %3714 = vmatprep.subr.mxu0 0.0
        %3715 = vmatpush2.msra.mxu0 0.0
        %3716 = vmatprep.subr.mxu0 0.0
        %3717 = vmatpush2.msra.mxu0 0.0
        %3718 = vmatprep.subr.mxu0 0.0
        %3719 = vmatpush2.msra.mxu0 0.0
        %3720 = vmatprep.subr.mxu0 0.0
        %3721 = vmatpush2.msra.mxu0 0.0
        %3722 = vmatprep.subr.mxu0 0.0
        %3723 = vmatpush2.msra.mxu0 0.0
        %3724 = vmatprep.subr.mxu0 0.0
        %3725 = vmatpush2.msra.mxu0 0.0
        %3726 = vmatprep.subr.mxu0 0.0
        %3727 = vmatpush2.msra.mxu0 0.0
        %3728 = vmatprep.subr.mxu0 0.0
        %3729 = vmatpush2.msra.mxu0 0.0
        %3730 = vmatprep.subr.mxu0 0.0
        %3731 = vmatpush2.msra.mxu0 0.0
        %3732 = vmatprep.subr.mxu0 0.0
        %3733 = vmatpush2.msra.mxu0 0.0
        %3734 = vmatprep.subr.mxu0 0.0
        %3735 = vmatpush2.msra.mxu0 0.0
        %3736 = vmatprep.subr.mxu0 0.0
        %3737 = vmatpush2.msra.mxu0 0.0
        %3738 = vmatprep.mubr.f32.mxu0 0.0
        %3739 = vmatmul.mubr.f32.gmra.mxu0 %v3669
        %v3740 = vpop.f32.mrf.mxu0
        %v3741 = vadd.f32 0.0, %v3740
        %v3742 = vpop.f32.mrf.mxu0
        %v3743 = vadd.f32 0.0, %v3742
        %3744 = vdwg.mxu0
        %3745 = vmatprep.subr.mxu0 %v1018
        %3746 = vmatpush1.msra.mxu0 %v1017
        %3747 = vmatprep.subr.mxu0 %v1014
        %3748 = vmatpush1.msra.mxu0 %v1013
        %3749 = vmatprep.subr.mxu0 %v1010
        %3750 = vmatpush1.msra.mxu0 %v1009
        %3751 = vmatprep.subr.mxu0 %v1006
        %3752 = vmatpush1.msra.mxu0 %v1005
        %3753 = vmatprep.subr.mxu0 %v1002
        %3754 = vmatpush1.msra.mxu0 %v1001
        %3755 = vmatprep.subr.mxu0 %v998
        %3756 = vmatpush1.msra.mxu0 %v997
        %3757 = vmatprep.subr.mxu0 %v994
        %3758 = vmatpush1.msra.mxu0 %v993
        %3759 = vmatprep.subr.mxu0 %v990
        %3760 = vmatpush1.msra.mxu0 %v989
        %3761 = vmatprep.subr.mxu0 %v986
        %3762 = vmatpush1.msra.mxu0 %v985
        %3763 = vmatprep.subr.mxu0 %v982
        %3764 = vmatpush1.msra.mxu0 %v981
        %3765 = vmatprep.subr.mxu0 %v978
        %3766 = vmatpush1.msra.mxu0 %v977
        %3767 = vmatprep.subr.mxu0 %v974
        %3768 = vmatpush1.msra.mxu0 %v973
        %3769 = vmatprep.subr.mxu0 %v970
        %3770 = vmatpush1.msra.mxu0 %v969
        %3771 = vmatprep.subr.mxu0 %v966
        %3772 = vmatpush1.msra.mxu0 %v965
        %3773 = vmatprep.subr.mxu0 %v962
        %3774 = vmatpush1.msra.mxu0 %v961
        %3775 = vmatprep.subr.mxu0 %v958
        %3776 = vmatpush1.msra.mxu0 %v957
        %3777 = vmatprep.subr.mxu0 0.0
        %3778 = vmatpush2.msra.mxu0 0.0
        %3779 = vmatprep.subr.mxu0 0.0
        %3780 = vmatpush2.msra.mxu0 0.0
        %3781 = vmatprep.subr.mxu0 0.0
        %3782 = vmatpush2.msra.mxu0 0.0
        %3783 = vmatprep.subr.mxu0 0.0
        %3784 = vmatpush2.msra.mxu0 0.0
        %3785 = vmatprep.subr.mxu0 0.0
        %3786 = vmatpush2.msra.mxu0 0.0
        %3787 = vmatprep.subr.mxu0 0.0
        %3788 = vmatpush2.msra.mxu0 0.0
        %3789 = vmatprep.subr.mxu0 0.0
        %3790 = vmatpush2.msra.mxu0 0.0
        %3791 = vmatprep.subr.mxu0 0.0
        %3792 = vmatpush2.msra.mxu0 0.0
        %3793 = vmatprep.subr.mxu0 0.0
        %3794 = vmatpush2.msra.mxu0 0.0
        %3795 = vmatprep.subr.mxu0 0.0
        %3796 = vmatpush2.msra.mxu0 0.0
        %3797 = vmatprep.subr.mxu0 0.0
        %3798 = vmatpush2.msra.mxu0 0.0
        %3799 = vmatprep.subr.mxu0 0.0
        %3800 = vmatpush2.msra.mxu0 0.0
        %3801 = vmatprep.subr.mxu0 0.0
        %3802 = vmatpush2.msra.mxu0 0.0
        %3803 = vmatprep.subr.mxu0 0.0
        %3804 = vmatpush2.msra.mxu0 0.0
        %3805 = vmatprep.subr.mxu0 0.0
        %3806 = vmatpush2.msra.mxu0 0.0
        %3807 = vmatprep.subr.mxu0 0.0
        %3808 = vmatpush2.msra.mxu0 0.0
        %3809 = vmatprep.mubr.f32.mxu0 0.0
        %3810 = vmatmul.mubr.f32.gmra.mxu0 %v3669
        %v3811 = vpop.f32.mrf.mxu0
        %v3812 = vadd.f32 0.0, %v3811
        %v3813 = vpop.f32.mrf.mxu0
        %v3814 = vadd.f32 0.0, %v3813
        %3815 = vdwg.mxu0
        %v3816 = vadd.f32 %v3670, %v3741
        %v3817 = vadd.f32 %v3671, %v3743
        %v3818 = vadd.f32 %v3672, %v3812
        %v3819 = vadd.f32 %v3673, %v3814
        %v3820 = vsub.f32 0.0, %v3816
        %v3821 = vsub.f32 0.0, %v3817
        %v3822 = vsub.f32 0.0, %v3818
        %v3823 = vsub.f32 0.0, %v3819
        %v3824 = vmul.f32 %v3820, 1.442695
        %v3825 = vpow.pop %v3824
        %v3826 = vmul.f32 %v3821, 1.442695
        %v3827 = vpow.pop %v3826
        %v3828 = vmul.f32 %v3822, 1.442695
        %v3829 = vpow.pop %v3828
        %v3830 = vmul.f32 %v3823, 1.442695
        %v3831 = vpow.pop %v3830
        %v3832 = vadd.f32 %v3825, 1.0
        %v3833 = vadd.f32 %v3827, 1.0
        %v3834 = vadd.f32 %v3829, 1.0
        %v3835 = vadd.f32 %v3831, 1.0
        %v3836 = vrcp.pop %v3832
        %v3837 = vrcp.pop %v3833
        %v3838 = vrcp.pop %v3834
        %v3839 = vrcp.pop %v3835
        %v3840 = vmul.f32 %v3838, 2.0
        %v3841 = vsub.f32 %v3840, 1.0
        %v3842 = vmul.f32 %v3837, %v3667
        %v3843 = vmul.f32 %v3836, %v3841
        %v3844 = vadd.f32 %v3842, %v3843
        %v3845 = vtanh.pop %v3844
        %v3846 = vmul.f32 %v3839, %v3845
        %v3847 = vld [vmem:[#allocation2 + $0x200] sm:$0xff]
        %v3848 = vld [vmem:[#allocation2 + $0x208] sm:$0xff]
        %v3849 = vld [vmem:[#allocation2 + $0x210] sm:$0xff]
        %v3850 = vld [vmem:[#allocation2 + $0x218] sm:$0xff]
        %3851 = vmatprep.subr.mxu0 %v1016
        %3852 = vmatpush1.msra.mxu0 %v1015
        %3853 = vmatprep.subr.mxu0 %v1012
        %3854 = vmatpush1.msra.mxu0 %v1011
        %3855 = vmatprep.subr.mxu0 %v1008
        %3856 = vmatpush1.msra.mxu0 %v1007
        %3857 = vmatprep.subr.mxu0 %v1004
        %3858 = vmatpush1.msra.mxu0 %v1003
        %3859 = vmatprep.subr.mxu0 %v1000
        %3860 = vmatpush1.msra.mxu0 %v999
        %3861 = vmatprep.subr.mxu0 %v996
        %3862 = vmatpush1.msra.mxu0 %v995
        %3863 = vmatprep.subr.mxu0 %v992
        %3864 = vmatpush1.msra.mxu0 %v991
        %3865 = vmatprep.subr.mxu0 %v988
        %3866 = vmatpush1.msra.mxu0 %v987
        %3867 = vmatprep.subr.mxu0 %v984
        %3868 = vmatpush1.msra.mxu0 %v983
        %3869 = vmatprep.subr.mxu0 %v980
        %3870 = vmatpush1.msra.mxu0 %v979
        %3871 = vmatprep.subr.mxu0 %v976
        %3872 = vmatpush1.msra.mxu0 %v975
        %3873 = vmatprep.subr.mxu0 %v972
        %3874 = vmatpush1.msra.mxu0 %v971
        %3875 = vmatprep.subr.mxu0 %v968
        %3876 = vmatpush1.msra.mxu0 %v967
        %3877 = vmatprep.subr.mxu0 %v964
        %3878 = vmatpush1.msra.mxu0 %v963
        %3879 = vmatprep.subr.mxu0 %v960
        %3880 = vmatpush1.msra.mxu0 %v959
        %3881 = vmatprep.subr.mxu0 %v956
        %3882 = vmatpush1.msra.mxu0 %v955
        %3883 = vmatprep.subr.mxu0 0.0
        %3884 = vmatpush2.msra.mxu0 0.0
        %3885 = vmatprep.subr.mxu0 0.0
        %3886 = vmatpush2.msra.mxu0 0.0
        %3887 = vmatprep.subr.mxu0 0.0
        %3888 = vmatpush2.msra.mxu0 0.0
        %3889 = vmatprep.subr.mxu0 0.0
        %3890 = vmatpush2.msra.mxu0 0.0
        %3891 = vmatprep.subr.mxu0 0.0
        %3892 = vmatpush2.msra.mxu0 0.0
        %3893 = vmatprep.subr.mxu0 0.0
        %3894 = vmatpush2.msra.mxu0 0.0
        %3895 = vmatprep.subr.mxu0 0.0
        %3896 = vmatpush2.msra.mxu0 0.0
        %3897 = vmatprep.subr.mxu0 0.0
        %3898 = vmatpush2.msra.mxu0 0.0
        %3899 = vmatprep.subr.mxu0 0.0
        %3900 = vmatpush2.msra.mxu0 0.0
        %3901 = vmatprep.subr.mxu0 0.0
        %3902 = vmatpush2.msra.mxu0 0.0
        %3903 = vmatprep.subr.mxu0 0.0
        %3904 = vmatpush2.msra.mxu0 0.0
        %3905 = vmatprep.subr.mxu0 0.0
        %3906 = vmatpush2.msra.mxu0 0.0
        %3907 = vmatprep.subr.mxu0 0.0
        %3908 = vmatpush2.msra.mxu0 0.0
        %3909 = vmatprep.subr.mxu0 0.0
        %3910 = vmatpush2.msra.mxu0 0.0
        %3911 = vmatprep.subr.mxu0 0.0
        %3912 = vmatpush2.msra.mxu0 0.0
        %3913 = vmatprep.subr.mxu0 0.0
        %3914 = vmatpush2.msra.mxu0 0.0
        %3915 = vmatprep.mubr.f32.mxu0 0.0
        %3916 = vmatmul.mubr.f32.gmra.mxu0 %v3846
        %v3917 = vpop.f32.mrf.mxu0
        %v3918 = vadd.f32 0.0, %v3917
        %v3919 = vpop.f32.mrf.mxu0
        %v3920 = vadd.f32 0.0, %v3919
        %3921 = vdwg.mxu0
        %3922 = vmatprep.subr.mxu0 %v1018
        %3923 = vmatpush1.msra.mxu0 %v1017
        %3924 = vmatprep.subr.mxu0 %v1014
        %3925 = vmatpush1.msra.mxu0 %v1013
        %3926 = vmatprep.subr.mxu0 %v1010
        %3927 = vmatpush1.msra.mxu0 %v1009
        %3928 = vmatprep.subr.mxu0 %v1006
        %3929 = vmatpush1.msra.mxu0 %v1005
        %3930 = vmatprep.subr.mxu0 %v1002
        %3931 = vmatpush1.msra.mxu0 %v1001
        %3932 = vmatprep.subr.mxu0 %v998
        %3933 = vmatpush1.msra.mxu0 %v997
        %3934 = vmatprep.subr.mxu0 %v994
        %3935 = vmatpush1.msra.mxu0 %v993
        %3936 = vmatprep.subr.mxu0 %v990
        %3937 = vmatpush1.msra.mxu0 %v989
        %3938 = vmatprep.subr.mxu0 %v986
        %3939 = vmatpush1.msra.mxu0 %v985
        %3940 = vmatprep.subr.mxu0 %v982
        %3941 = vmatpush1.msra.mxu0 %v981
        %3942 = vmatprep.subr.mxu0 %v978
        %3943 = vmatpush1.msra.mxu0 %v977
        %3944 = vmatprep.subr.mxu0 %v974
        %3945 = vmatpush1.msra.mxu0 %v973
        %3946 = vmatprep.subr.mxu0 %v970
        %3947 = vmatpush1.msra.mxu0 %v969
        %3948 = vmatprep.subr.mxu0 %v966
        %3949 = vmatpush1.msra.mxu0 %v965
        %3950 = vmatprep.subr.mxu0 %v962
        %3951 = vmatpush1.msra.mxu0 %v961
        %3952 = vmatprep.subr.mxu0 %v958
        %3953 = vmatpush1.msra.mxu0 %v957
        %3954 = vmatprep.subr.mxu0 0.0
        %3955 = vmatpush2.msra.mxu0 0.0
        %3956 = vmatprep.subr.mxu0 0.0
        %3957 = vmatpush2.msra.mxu0 0.0
        %3958 = vmatprep.subr.mxu0 0.0
        %3959 = vmatpush2.msra.mxu0 0.0
        %3960 = vmatprep.subr.mxu0 0.0
        %3961 = vmatpush2.msra.mxu0 0.0
        %3962 = vmatprep.subr.mxu0 0.0
        %3963 = vmatpush2.msra.mxu0 0.0
        %3964 = vmatprep.subr.mxu0 0.0
        %3965 = vmatpush2.msra.mxu0 0.0
        %3966 = vmatprep.subr.mxu0 0.0
        %3967 = vmatpush2.msra.mxu0 0.0
        %3968 = vmatprep.subr.mxu0 0.0
        %3969 = vmatpush2.msra.mxu0 0.0
        %3970 = vmatprep.subr.mxu0 0.0
        %3971 = vmatpush2.msra.mxu0 0.0
        %3972 = vmatprep.subr.mxu0 0.0
        %3973 = vmatpush2.msra.mxu0 0.0
        %3974 = vmatprep.subr.mxu0 0.0
        %3975 = vmatpush2.msra.mxu0 0.0
        %3976 = vmatprep.subr.mxu0 0.0
        %3977 = vmatpush2.msra.mxu0 0.0
        %3978 = vmatprep.subr.mxu0 0.0
        %3979 = vmatpush2.msra.mxu0 0.0
        %3980 = vmatprep.subr.mxu0 0.0
        %3981 = vmatpush2.msra.mxu0 0.0
        %3982 = vmatprep.subr.mxu0 0.0
        %3983 = vmatpush2.msra.mxu0 0.0
        %3984 = vmatprep.subr.mxu0 0.0
        %3985 = vmatpush2.msra.mxu0 0.0
        %3986 = vmatprep.mubr.f32.mxu0 0.0
        %3987 = vmatmul.mubr.f32.gmra.mxu0 %v3846
        %v3988 = vpop.f32.mrf.mxu0
        %v3989 = vadd.f32 0.0, %v3988
        %v3990 = vpop.f32.mrf.mxu0
        %v3991 = vadd.f32 0.0, %v3990
        %3992 = vdwg.mxu0
        %v3993 = vadd.f32 %v3847, %v3918
        %v3994 = vadd.f32 %v3848, %v3920
        %v3995 = vadd.f32 %v3849, %v3989
        %v3996 = vadd.f32 %v3850, %v3991
        %v3997 = vsub.f32 0.0, %v3993
        %v3998 = vsub.f32 0.0, %v3994
        %v3999 = vsub.f32 0.0, %v3995
        %v4000 = vsub.f32 0.0, %v3996
        %v4001 = vmul.f32 %v3997, 1.442695
        %v4002 = vpow.pop %v4001
        %v4003 = vmul.f32 %v3998, 1.442695
        %v4004 = vpow.pop %v4003
        %v4005 = vmul.f32 %v3999, 1.442695
        %v4006 = vpow.pop %v4005
        %v4007 = vmul.f32 %v4000, 1.442695
        %v4008 = vpow.pop %v4007
        %v4009 = vadd.f32 %v4002, 1.0
        %v4010 = vadd.f32 %v4004, 1.0
        %v4011 = vadd.f32 %v4006, 1.0
        %v4012 = vadd.f32 %v4008, 1.0
        %v4013 = vrcp.pop %v4009
        %v4014 = vrcp.pop %v4010
        %v4015 = vrcp.pop %v4011
        %v4016 = vrcp.pop %v4012
        %v4017 = vmul.f32 %v4015, 2.0
        %v4018 = vsub.f32 %v4017, 1.0
        %v4019 = vmul.f32 %v4014, %v3844
        %v4020 = vmul.f32 %v4013, %v4018
        %v4021 = vadd.f32 %v4019, %v4020
        %v4022 = vtanh.pop %v4021
        %v4023 = vmul.f32 %v4016, %v4022
        %v4024 = vld [vmem:[#allocation2 + $0x220] sm:$0xff]
        %v4025 = vld [vmem:[#allocation2 + $0x228] sm:$0xff]
        %v4026 = vld [vmem:[#allocation2 + $0x230] sm:$0xff]
        %v4027 = vld [vmem:[#allocation2 + $0x238] sm:$0xff]
        %4028 = vmatprep.subr.mxu0 %v1016
        %4029 = vmatpush1.msra.mxu0 %v1015
        %4030 = vmatprep.subr.mxu0 %v1012
        %4031 = vmatpush1.msra.mxu0 %v1011
        %4032 = vmatprep.subr.mxu0 %v1008
        %4033 = vmatpush1.msra.mxu0 %v1007
        %4034 = vmatprep.subr.mxu0 %v1004
        %4035 = vmatpush1.msra.mxu0 %v1003
        %4036 = vmatprep.subr.mxu0 %v1000
        %4037 = vmatpush1.msra.mxu0 %v999
        %4038 = vmatprep.subr.mxu0 %v996
        %4039 = vmatpush1.msra.mxu0 %v995
        %4040 = vmatprep.subr.mxu0 %v992
        %4041 = vmatpush1.msra.mxu0 %v991
        %4042 = vmatprep.subr.mxu0 %v988
        %4043 = vmatpush1.msra.mxu0 %v987
        %4044 = vmatprep.subr.mxu0 %v984
        %4045 = vmatpush1.msra.mxu0 %v983
        %4046 = vmatprep.subr.mxu0 %v980
        %4047 = vmatpush1.msra.mxu0 %v979
        %4048 = vmatprep.subr.mxu0 %v976
        %4049 = vmatpush1.msra.mxu0 %v975
        %4050 = vmatprep.subr.mxu0 %v972
        %4051 = vmatpush1.msra.mxu0 %v971
        %4052 = vmatprep.subr.mxu0 %v968
        %4053 = vmatpush1.msra.mxu0 %v967
        %4054 = vmatprep.subr.mxu0 %v964
        %4055 = vmatpush1.msra.mxu0 %v963
        %4056 = vmatprep.subr.mxu0 %v960
        %4057 = vmatpush1.msra.mxu0 %v959
        %4058 = vmatprep.subr.mxu0 %v956
        %4059 = vmatpush1.msra.mxu0 %v955
        %4060 = vmatprep.subr.mxu0 0.0
        %4061 = vmatpush2.msra.mxu0 0.0
        %4062 = vmatprep.subr.mxu0 0.0
        %4063 = vmatpush2.msra.mxu0 0.0
        %4064 = vmatprep.subr.mxu0 0.0
        %4065 = vmatpush2.msra.mxu0 0.0
        %4066 = vmatprep.subr.mxu0 0.0
        %4067 = vmatpush2.msra.mxu0 0.0
        %4068 = vmatprep.subr.mxu0 0.0
        %4069 = vmatpush2.msra.mxu0 0.0
        %4070 = vmatprep.subr.mxu0 0.0
        %4071 = vmatpush2.msra.mxu0 0.0
        %4072 = vmatprep.subr.mxu0 0.0
        %4073 = vmatpush2.msra.mxu0 0.0
        %4074 = vmatprep.subr.mxu0 0.0
        %4075 = vmatpush2.msra.mxu0 0.0
        %4076 = vmatprep.subr.mxu0 0.0
        %4077 = vmatpush2.msra.mxu0 0.0
        %4078 = vmatprep.subr.mxu0 0.0
        %4079 = vmatpush2.msra.mxu0 0.0
        %4080 = vmatprep.subr.mxu0 0.0
        %4081 = vmatpush2.msra.mxu0 0.0
        %4082 = vmatprep.subr.mxu0 0.0
        %4083 = vmatpush2.msra.mxu0 0.0
        %4084 = vmatprep.subr.mxu0 0.0
        %4085 = vmatpush2.msra.mxu0 0.0
        %4086 = vmatprep.subr.mxu0 0.0
        %4087 = vmatpush2.msra.mxu0 0.0
        %4088 = vmatprep.subr.mxu0 0.0
        %4089 = vmatpush2.msra.mxu0 0.0
        %4090 = vmatprep.subr.mxu0 0.0
        %4091 = vmatpush2.msra.mxu0 0.0
        %4092 = vmatprep.mubr.f32.mxu0 0.0
        %4093 = vmatmul.mubr.f32.gmra.mxu0 %v4023
        %v4094 = vpop.f32.mrf.mxu0
        %v4095 = vadd.f32 0.0, %v4094
        %v4096 = vpop.f32.mrf.mxu0
        %v4097 = vadd.f32 0.0, %v4096
        %4098 = vdwg.mxu0
        %4099 = vmatprep.subr.mxu0 %v1018
        %4100 = vmatpush1.msra.mxu0 %v1017
        %4101 = vmatprep.subr.mxu0 %v1014
        %4102 = vmatpush1.msra.mxu0 %v1013
        %4103 = vmatprep.subr.mxu0 %v1010
        %4104 = vmatpush1.msra.mxu0 %v1009
        %4105 = vmatprep.subr.mxu0 %v1006
        %4106 = vmatpush1.msra.mxu0 %v1005
        %4107 = vmatprep.subr.mxu0 %v1002
        %4108 = vmatpush1.msra.mxu0 %v1001
        %4109 = vmatprep.subr.mxu0 %v998
        %4110 = vmatpush1.msra.mxu0 %v997
        %4111 = vmatprep.subr.mxu0 %v994
        %4112 = vmatpush1.msra.mxu0 %v993
        %4113 = vmatprep.subr.mxu0 %v990
        %4114 = vmatpush1.msra.mxu0 %v989
        %4115 = vmatprep.subr.mxu0 %v986
        %4116 = vmatpush1.msra.mxu0 %v985
        %4117 = vmatprep.subr.mxu0 %v982
        %4118 = vmatpush1.msra.mxu0 %v981
        %4119 = vmatprep.subr.mxu0 %v978
        %4120 = vmatpush1.msra.mxu0 %v977
        %4121 = vmatprep.subr.mxu0 %v974
        %4122 = vmatpush1.msra.mxu0 %v973
        %4123 = vmatprep.subr.mxu0 %v970
        %4124 = vmatpush1.msra.mxu0 %v969
        %4125 = vmatprep.subr.mxu0 %v966
        %4126 = vmatpush1.msra.mxu0 %v965
        %4127 = vmatprep.subr.mxu0 %v962
        %4128 = vmatpush1.msra.mxu0 %v961
        %4129 = vmatprep.subr.mxu0 %v958
        %4130 = vmatpush1.msra.mxu0 %v957
        %4131 = vmatprep.subr.mxu0 0.0
        %4132 = vmatpush2.msra.mxu0 0.0
        %4133 = vmatprep.subr.mxu0 0.0
        %4134 = vmatpush2.msra.mxu0 0.0
        %4135 = vmatprep.subr.mxu0 0.0
        %4136 = vmatpush2.msra.mxu0 0.0
        %4137 = vmatprep.subr.mxu0 0.0
        %4138 = vmatpush2.msra.mxu0 0.0
        %4139 = vmatprep.subr.mxu0 0.0
        %4140 = vmatpush2.msra.mxu0 0.0
        %4141 = vmatprep.subr.mxu0 0.0
        %4142 = vmatpush2.msra.mxu0 0.0
        %4143 = vmatprep.subr.mxu0 0.0
        %4144 = vmatpush2.msra.mxu0 0.0
        %4145 = vmatprep.subr.mxu0 0.0
        %4146 = vmatpush2.msra.mxu0 0.0
        %4147 = vmatprep.subr.mxu0 0.0
        %4148 = vmatpush2.msra.mxu0 0.0
        %4149 = vmatprep.subr.mxu0 0.0
        %4150 = vmatpush2.msra.mxu0 0.0
        %4151 = vmatprep.subr.mxu0 0.0
        %4152 = vmatpush2.msra.mxu0 0.0
        %4153 = vmatprep.subr.mxu0 0.0
        %4154 = vmatpush2.msra.mxu0 0.0
        %4155 = vmatprep.subr.mxu0 0.0
        %4156 = vmatpush2.msra.mxu0 0.0
        %4157 = vmatprep.subr.mxu0 0.0
        %4158 = vmatpush2.msra.mxu0 0.0
        %4159 = vmatprep.subr.mxu0 0.0
        %4160 = vmatpush2.msra.mxu0 0.0
        %4161 = vmatprep.subr.mxu0 0.0
        %4162 = vmatpush2.msra.mxu0 0.0
        %4163 = vmatprep.mubr.f32.mxu0 0.0
        %4164 = vmatmul.mubr.f32.gmra.mxu0 %v4023
        %v4165 = vpop.f32.mrf.mxu0
        %v4166 = vadd.f32 0.0, %v4165
        %v4167 = vpop.f32.mrf.mxu0
        %v4168 = vadd.f32 0.0, %v4167
        %4169 = vdwg.mxu0
        %v4170 = vadd.f32 %v4024, %v4095
        %v4171 = vadd.f32 %v4025, %v4097
        %v4172 = vadd.f32 %v4026, %v4166
        %v4173 = vadd.f32 %v4027, %v4168
        %v4174 = vsub.f32 0.0, %v4170
        %v4175 = vsub.f32 0.0, %v4171
        %v4176 = vsub.f32 0.0, %v4172
        %v4177 = vsub.f32 0.0, %v4173
        %v4178 = vmul.f32 %v4174, 1.442695
        %v4179 = vpow.pop %v4178
        %v4180 = vmul.f32 %v4175, 1.442695
        %v4181 = vpow.pop %v4180
        %v4182 = vmul.f32 %v4176, 1.442695
        %v4183 = vpow.pop %v4182
        %v4184 = vmul.f32 %v4177, 1.442695
        %v4185 = vpow.pop %v4184
        %v4186 = vadd.f32 %v4179, 1.0
        %v4187 = vadd.f32 %v4181, 1.0
        %v4188 = vadd.f32 %v4183, 1.0
        %v4189 = vadd.f32 %v4185, 1.0
        %v4190 = vrcp.pop %v4186
        %v4191 = vrcp.pop %v4187
        %v4192 = vrcp.pop %v4188
        %v4193 = vrcp.pop %v4189
        %v4194 = vmul.f32 %v4192, 2.0
        %v4195 = vsub.f32 %v4194, 1.0
        %v4196 = vmul.f32 %v4191, %v4021
        %v4197 = vmul.f32 %v4190, %v4195
        %v4198 = vadd.f32 %v4196, %v4197
        %v4199 = vtanh.pop %v4198
        %v4200 = vmul.f32 %v4193, %v4199
        %v4201 = vld [vmem:[#allocation2 + $0x240] sm:$0xff]
        %v4202 = vld [vmem:[#allocation2 + $0x248] sm:$0xff]
        %v4203 = vld [vmem:[#allocation2 + $0x250] sm:$0xff]
        %v4204 = vld [vmem:[#allocation2 + $0x258] sm:$0xff]
        %4205 = vmatprep.subr.mxu0 %v1016
        %4206 = vmatpush1.msra.mxu0 %v1015
        %4207 = vmatprep.subr.mxu0 %v1012
        %4208 = vmatpush1.msra.mxu0 %v1011
        %4209 = vmatprep.subr.mxu0 %v1008
        %4210 = vmatpush1.msra.mxu0 %v1007
        %4211 = vmatprep.subr.mxu0 %v1004
        %4212 = vmatpush1.msra.mxu0 %v1003
        %4213 = vmatprep.subr.mxu0 %v1000
        %4214 = vmatpush1.msra.mxu0 %v999
        %4215 = vmatprep.subr.mxu0 %v996
        %4216 = vmatpush1.msra.mxu0 %v995
        %4217 = vmatprep.subr.mxu0 %v992
        %4218 = vmatpush1.msra.mxu0 %v991
        %4219 = vmatprep.subr.mxu0 %v988
        %4220 = vmatpush1.msra.mxu0 %v987
        %4221 = vmatprep.subr.mxu0 %v984
        %4222 = vmatpush1.msra.mxu0 %v983
        %4223 = vmatprep.subr.mxu0 %v980
        %4224 = vmatpush1.msra.mxu0 %v979
        %4225 = vmatprep.subr.mxu0 %v976
        %4226 = vmatpush1.msra.mxu0 %v975
        %4227 = vmatprep.subr.mxu0 %v972
        %4228 = vmatpush1.msra.mxu0 %v971
        %4229 = vmatprep.subr.mxu0 %v968
        %4230 = vmatpush1.msra.mxu0 %v967
        %4231 = vmatprep.subr.mxu0 %v964
        %4232 = vmatpush1.msra.mxu0 %v963
        %4233 = vmatprep.subr.mxu0 %v960
        %4234 = vmatpush1.msra.mxu0 %v959
        %4235 = vmatprep.subr.mxu0 %v956
        %4236 = vmatpush1.msra.mxu0 %v955
        %4237 = vmatprep.subr.mxu0 0.0
        %4238 = vmatpush2.msra.mxu0 0.0
        %4239 = vmatprep.subr.mxu0 0.0
        %4240 = vmatpush2.msra.mxu0 0.0
        %4241 = vmatprep.subr.mxu0 0.0
        %4242 = vmatpush2.msra.mxu0 0.0
        %4243 = vmatprep.subr.mxu0 0.0
        %4244 = vmatpush2.msra.mxu0 0.0
        %4245 = vmatprep.subr.mxu0 0.0
        %4246 = vmatpush2.msra.mxu0 0.0
        %4247 = vmatprep.subr.mxu0 0.0
        %4248 = vmatpush2.msra.mxu0 0.0
        %4249 = vmatprep.subr.mxu0 0.0
        %4250 = vmatpush2.msra.mxu0 0.0
        %4251 = vmatprep.subr.mxu0 0.0
        %4252 = vmatpush2.msra.mxu0 0.0
        %4253 = vmatprep.subr.mxu0 0.0
        %4254 = vmatpush2.msra.mxu0 0.0
        %4255 = vmatprep.subr.mxu0 0.0
        %4256 = vmatpush2.msra.mxu0 0.0
        %4257 = vmatprep.subr.mxu0 0.0
        %4258 = vmatpush2.msra.mxu0 0.0
        %4259 = vmatprep.subr.mxu0 0.0
        %4260 = vmatpush2.msra.mxu0 0.0
        %4261 = vmatprep.subr.mxu0 0.0
        %4262 = vmatpush2.msra.mxu0 0.0
        %4263 = vmatprep.subr.mxu0 0.0
        %4264 = vmatpush2.msra.mxu0 0.0
        %4265 = vmatprep.subr.mxu0 0.0
        %4266 = vmatpush2.msra.mxu0 0.0
        %4267 = vmatprep.subr.mxu0 0.0
        %4268 = vmatpush2.msra.mxu0 0.0
        %4269 = vmatprep.mubr.f32.mxu0 0.0
        %4270 = vmatmul.mubr.f32.gmra.mxu0 %v4200
        %v4271 = vpop.f32.mrf.mxu0
        %v4272 = vadd.f32 0.0, %v4271
        %v4273 = vpop.f32.mrf.mxu0
        %v4274 = vadd.f32 0.0, %v4273
        %4275 = vdwg.mxu0
        %4276 = vmatprep.subr.mxu0 %v1018
        %4277 = vmatpush1.msra.mxu0 %v1017
        %4278 = vmatprep.subr.mxu0 %v1014
        %4279 = vmatpush1.msra.mxu0 %v1013
        %4280 = vmatprep.subr.mxu0 %v1010
        %4281 = vmatpush1.msra.mxu0 %v1009
        %4282 = vmatprep.subr.mxu0 %v1006
        %4283 = vmatpush1.msra.mxu0 %v1005
        %4284 = vmatprep.subr.mxu0 %v1002
        %4285 = vmatpush1.msra.mxu0 %v1001
        %4286 = vmatprep.subr.mxu0 %v998
        %4287 = vmatpush1.msra.mxu0 %v997
        %4288 = vmatprep.subr.mxu0 %v994
        %4289 = vmatpush1.msra.mxu0 %v993
        %4290 = vmatprep.subr.mxu0 %v990
        %4291 = vmatpush1.msra.mxu0 %v989
        %4292 = vmatprep.subr.mxu0 %v986
        %4293 = vmatpush1.msra.mxu0 %v985
        %4294 = vmatprep.subr.mxu0 %v982
        %4295 = vmatpush1.msra.mxu0 %v981
        %4296 = vmatprep.subr.mxu0 %v978
        %4297 = vmatpush1.msra.mxu0 %v977
        %4298 = vmatprep.subr.mxu0 %v974
        %4299 = vmatpush1.msra.mxu0 %v973
        %4300 = vmatprep.subr.mxu0 %v970
        %4301 = vmatpush1.msra.mxu0 %v969
        %4302 = vmatprep.subr.mxu0 %v966
        %4303 = vmatpush1.msra.mxu0 %v965
        %4304 = vmatprep.subr.mxu0 %v962
        %4305 = vmatpush1.msra.mxu0 %v961
        %4306 = vmatprep.subr.mxu0 %v958
        %4307 = vmatpush1.msra.mxu0 %v957
        %4308 = vmatprep.subr.mxu0 0.0
        %4309 = vmatpush2.msra.mxu0 0.0
        %4310 = vmatprep.subr.mxu0 0.0
        %4311 = vmatpush2.msra.mxu0 0.0
        %4312 = vmatprep.subr.mxu0 0.0
        %4313 = vmatpush2.msra.mxu0 0.0
        %4314 = vmatprep.subr.mxu0 0.0
        %4315 = vmatpush2.msra.mxu0 0.0
        %4316 = vmatprep.subr.mxu0 0.0
        %4317 = vmatpush2.msra.mxu0 0.0
        %4318 = vmatprep.subr.mxu0 0.0
        %4319 = vmatpush2.msra.mxu0 0.0
        %4320 = vmatprep.subr.mxu0 0.0
        %4321 = vmatpush2.msra.mxu0 0.0
        %4322 = vmatprep.subr.mxu0 0.0
        %4323 = vmatpush2.msra.mxu0 0.0
        %4324 = vmatprep.subr.mxu0 0.0
        %4325 = vmatpush2.msra.mxu0 0.0
        %4326 = vmatprep.subr.mxu0 0.0
        %4327 = vmatpush2.msra.mxu0 0.0
        %4328 = vmatprep.subr.mxu0 0.0
        %4329 = vmatpush2.msra.mxu0 0.0
        %4330 = vmatprep.subr.mxu0 0.0
        %4331 = vmatpush2.msra.mxu0 0.0
        %4332 = vmatprep.subr.mxu0 0.0
        %4333 = vmatpush2.msra.mxu0 0.0
        %4334 = vmatprep.subr.mxu0 0.0
        %4335 = vmatpush2.msra.mxu0 0.0
        %4336 = vmatprep.subr.mxu0 0.0
        %4337 = vmatpush2.msra.mxu0 0.0
        %4338 = vmatprep.subr.mxu0 0.0
        %4339 = vmatpush2.msra.mxu0 0.0
        %4340 = vmatprep.mubr.f32.mxu0 0.0
        %4341 = vmatmul.mubr.f32.gmra.mxu0 %v4200
        %v4342 = vpop.f32.mrf.mxu0
        %v4343 = vadd.f32 0.0, %v4342
        %v4344 = vpop.f32.mrf.mxu0
        %v4345 = vadd.f32 0.0, %v4344
        %4346 = vdwg.mxu0
        %v4347 = vadd.f32 %v4201, %v4272
        %v4348 = vadd.f32 %v4202, %v4274
        %v4349 = vadd.f32 %v4203, %v4343
        %v4350 = vadd.f32 %v4204, %v4345
        %v4351 = vsub.f32 0.0, %v4347
        %v4352 = vsub.f32 0.0, %v4348
        %v4353 = vsub.f32 0.0, %v4349
        %v4354 = vsub.f32 0.0, %v4350
        %v4355 = vmul.f32 %v4351, 1.442695
        %v4356 = vpow.pop %v4355
        %v4357 = vmul.f32 %v4352, 1.442695
        %v4358 = vpow.pop %v4357
        %v4359 = vmul.f32 %v4353, 1.442695
        %v4360 = vpow.pop %v4359
        %v4361 = vmul.f32 %v4354, 1.442695
        %v4362 = vpow.pop %v4361
        %v4363 = vadd.f32 %v4356, 1.0
        %v4364 = vadd.f32 %v4358, 1.0
        %v4365 = vadd.f32 %v4360, 1.0
        %v4366 = vadd.f32 %v4362, 1.0
        %v4367 = vrcp.pop %v4363
        %v4368 = vrcp.pop %v4364
        %v4369 = vrcp.pop %v4365
        %v4370 = vrcp.pop %v4366
        %v4371 = vmul.f32 %v4369, 2.0
        %v4372 = vsub.f32 %v4371, 1.0
        %v4373 = vmul.f32 %v4368, %v4198
        %v4374 = vmul.f32 %v4367, %v4372
        %v4375 = vadd.f32 %v4373, %v4374
        %v4376 = vtanh.pop %v4375
        %v4377 = vmul.f32 %v4370, %v4376
        %v4378 = vld [vmem:[#allocation2 + $0x260] sm:$0xff]
        %v4379 = vld [vmem:[#allocation2 + $0x268] sm:$0xff]
        %v4380 = vld [vmem:[#allocation2 + $0x270] sm:$0xff]
        %v4381 = vld [vmem:[#allocation2 + $0x278] sm:$0xff]
        %4382 = vmatprep.subr.mxu0 %v1016
        %4383 = vmatpush1.msra.mxu0 %v1015
        %4384 = vmatprep.subr.mxu0 %v1012
        %4385 = vmatpush1.msra.mxu0 %v1011
        %4386 = vmatprep.subr.mxu0 %v1008
        %4387 = vmatpush1.msra.mxu0 %v1007
        %4388 = vmatprep.subr.mxu0 %v1004
        %4389 = vmatpush1.msra.mxu0 %v1003
        %4390 = vmatprep.subr.mxu0 %v1000
        %4391 = vmatpush1.msra.mxu0 %v999
        %4392 = vmatprep.subr.mxu0 %v996
        %4393 = vmatpush1.msra.mxu0 %v995
        %4394 = vmatprep.subr.mxu0 %v992
        %4395 = vmatpush1.msra.mxu0 %v991
        %4396 = vmatprep.subr.mxu0 %v988
        %4397 = vmatpush1.msra.mxu0 %v987
        %4398 = vmatprep.subr.mxu0 %v984
        %4399 = vmatpush1.msra.mxu0 %v983
        %4400 = vmatprep.subr.mxu0 %v980
        %4401 = vmatpush1.msra.mxu0 %v979
        %4402 = vmatprep.subr.mxu0 %v976
        %4403 = vmatpush1.msra.mxu0 %v975
        %4404 = vmatprep.subr.mxu0 %v972
        %4405 = vmatpush1.msra.mxu0 %v971
        %4406 = vmatprep.subr.mxu0 %v968
        %4407 = vmatpush1.msra.mxu0 %v967
        %4408 = vmatprep.subr.mxu0 %v964
        %4409 = vmatpush1.msra.mxu0 %v963
        %4410 = vmatprep.subr.mxu0 %v960
        %4411 = vmatpush1.msra.mxu0 %v959
        %4412 = vmatprep.subr.mxu0 %v956
        %4413 = vmatpush1.msra.mxu0 %v955
        %4414 = vmatprep.subr.mxu0 0.0
        %4415 = vmatpush2.msra.mxu0 0.0
        %4416 = vmatprep.subr.mxu0 0.0
        %4417 = vmatpush2.msra.mxu0 0.0
        %4418 = vmatprep.subr.mxu0 0.0
        %4419 = vmatpush2.msra.mxu0 0.0
        %4420 = vmatprep.subr.mxu0 0.0
        %4421 = vmatpush2.msra.mxu0 0.0
        %4422 = vmatprep.subr.mxu0 0.0
        %4423 = vmatpush2.msra.mxu0 0.0
        %4424 = vmatprep.subr.mxu0 0.0
        %4425 = vmatpush2.msra.mxu0 0.0
        %4426 = vmatprep.subr.mxu0 0.0
        %4427 = vmatpush2.msra.mxu0 0.0
        %4428 = vmatprep.subr.mxu0 0.0
        %4429 = vmatpush2.msra.mxu0 0.0
        %4430 = vmatprep.subr.mxu0 0.0
        %4431 = vmatpush2.msra.mxu0 0.0
        %4432 = vmatprep.subr.mxu0 0.0
        %4433 = vmatpush2.msra.mxu0 0.0
        %4434 = vmatprep.subr.mxu0 0.0
        %4435 = vmatpush2.msra.mxu0 0.0
        %4436 = vmatprep.subr.mxu0 0.0
        %4437 = vmatpush2.msra.mxu0 0.0
        %4438 = vmatprep.subr.mxu0 0.0
        %4439 = vmatpush2.msra.mxu0 0.0
        %4440 = vmatprep.subr.mxu0 0.0
        %4441 = vmatpush2.msra.mxu0 0.0
        %4442 = vmatprep.subr.mxu0 0.0
        %4443 = vmatpush2.msra.mxu0 0.0
        %4444 = vmatprep.subr.mxu0 0.0
        %4445 = vmatpush2.msra.mxu0 0.0
        %4446 = vmatprep.mubr.f32.mxu0 0.0
        %4447 = vmatmul.mubr.f32.gmra.mxu0 %v4377
        %v4448 = vpop.f32.mrf.mxu0
        %v4449 = vadd.f32 0.0, %v4448
        %v4450 = vpop.f32.mrf.mxu0
        %v4451 = vadd.f32 0.0, %v4450
        %4452 = vdwg.mxu0
        %4453 = vmatprep.subr.mxu0 %v1018
        %4454 = vmatpush1.msra.mxu0 %v1017
        %4455 = vmatprep.subr.mxu0 %v1014
        %4456 = vmatpush1.msra.mxu0 %v1013
        %4457 = vmatprep.subr.mxu0 %v1010
        %4458 = vmatpush1.msra.mxu0 %v1009
        %4459 = vmatprep.subr.mxu0 %v1006
        %4460 = vmatpush1.msra.mxu0 %v1005
        %4461 = vmatprep.subr.mxu0 %v1002
        %4462 = vmatpush1.msra.mxu0 %v1001
        %4463 = vmatprep.subr.mxu0 %v998
        %4464 = vmatpush1.msra.mxu0 %v997
        %4465 = vmatprep.subr.mxu0 %v994
        %4466 = vmatpush1.msra.mxu0 %v993
        %4467 = vmatprep.subr.mxu0 %v990
        %4468 = vmatpush1.msra.mxu0 %v989
        %4469 = vmatprep.subr.mxu0 %v986
        %4470 = vmatpush1.msra.mxu0 %v985
        %4471 = vmatprep.subr.mxu0 %v982
        %4472 = vmatpush1.msra.mxu0 %v981
        %4473 = vmatprep.subr.mxu0 %v978
        %4474 = vmatpush1.msra.mxu0 %v977
        %4475 = vmatprep.subr.mxu0 %v974
        %4476 = vmatpush1.msra.mxu0 %v973
        %4477 = vmatprep.subr.mxu0 %v970
        %4478 = vmatpush1.msra.mxu0 %v969
        %4479 = vmatprep.subr.mxu0 %v966
        %4480 = vmatpush1.msra.mxu0 %v965
        %4481 = vmatprep.subr.mxu0 %v962
        %4482 = vmatpush1.msra.mxu0 %v961
        %4483 = vmatprep.subr.mxu0 %v958
        %4484 = vmatpush1.msra.mxu0 %v957
        %4485 = vmatprep.subr.mxu0 0.0
        %4486 = vmatpush2.msra.mxu0 0.0
        %4487 = vmatprep.subr.mxu0 0.0
        %4488 = vmatpush2.msra.mxu0 0.0
        %4489 = vmatprep.subr.mxu0 0.0
        %4490 = vmatpush2.msra.mxu0 0.0
        %4491 = vmatprep.subr.mxu0 0.0
        %4492 = vmatpush2.msra.mxu0 0.0
        %4493 = vmatprep.subr.mxu0 0.0
        %4494 = vmatpush2.msra.mxu0 0.0
        %4495 = vmatprep.subr.mxu0 0.0
        %4496 = vmatpush2.msra.mxu0 0.0
        %4497 = vmatprep.subr.mxu0 0.0
        %4498 = vmatpush2.msra.mxu0 0.0
        %4499 = vmatprep.subr.mxu0 0.0
        %4500 = vmatpush2.msra.mxu0 0.0
        %4501 = vmatprep.subr.mxu0 0.0
        %4502 = vmatpush2.msra.mxu0 0.0
        %4503 = vmatprep.subr.mxu0 0.0
        %4504 = vmatpush2.msra.mxu0 0.0
        %4505 = vmatprep.subr.mxu0 0.0
        %4506 = vmatpush2.msra.mxu0 0.0
        %4507 = vmatprep.subr.mxu0 0.0
        %4508 = vmatpush2.msra.mxu0 0.0
        %4509 = vmatprep.subr.mxu0 0.0
        %4510 = vmatpush2.msra.mxu0 0.0
        %4511 = vmatprep.subr.mxu0 0.0
        %4512 = vmatpush2.msra.mxu0 0.0
        %4513 = vmatprep.subr.mxu0 0.0
        %4514 = vmatpush2.msra.mxu0 0.0
        %4515 = vmatprep.subr.mxu0 0.0
        %4516 = vmatpush2.msra.mxu0 0.0
        %4517 = vmatprep.mubr.f32.mxu0 0.0
        %4518 = vmatmul.mubr.f32.gmra.mxu0 %v4377
        %v4519 = vpop.f32.mrf.mxu0
        %v4520 = vadd.f32 0.0, %v4519
        %v4521 = vpop.f32.mrf.mxu0
        %v4522 = vadd.f32 0.0, %v4521
        %4523 = vdwg.mxu0
        %v4524 = vadd.f32 %v4378, %v4449
        %v4525 = vadd.f32 %v4379, %v4451
        %v4526 = vadd.f32 %v4380, %v4520
        %v4527 = vadd.f32 %v4381, %v4522
        %v4528 = vsub.f32 0.0, %v4524
        %v4529 = vsub.f32 0.0, %v4525
        %v4530 = vsub.f32 0.0, %v4526
        %v4531 = vsub.f32 0.0, %v4527
        %v4532 = vmul.f32 %v4528, 1.442695
        %v4533 = vpow.pop %v4532
        %v4534 = vmul.f32 %v4529, 1.442695
        %v4535 = vpow.pop %v4534
        %v4536 = vmul.f32 %v4530, 1.442695
        %v4537 = vpow.pop %v4536
        %v4538 = vmul.f32 %v4531, 1.442695
        %v4539 = vpow.pop %v4538
        %v4540 = vadd.f32 %v4533, 1.0
        %v4541 = vadd.f32 %v4535, 1.0
        %v4542 = vadd.f32 %v4537, 1.0
        %v4543 = vadd.f32 %v4539, 1.0
        %v4544 = vrcp.pop %v4540
        %v4545 = vrcp.pop %v4541
        %v4546 = vrcp.pop %v4542
        %v4547 = vrcp.pop %v4543
        %v4548 = vmul.f32 %v4546, 2.0
        %v4549 = vsub.f32 %v4548, 1.0
        %v4550 = vmul.f32 %v4545, %v4375
        %v4551 = vmul.f32 %v4544, %v4549
        %v4552 = vadd.f32 %v4550, %v4551
        %v4553 = vtanh.pop %v4552
        %v4554 = vmul.f32 %v4547, %v4553
        %v4555 = vld [vmem:[#allocation6] sm:$0xff]
        %v4556 = vld [vmem:[#allocation6 + $0x8] sm:$0xff]
        %v4557 = vld [vmem:[#allocation6 + $0x10] sm:$0xff]
        %v4558 = vld [vmem:[#allocation6 + $0x18] sm:$0xff]
        %v4559 = vld [vmem:[#allocation6 + $0x20] sm:$0xff]
        %v4560 = vld [vmem:[#allocation6 + $0x28] sm:$0xff]
        %v4561 = vld [vmem:[#allocation6 + $0x30] sm:$0xff]
        %v4562 = vld [vmem:[#allocation6 + $0x38] sm:$0xff]
        %v4563 = vld [vmem:[#allocation6 + $0x40] sm:$0xff]
        %v4564 = vld [vmem:[#allocation6 + $0x48] sm:$0xff]
        %v4565 = vld [vmem:[#allocation6 + $0x50] sm:$0xff]
        %v4566 = vld [vmem:[#allocation6 + $0x58] sm:$0xff]
        %v4567 = vld [vmem:[#allocation6 + $0x60] sm:$0xff]
        %v4568 = vld [vmem:[#allocation6 + $0x68] sm:$0xff]
        %v4569 = vld [vmem:[#allocation6 + $0x70] sm:$0xff]
        %v4570 = vld [vmem:[#allocation6 + $0x78] sm:$0xff]
        %v4571 = vld [vmem:[#allocation6 + $0x80] sm:$0xff]
        %v4572 = vld [vmem:[#allocation6 + $0x88] sm:$0xff]
        %v4573 = vld [vmem:[#allocation6 + $0x90] sm:$0xff]
        %v4574 = vld [vmem:[#allocation6 + $0x98] sm:$0xff]
        %v4575 = vld [vmem:[#allocation6 + $0xa0] sm:$0xff]
        %v4576 = vld [vmem:[#allocation6 + $0xa8] sm:$0xff]
        %v4577 = vld [vmem:[#allocation6 + $0xb0] sm:$0xff]
        %v4578 = vld [vmem:[#allocation6 + $0xb8] sm:$0xff]
        %v4579 = vld [vmem:[#allocation6 + $0xc0] sm:$0xff]
        %v4580 = vld [vmem:[#allocation6 + $0xc8] sm:$0xff]
        %v4581 = vld [vmem:[#allocation6 + $0xd0] sm:$0xff]
        %v4582 = vld [vmem:[#allocation6 + $0xd8] sm:$0xff]
        %v4583 = vld [vmem:[#allocation6 + $0xe0] sm:$0xff]
        %v4584 = vld [vmem:[#allocation6 + $0xe8] sm:$0xff]
        %v4585 = vld [vmem:[#allocation6 + $0xf0] sm:$0xff]
        %v4586 = vld [vmem:[#allocation6 + $0xf8] sm:$0xff]
        %v4587 = vld [vmem:[%s4] sm:$0x3]
        %v4589 = vlaneseq
        %v4590 = vshrl.u32 %v4589, 7
        %v4591 = vsub.s32 0, %v4590
        %v4592 = vrot.slane %v4587, %v4591
        %v4593 = vlaneseq
        %v4594 = vshrl.u32 %v4593, 7
        %v4595 = vsub.s32 1, %v4594
        %v4596 = vrot.slane %v4587, %v4595
        %4599 = vmatprep.subr.mxu0 %v4586
        %4600 = vmatpush1.msra.mxu0 %v4585
        %4601 = vmatprep.subr.mxu0 %v4584
        %4602 = vmatpush1.msra.mxu0 %v4583
        %4603 = vmatprep.subr.mxu0 %v4582
        %4604 = vmatpush1.msra.mxu0 %v4581
        %4605 = vmatprep.subr.mxu0 %v4580
        %4606 = vmatpush1.msra.mxu0 %v4579
        %4607 = vmatprep.subr.mxu0 %v4578
        %4608 = vmatpush1.msra.mxu0 %v4577
        %4609 = vmatprep.subr.mxu0 %v4576
        %4610 = vmatpush1.msra.mxu0 %v4575
        %4611 = vmatprep.subr.mxu0 %v4574
        %4612 = vmatpush1.msra.mxu0 %v4573
        %4613 = vmatprep.subr.mxu0 %v4572
        %4614 = vmatpush1.msra.mxu0 %v4571
        %4615 = vmatprep.subr.mxu0 %v4570
        %4616 = vmatpush1.msra.mxu0 %v4569
        %4617 = vmatprep.subr.mxu0 %v4568
        %4618 = vmatpush1.msra.mxu0 %v4567
        %4619 = vmatprep.subr.mxu0 %v4566
        %4620 = vmatpush1.msra.mxu0 %v4565
        %4621 = vmatprep.subr.mxu0 %v4564
        %4622 = vmatpush1.msra.mxu0 %v4563
        %4623 = vmatprep.subr.mxu0 %v4562
        %4624 = vmatpush1.msra.mxu0 %v4561
        %4625 = vmatprep.subr.mxu0 %v4560
        %4626 = vmatpush1.msra.mxu0 %v4559
        %4627 = vmatprep.subr.mxu0 %v4558
        %4628 = vmatpush1.msra.mxu0 %v4557
        %4629 = vmatprep.subr.mxu0 %v4556
        %4630 = vmatpush1.msra.mxu0 %v4555
        %4631 = vmatprep.subr.mxu0 0.0
        %4632 = vmatpush2.msra.mxu0 0.0
        %4633 = vmatprep.subr.mxu0 0.0
        %4634 = vmatpush2.msra.mxu0 0.0
        %4635 = vmatprep.subr.mxu0 0.0
        %4636 = vmatpush2.msra.mxu0 0.0
        %4637 = vmatprep.subr.mxu0 0.0
        %4638 = vmatpush2.msra.mxu0 0.0
        %4639 = vmatprep.subr.mxu0 0.0
        %4640 = vmatpush2.msra.mxu0 0.0
        %4641 = vmatprep.subr.mxu0 0.0
        %4642 = vmatpush2.msra.mxu0 0.0
        %4643 = vmatprep.subr.mxu0 0.0
        %4644 = vmatpush2.msra.mxu0 0.0
        %4645 = vmatprep.subr.mxu0 0.0
        %4646 = vmatpush2.msra.mxu0 0.0
        %4647 = vmatprep.subr.mxu0 0.0
        %4648 = vmatpush2.msra.mxu0 0.0
        %4649 = vmatprep.subr.mxu0 0.0
        %4650 = vmatpush2.msra.mxu0 0.0
        %4651 = vmatprep.subr.mxu0 0.0
        %4652 = vmatpush2.msra.mxu0 0.0
        %4653 = vmatprep.subr.mxu0 0.0
        %4654 = vmatpush2.msra.mxu0 0.0
        %4655 = vmatprep.subr.mxu0 0.0
        %4656 = vmatpush2.msra.mxu0 0.0
        %4657 = vmatprep.subr.mxu0 0.0
        %4658 = vmatpush2.msra.mxu0 0.0
        %4659 = vmatprep.subr.mxu0 0.0
        %4660 = vmatpush2.msra.mxu0 0.0
        %4661 = vmatprep.subr.mxu0 0.0
        %4662 = vmatpush2.msra.mxu0 0.0
        %4663 = vmatprep.mubr.f32.mxu0 0.0
        %4664 = vmatmul.mubr.f32.gmra.mxu0 %v4554
        %v4665 = vpop.f32.mrf.mxu0
        %v4666 = vadd.f32 %v4592, %v4665
        %v4667 = vpop.f32.mrf.mxu0
        %v4668 = vadd.f32 %v4596, %v4667
        %4669 = vdwg.mxu0
        %4670 = vst [vmem:[%s247] sm:$0xff] %v4666
        %4671 = vst [vmem:[%s247 + $0x8] sm:$0xff] %v4668
        %s4672 = sand.u32 %s139, 1
        %s4673 = scalar_lea.sflag [#allocation5], %s4672
        %s4674 = sand.u32 %s139, 1
        %s4675 = smul.addr %s4674, 16
        %s4676 = scalar_lea.vmem [#allocation8], %s4675
        // Predicated region
        $region49: #{run_policy_kernel.1} parent=39 // pred_check
          %p4677 = pneg %p149
        $region50: #{run_policy_kernel.1} parent=39 // pred_check_branch
          %4679 = sbr.rel (%p4677) target = $region52
        $region51: #{run_policy_kernel.1} parent=39 // pred_region
          %s4681 = ssub.s32 256, 256
          %4682 = vsyncadd %s4673, %s4681
          %s4683 = smul.addr %s21, 2
          %s4684 = smul.addr %s4683, 128
          %s4685 = scalar_lea.hbm %s5, %s4684
          %s4687 = sshll.u32 %s4676, 4
          %s4688 = int_to_ptr.vmem [resolvable:$true] %s4687
          %4690 = dma.vmem_to_hbm [thread:$0]  %s4688, 256, %s4685, %s4673
        $region52: #{run_policy_kernel.1} parent=39 // pred_fallthru
          _
      $region40: #{run_policy_kernel.1} parent=5 // pred_fallthru
        _
      %p4691 = scmp.le.s32.totalorder 2, %s16
      // Predicated region
      $region53: #{run_policy_kernel.1} parent=5 // pred_check
        %p4692 = pneg %p4691
      $region54: #{run_policy_kernel.1} parent=5 // pred_check_branch
        %4694 = sbr.rel (%p4692) target = $region56
      $region55: #{run_policy_kernel.1} parent=5 // pred_region
        %s4695 = ssub.s32 %s16, 2
        // Predicated region
        $region57: #{run_policy_kernel.1} parent=55 // pred_check
          %p4696 = pneg %p155
        $region58: #{run_policy_kernel.1} parent=55 // pred_check_branch
          %4698 = sbr.rel (%p4696) target = $region60
        $region59: #{run_policy_kernel.1} parent=55 // pred_region
          %s4699 = sand.u32 %s140, 1
          %s4700 = scalar_lea.sflag [#allocation5], %s4699
          %s4701 = sand.u32 %s140, 1
          %s4702 = smul.addr %s4701, 16
          %s4703 = scalar_lea.vmem [#allocation8], %s4702
          %4704 = dma.done %s4700, 256
        $region60: #{run_policy_kernel.1} parent=55 // pred_fallthru
          _
      $region56: #{run_policy_kernel.1} parent=5 // pred_fallthru
        _
    $region6: #{run_policy_kernel.1} parent=1 // loop_footer
      %s20 = sadd.s32 1, %s16
    $region7: #{run_policy_kernel.1} parent=1 // loop_footer_branch
      %15 = sbr.rel target = $region3
    $region8: #{run_policy_kernel.1} parent=1 // loop_exit
      _
    %4705 = vsyncpa [#allocation4], 1
    %s4706 = scalar_lea.sflag [#allocation4], 1
    %4707 = vsyncpa %s4706, 1
    %4708 = vsyncpa [#allocation7], 1
    %4709 = vsyncpa [#allocation5], 1
    %s4710 = scalar_lea.sflag [#allocation5], 1
    %4711 = vsyncpa %s4710, 1

</llo_original>
